<compile_context>
chip_gen: v6e
topology: v6e:2x2x1
jax: 0.10.0
libtpu: 0.0.40
codegen_flags: <defaults>
</compile_context>

<pallas_src>
import jax
import jax.numpy as jnp
from jax.experimental import pallas as pl
from jax.experimental.pallas import tpu as pltpu

D_HID = 10                 # matches default D_hid=10 in the PyTorch module
D_PAD = 16                 # hidden padded to a sublane multiple (exact, see above)
N_OUT = 4                  # (x, y, px, py)
SLAB_ROWS = D_PAD + N_OUT  # 20
SLAB_COLS = D_PAD + 3      # 19 : cols [0:16]=weights, 16=w1/b3, 17=b1, 18=b2
DEFAULT_MAX_TILE = 8192    # lanes per grid step ceiling; multiple of 128


def _round_up(x, m):
    return ((x + m - 1) // m) * m


def _choose_tile(n, max_tile):
    """Largest useful tile while keeping >= 2 grid steps (v7x megacore)."""
    tile = _round_up(max((n + 1) // 2, 1), 128)
    return max(128, min(tile, max_tile))


def _ode_mlp_kernel(t_ref, p_ref, out_ref):
    t = t_ref[...]                                   # (1, tile)
    p = p_ref[...]                                   # (SLAB_ROWS, SLAB_COLS)

    # static views into the packed parameter slab
    w2 = p[0:D_PAD, 0:D_PAD]                         # (16, 16)
    w1 = p[0:D_PAD, D_PAD:D_PAD + 1]                 # (16, 1)
    b1 = p[0:D_PAD, D_PAD + 1:D_PAD + 2]             # (16, 1)
    b2 = p[0:D_PAD, D_PAD + 2:D_PAD + 3]             # (16, 1)
    w3 = p[D_PAD:D_PAD + N_OUT, 0:D_PAD]             # (4, 16)
    b3 = p[D_PAD:D_PAD + N_OUT, D_PAD:D_PAD + 1]     # (4, 1)

    # layer 1: Linear(1, D) + sin  -> K=1, so a VPU broadcast FMA (no MXU push)
    h1 = jnp.sin(w1 * t + b1)                        # (16, tile)

    # layer 2: Linear(D, D) + sin   (MXU: (16,16) @ (16,tile))
    h2 = jnp.sin(jnp.dot(w2, h1, preferred_element_type=jnp.float32) + b2)

    # output layer: Linear(D, 4)    (MXU: (4,16) @ (16,tile))
    out_ref[...] = (jnp.dot(w3, h2, preferred_element_type=jnp.float32)
                    + b3).astype(out_ref.dtype)


def pack_params(params):
    """Pack torch-convention (w1,b1,w2,b2,w3,b3) into one zero-padded f32 slab.

    Zero-padding the hidden dim 10->16 is mathematically exact: padded rows of
    w1/b1 give sin(0)=0 activations, padded rows/cols of w2/b2 keep them 0, and
    padded cols of w3 contribute nothing to the output.
    """
    w1, b1, w2, b2, w3, b3 = params
    d = w2.shape[0]
    slab = jnp.zeros((SLAB_ROWS, SLAB_COLS), jnp.float32)
    slab = slab.at[:d, :d].set(w2.astype(jnp.float32))
    slab = slab.at[:d, D_PAD].set(w1.reshape(-1).astype(jnp.float32))
    slab = slab.at[:d, D_PAD + 1].set(b1.reshape(-1).astype(jnp.float32))
    slab = slab.at[:d, D_PAD + 2].set(b2.reshape(-1).astype(jnp.float32))
    slab = slab.at[D_PAD:D_PAD + N_OUT, :d].set(w3.astype(jnp.float32))
    slab = slab.at[D_PAD:D_PAD + N_OUT, D_PAD].set(b3.reshape(-1).astype(jnp.float32))
    return slab


def ode_net_hh_mm_forward_lane_dense(t, params, *, max_tile=DEFAULT_MAX_TILE):
    """Returns the lane-dense (4, N) result: rows = (xN, yN, pxN, pyN)."""
    assert max_tile % 128 == 0, "max_tile must be a multiple of 128 lanes"
    slab = pack_params(params)

    t_row = t.reshape(1, -1).astype(jnp.float32)     # (1, N)
    n = t_row.shape[1]

    tile = _choose_tile(n, max_tile)
    np_ = _round_up(n, tile)
    if np_ != n:                                     # skip pad when already aligned
        t_row = jnp.pad(t_row, ((0, 0), (0, np_ - n)))
    grid = (np_ // tile,)

    # per batch element: ~20 (layer1) + ~220 (layer2) + ~88 (layer3) flops,
    # 20 sin evaluations, 4 B read + 16 B written.
    cost = pl.CostEstimate(flops=330 * np_,
                           transcendentals=20 * np_,
                           bytes_accessed=20 * np_)

    r = pl.pallas_call(
        _ode_mlp_kernel,
        out_shape=jax.ShapeDtypeStruct((N_OUT, np_), jnp.float32),
        grid_spec=pltpu.PrefetchScalarGridSpec(
            num_scalar_prefetch=0,
            grid=grid,
            in_specs=[
                pl.BlockSpec((1, tile), lambda i: (0, i)),                 # t tile
                pl.BlockSpec((SLAB_ROWS, SLAB_COLS), lambda i: (0, 0)),    # params
            ],
            out_specs=pl.BlockSpec((N_OUT, tile), lambda i: (0, i)),
        ),
        compiler_params=pltpu.CompilerParams(
            dimension_semantics=("parallel",)),      # batch axis shards across TCs
        cost_estimate=cost,
    )(t_row, slab)

    return r[:, :n] if np_ != n else r


def ode_net_hh_mm_forward(t, params, *, max_tile=DEFAULT_MAX_TILE):
    """Full forward pass; returns (xN, yN, pxN, pyN), each of shape (N, 1)."""
    n = t.reshape(-1).shape[0]
    r = ode_net_hh_mm_forward_lane_dense(t, params, max_tile=max_tile)
    # per-row contiguous slices (no intermediate full-copy of the padded block)
    xN = r[0, :n].reshape(-1, 1)
    yN = r[1, :n].reshape(-1, 1)
    pxN = r[2, :n].reshape(-1, 1)
    pyN = r[3, :n].reshape(-1, 1)
    return xN, yN, pxN, pyN


def init_params(key, d_hid=D_HID):
    """Deterministic init mimicking torch.nn.Linear's U(-1/sqrt(fan_in), ...).

    Weights are stored in torch's (out, in) convention; biases are 1-D, exactly
    like torch.nn.Linear.
    """
    k1, k2, k3, k4, k5, k6 = jax.random.split(key, 6)

    def uni(k, shape, fan_in):
        bound = 1.0 / jnp.sqrt(jnp.float32(fan_in))
        return jax.random.uniform(k, shape, jnp.float32, -bound, bound)

    w1 = uni(k1, (d_hid, 1), 1)
    b1 = uni(k2, (d_hid,), 1)
    w2 = uni(k3, (d_hid, d_hid), d_hid)
    b2 = uni(k4, (d_hid,), d_hid)
    w3 = uni(k5, (4, d_hid), d_hid)
    b3 = uni(k6, (4,), d_hid)
    return (w1, b1, w2, b2, w3, b3)


def _reference_forward(t, params):
    """Plain-JAX reference in the original torch row layout."""
    w1, b1, w2, b2, w3, b3 = params
    h = jnp.sin(t @ w1.T + b1)            # (N, D)
    h = jnp.sin(h @ w2.T + b2)            # (N, D)
    r = h @ w3.T + b3                     # (N, 4)
    return (r[:, 0:1], r[:, 1:2], r[:, 2:3], r[:, 3:4])


if __name__ == "__main__":
    key = jax.random.PRNGKey(0)
    kp, kt = jax.random.split(key)

    params = init_params(kp)

    # Case 1: N not a tile multiple (exercises padding path); grid = 2 steps.
    N = 2000
    t = jax.random.uniform(kt, (N, 1), jnp.float32, 0.0, 6.0)
    outs = jax.block_until_ready(ode_net_hh_mm_forward(t, params))
    refs = _reference_forward(t, params)
    for o, r in zip(outs, refs):
        assert o.shape == (N, 1)
        assert jnp.allclose(o, r, atol=1e-5, rtol=1e-5)

    # Case 2: N an exact tile multiple (exercises the no-pad fast path).
    N2 = 256
    t2 = jax.random.uniform(kt, (N2, 1), jnp.float32, 0.0, 6.0)
    outs2 = jax.block_until_ready(ode_net_hh_mm_forward(t2, params))
    refs2 = _reference_forward(t2, params)
    for o, r in zip(outs2, refs2):
        assert o.shape == (N2, 1)
        assert jnp.allclose(o, r, atol=1e-5, rtol=1e-5)

    print("KERNEL_OK")
</pallas_src>

<mosaic_0001>
module attributes {stable_mosaic.version = 11 : i64} {
  func.func @_ode_mlp_kernel(%arg0: i32, %arg1: memref<1x1024xf32, #tpu.memory_space<vmem>>, %arg2: memref<20x19xf32, #tpu.memory_space<vmem>>, %arg3: memref<4x1024xf32, #tpu.memory_space<vmem>>) attributes {dimension_semantics = [#tpu.dimension_semantics<parallel>], iteration_bounds = array<i64: 2>, scalar_prefetch = 0 : i64, scratch_operands = 0 : i64, tpu.core_type = #tpu.core_type<tc>, window_params = [{transform_indices = @transform_0, window_bounds = array<i64: 1, 1024>}, {pipeline_mode = #tpu.pipeline_mode<synchronous>, transform_indices = @transform_1, window_bounds = array<i64: 20, 19>}, {transform_indices = @transform_2, window_bounds = array<i64: 4, 1024>}]} {
    %c0 = arith.constant 0 : index
    %c0_0 = arith.constant 0 : index
    %0 = vector.load %arg1[%c0, %c0_0] : memref<1x1024xf32, #tpu.memory_space<vmem>>, vector<1x1024xf32>
    %c0_1 = arith.constant 0 : index
    %c0_2 = arith.constant 0 : index
    %1 = vector.load %arg2[%c0_1, %c0_2] : memref<20x19xf32, #tpu.memory_space<vmem>>, vector<20x19xf32>
    %2 = vector.extract_strided_slice %1 {offsets = [0, 0], sizes = [16, 16], strides = [1, 1]} : vector<20x19xf32> to vector<16x16xf32>
    %3 = vector.extract_strided_slice %1 {offsets = [0, 16], sizes = [16, 1], strides = [1, 1]} : vector<20x19xf32> to vector<16x1xf32>
    %4 = vector.extract_strided_slice %1 {offsets = [0, 17], sizes = [16, 1], strides = [1, 1]} : vector<20x19xf32> to vector<16x1xf32>
    %5 = vector.extract_strided_slice %1 {offsets = [0, 18], sizes = [16, 1], strides = [1, 1]} : vector<20x19xf32> to vector<16x1xf32>
    %6 = vector.extract_strided_slice %1 {offsets = [16, 0], sizes = [4, 16], strides = [1, 1]} : vector<20x19xf32> to vector<4x16xf32>
    %7 = vector.extract_strided_slice %1 {offsets = [16, 16], sizes = [4, 1], strides = [1, 1]} : vector<20x19xf32> to vector<4x1xf32>
    %8 = vector.broadcast %3 : vector<16x1xf32> to vector<16x1024xf32>
    %9 = vector.broadcast %0 : vector<1x1024xf32> to vector<16x1024xf32>
    %10 = arith.mulf %8, %9 : vector<16x1024xf32>
    %11 = vector.broadcast %4 : vector<16x1xf32> to vector<16x1024xf32>
    %12 = arith.addf %10, %11 : vector<16x1024xf32>
    %13 = math.sin %12 : vector<16x1024xf32>
    %cst = arith.constant dense<0.000000e+00> : vector<16x1024xf32>
    %14 = tpu.matmul %2, %13, %cst {dimension_numbers = #tpu.dot_dimension_numbers<[1], [0], [0], [1], [0, 0, 1, 1], [], []>} : vector<16x16xf32>, vector<16x1024xf32>, vector<16x1024xf32> -> vector<16x1024xf32>
    %15 = vector.broadcast %5 : vector<16x1xf32> to vector<16x1024xf32>
    %16 = arith.addf %14, %15 : vector<16x1024xf32>
    %17 = math.sin %16 : vector<16x1024xf32>
    %cst_3 = arith.constant dense<0.000000e+00> : vector<4x1024xf32>
    %18 = tpu.matmul %6, %17, %cst_3 {dimension_numbers = #tpu.dot_dimension_numbers<[1], [0], [0], [1], [0, 0, 1, 1], [], []>} : vector<4x16xf32>, vector<16x1024xf32>, vector<4x1024xf32> -> vector<4x1024xf32>
    %19 = vector.broadcast %7 : vector<4x1xf32> to vector<4x1024xf32>
    %20 = arith.addf %18, %19 : vector<4x1024xf32>
    %c0_4 = arith.constant 0 : index
    %c0_5 = arith.constant 0 : index
    %21 = vector.load %arg3[%c0_4, %c0_5] : memref<4x1024xf32, #tpu.memory_space<vmem>>, vector<4x1024xf32>
    tpu.vector_store %arg3[%c0_4, %c0_5], %20 {strides = array<i32>} : memref<4x1024xf32, #tpu.memory_space<vmem>>, vector<4x1024xf32>,
    return
  }
  func.func @transform_0(%arg0: i32) -> (i32, i32) {
    %c0_i32 = arith.constant 0 : i32
    %c0_i32_0 = arith.constant 0 : i32
    return %c0_i32, %arg0 : i32, i32
  }
  func.func @transform_1(%arg0: i32) -> (i32, i32) {
    %c0_i32 = arith.constant 0 : i32
    %c0_i32_0 = arith.constant 0 : i32
    %c0_i32_1 = arith.constant 0 : i32
    return %c0_i32, %c0_i32_0 : i32, i32
  }
  func.func @transform_2(%arg0: i32) -> (i32, i32) {
    %c0_i32 = arith.constant 0 : i32
    %c0_i32_0 = arith.constant 0 : i32
    return %c0_i32, %arg0 : i32, i32
  }
}

</mosaic_0001>

<llo_original>
// kernel: tpu_custom_call.1
$region0: #{tpu_custom_call.1}
  #allocation0 [shape = 'u32[]', space=smem, size = 0x4, offset = 0x4, fixed_abs, tag = 'smem constant byte address 0x4 - core index']
  #allocation1 [shape = 'u32[144,128]{1,0:T(1,128)}', space=vmem, size = 0x12000, scoped, tag = 'internal scratch']
  %s0 = inlined_call_operand.hbm [shape: f32[1,2048], index: 0, kind: input, shape index: {}]
  %s1 = inlined_call_operand.hbm [shape: f32[20,19], index: 1, kind: input, shape index: {}]
  %s2 = inlined_call_operand.hbm [shape: f32[4,2048], index: 2, kind: output, shape index: {}]
  %s3 = sld [smem:[#allocation0]]
  $region49: #{tpu_custom_call.1} parent=0
    _
  %s5 = ssub.s32 1, %s3
  %s6 = scalar_select 0, %s5, %s3
  $region1: #{tpu_custom_call.1} parent=0
    #allocation2 [shape = 'u8[8192]{0}', space=vmem, size = 0x2000, scoped, tag = 'input window, operand 0']
    #allocation3 [shape = 's32[2]{0}', space=sflag, size = 0x8, scoped, tag = 'scoped memory for tpu_custom_call.1']
    #allocation4 [shape = 's32[2]{0}', space=sflag, size = 0x8, scoped, tag = 'scoped memory for tpu_custom_call.1']
    #allocation5 [shape = 'u8[12288]{0}', space=vmem, size = 0x3000, scoped, tag = 'input window, operand 1, single buffered']
    #allocation6 [shape = 's32[1]{0}', space=sflag, size = 0x4, scoped, tag = 'scoped memory for tpu_custom_call.1']
    #allocation7 [shape = 'u8[32768]{0}', space=vmem, size = 0x8000, scoped, tag = 'output window, operand 0']
    %7 = vsyncpa [#allocation3], 0
    %s8 = scalar_lea.sflag [#allocation3], 1
    %9 = vsyncpa %s8, 0
    %10 = vsyncpa [#allocation6], 0
    %11 = vsyncpa [#allocation4], 0
    %s12 = scalar_lea.sflag [#allocation4], 1
    %13 = vsyncpa %s12, 0
    loop: start=0, step=1, limit=4
    $region2: #{tpu_custom_call.1} parent=1 // loop_pre_header
      _
    $region3: #{tpu_custom_call.1} parent=1 // loop_header
      %s15 = sphi 0, %s19
      %p16 = scmp.ge.s32.totalorder %s15, 4
      %s25 = sphi 0, %s27
      %s28 = sphi 0, %s25
      %s29 = sphi 0, %s28
      %s45 = sphi 0, %s29
      %s49 = sphi 0, %s49
      %s51 = sphi 0, %s49
      %s52 = sphi 0, %s51
      %s66 = sphi 0, %s52
      %s72 = sphi 0, %s74
      %s75 = sphi 0, %s72
      %s76 = sphi 0, %s75
      %s92 = sphi 0, %s76
    $region4: #{tpu_custom_call.1} parent=1 // loop_header_branch
      %18 = sbr.rel (%p16) target = $region8
    $region5: #{tpu_custom_call.1} parent=1 // loop_body
      %s20 = ssub.s32 %s15, 1
      %s21 = ssub.s32 %s15, 2
      %s22 = sadd.s32 %s15, 1
      %s23 = ssub.s32 %s15, %s22
      %p24 = scmp.eq.s32.totalorder %s23, 0
      %s26 = sadd.s32 %s25, 1
      %s27 = scalar_select %p24, %s25, %s26
      %p30 = pneg %p24
      %p31 = scmp.eq.s32.totalorder %s15, 1
      %p32 = por %p30, %p31
      %p33 = scmp.ne.s32.totalorder %s25, %s28
      %p34 = scmp.eq.s32.totalorder %s15, 0
      %p35 = por %p33, %p34
      %p36 = scmp.ne.s32.totalorder %s25, %s28
      %p37 = scmp.eq.s32.totalorder %s20, 1
      %p38 = por %p36, %p37
      %p39 = scmp.ne.s32.totalorder %s28, %s29
      %p40 = scmp.eq.s32.totalorder %s20, 0
      %p41 = por %p39, %p40
      %p42 = scmp.ne.s32.totalorder %s28, %s29
      %p43 = scmp.eq.s32.totalorder %s21, 1
      %p44 = por %p42, %p43
      %p46 = scmp.ne.s32.totalorder %s29, %s45
      %p47 = scmp.eq.s32.totalorder %s21, 0
      %p48 = por %p46, %p47
      %s50 = sadd.s32 %s49, 1
      %p53 = scmp.eq.s32.totalorder %s15, 1
      %p54 = scmp.ne.s32.totalorder %s49, %s51
      %p55 = scmp.eq.s32.totalorder %s15, 0
      %p56 = por %p54, %p55
      %p57 = scmp.ne.s32.totalorder %s49, %s51
      %p58 = scmp.eq.s32.totalorder %s20, 1
      %p59 = por %p57, %p58
      %p60 = scmp.ne.s32.totalorder %s51, %s52
      %p61 = scmp.eq.s32.totalorder %s20, 0
      %p62 = por %p60, %p61
      %p63 = scmp.ne.s32.totalorder %s51, %s52
      %p64 = scmp.eq.s32.totalorder %s21, 1
      %p65 = por %p63, %p64
      %p67 = scmp.ne.s32.totalorder %s52, %s66
      %p68 = scmp.eq.s32.totalorder %s21, 0
      %p69 = por %p67, %p68
      %s70 = ssub.s32 %s15, %s22
      %p71 = scmp.eq.s32.totalorder %s70, 0
      %s73 = sadd.s32 %s72, 1
      %s74 = scalar_select %p71, %s72, %s73
      %p77 = pneg %p71
      %p78 = scmp.eq.s32.totalorder %s15, 1
      %p79 = por %p77, %p78
      %p80 = scmp.ne.s32.totalorder %s72, %s75
      %p81 = scmp.eq.s32.totalorder %s15, 0
      %p82 = por %p80, %p81
      %p83 = scmp.ne.s32.totalorder %s72, %s75
      %p84 = scmp.eq.s32.totalorder %s20, 1
      %p85 = por %p83, %p84
      %p86 = scmp.ne.s32.totalorder %s75, %s76
      %p87 = scmp.eq.s32.totalorder %s20, 0
      %p88 = por %p86, %p87
      %p89 = scmp.ne.s32.totalorder %s75, %s76
      %p90 = scmp.eq.s32.totalorder %s21, 1
      %p91 = por %p89, %p90
      %p93 = scmp.ne.s32.totalorder %s76, %s92
      %p94 = scmp.eq.s32.totalorder %s21, 0
      %p95 = por %p93, %p94
      %p96 = scmp.le.s32.totalorder 1, %s15
      %p97 = scmp.lt.s32.totalorder %s15, 3
      %p98 = pnand %p96, %p97
      %p99 = pneg %p98
      // Predicated region
      $region9: #{tpu_custom_call.1} parent=5 // pred_check
        _
      $region10: #{tpu_custom_call.1} parent=5 // pred_check_branch
        %101 = sbr.rel (%p98) target = $region12
      $region11: #{tpu_custom_call.1} parent=5 // pred_region
        %s102 = ssub.s32 %s15, 1
        // Predicated region
        $region13: #{tpu_custom_call.1} parent=11 // pred_check
          %p103 = pneg %p62
        $region14: #{tpu_custom_call.1} parent=11 // pred_check_branch
          %105 = sbr.rel (%p103) target = $region16
        $region15: #{tpu_custom_call.1} parent=11 // pred_region
          %s107 = ssub.s32 384, 384
          %108 = vsyncadd [#allocation6], %s107
          %s109 = sshll.u32 [#allocation5], 4
          %s110 = int_to_ptr.vmem [resolvable:$true] %s109
          %115 = dma.hbm_to_vmem [thread:$0]  %s1, 384, %s110, [#allocation6], 128, 128, 8
        $region16: #{tpu_custom_call.1} parent=11 // pred_fallthru
          _
      $region12: #{tpu_custom_call.1} parent=5 // pred_fallthru
        _
      %p116 = scmp.lt.s32.totalorder %s15, 2
      // Predicated region
      $region17: #{tpu_custom_call.1} parent=5 // pred_check
        %p117 = pneg %p116
      $region18: #{tpu_custom_call.1} parent=5 // pred_check_branch
        %119 = sbr.rel (%p117) target = $region20
      $region19: #{tpu_custom_call.1} parent=5 // pred_region
        // Predicated region
        $region21: #{tpu_custom_call.1} parent=19 // pred_check
          %p120 = pneg %p35
        $region22: #{tpu_custom_call.1} parent=19 // pred_check_branch
          %122 = sbr.rel (%p120) target = $region24
        $region23: #{tpu_custom_call.1} parent=19 // pred_region
          %s123 = sand.u32 %s25, 1
          %s124 = scalar_lea.sflag [#allocation3], %s123
          %s125 = sand.u32 %s25, 1
          %s126 = smul.addr %s125, 8
          %s127 = scalar_lea.vmem [#allocation2], %s126
          %s128 = smul.u32 8, %s15
          %s130 = ssub.s32 128, 128
          %131 = vsyncadd %s124, %s130
          %s132 = smul.addr %s128, 16
          %s133 = scalar_lea.hbm %s0, %s132
          %s135 = sshll.u32 %s127, 4
          %s136 = int_to_ptr.vmem [resolvable:$true] %s135
          %138 = dma.hbm_to_vmem [thread:$0]  %s133, 128, %s136, %s124
        $region24: #{tpu_custom_call.1} parent=19 // pred_fallthru
          _
      $region20: #{tpu_custom_call.1} parent=5 // pred_fallthru
        _
      %p139 = scmp.le.s32.totalorder 1, %s15
      %p140 = scmp.lt.s32.totalorder %s15, 3
      %p141 = pnand %p139, %p140
      %p142 = pneg %p141
      // Predicated region
      $region25: #{tpu_custom_call.1} parent=5 // pred_check
        _
      $region26: #{tpu_custom_call.1} parent=5 // pred_check_branch
        %144 = sbr.rel (%p141) target = $region28
      $region27: #{tpu_custom_call.1} parent=5 // pred_region
        %s145 = ssub.s32 %s15, 1
        %s146 = sand.u32 %s28, 1
        %s147 = scalar_lea.sflag [#allocation3], %s146
        %s148 = sand.u32 %s28, 1
        %s149 = smul.addr %s148, 8
        %s150 = scalar_lea.vmem [#allocation2], %s149
        // Predicated region
        $region29: #{tpu_custom_call.1} parent=27 // pred_check
          %p151 = pneg %p41
        $region30: #{tpu_custom_call.1} parent=27 // pred_check_branch
          %153 = sbr.rel (%p151) target = $region32
        $region31: #{tpu_custom_call.1} parent=27 // pred_region
          %154 = dma.done %s147, 128
        $region32: #{tpu_custom_call.1} parent=27 // pred_fallthru
          _
        // Predicated region
        $region33: #{tpu_custom_call.1} parent=27 // pred_check
          %p155 = pneg %p62
        $region34: #{tpu_custom_call.1} parent=27 // pred_check_branch
          %157 = sbr.rel (%p155) target = $region36
        $region35: #{tpu_custom_call.1} parent=27 // pred_region
          %158 = dma.done [#allocation6], 384
        $region36: #{tpu_custom_call.1} parent=27 // pred_fallthru
          _
        %s159 = sand.u32 %s28, 1
        %s160 = scalar_lea.sflag [#allocation3], %s159
        %s161 = sand.u32 %s28, 1
        %s162 = smul.addr %s161, 8
        %s163 = scalar_lea.vmem [#allocation2], %s162
        %p164 = pneg %p41
        %p165 = pneg %p38
        %p166 = pneg %p62
        %p167 = pneg %p59
        %p168 = pneg %p88
        %p169 = pneg %p85
        %s170 = sand.u32 %s75, 1
        %s171 = scalar_lea.sflag [#allocation4], %s170
        %s172 = sand.u32 %s75, 1
        %s173 = smul.addr %s172, 32
        %s174 = scalar_lea.vmem [#allocation7], %s173
        %s175 = smul.u32 8, %s20
        %s176 = smul.u32 8, %s20
        %v177 = vld [vmem:[%s150] sm:$0xff]
        %v178 = vld [vmem:[#allocation5] sm:$0xff]
        %v179 = vld [vmem:[#allocation5 + $0x8] sm:$0xff]
        %v180 = vld [vmem:[#allocation5 + $0x10] sm:$0xf]
        %182 = vset.pattern.permute.xlu0 16
        %183 = vperm.xlu0 %182, %v178
        %v184 = vpop.permute.xlu0 %183
        %187 = vset.pattern.permute.xlu0 16
        %188 = vperm.xlu0 %187, %v179
        %v189 = vpop.permute.xlu0 %188
        %v192 = vlaneseq
        %v193 = vshrl.u32 %v192, 7
        %v194 = vsub.s32 0, %v193
        %v195 = vrot.slane %v177, %v194
        %v196 = vlaneseq
        %v197 = vshrl.u32 %v196, 7
        %v198 = vsub.s32 1, %v197
        %v199 = vrot.slane %v177, %v198
        %v200 = vlaneseq
        %v201 = vshrl.u32 %v200, 7
        %v202 = vsub.s32 2, %v201
        %v203 = vrot.slane %v177, %v202
        %v204 = vlaneseq
        %v205 = vshrl.u32 %v204, 7
        %v206 = vsub.s32 3, %v205
        %v207 = vrot.slane %v177, %v206
        %v208 = vlaneseq
        %v209 = vshrl.u32 %v208, 7
        %v210 = vsub.s32 4, %v209
        %v211 = vrot.slane %v177, %v210
        %v212 = vlaneseq
        %v213 = vshrl.u32 %v212, 7
        %v214 = vsub.s32 5, %v213
        %v215 = vrot.slane %v177, %v214
        %v216 = vlaneseq
        %v217 = vshrl.u32 %v216, 7
        %v218 = vsub.s32 6, %v217
        %v219 = vrot.slane %v177, %v218
        %v220 = vlaneseq
        %v221 = vshrl.u32 %v220, 7
        %v222 = vsub.s32 7, %v221
        %v223 = vrot.slane %v177, %v222
        %v232 = vmul.f32 %v184, %v195
        %v233 = vmul.f32 %v184, %v199
        %v234 = vmul.f32 %v184, %v203
        %v235 = vmul.f32 %v184, %v207
        %v236 = vmul.f32 %v184, %v211
        %v237 = vmul.f32 %v184, %v215
        %v238 = vmul.f32 %v184, %v219
        %v239 = vmul.f32 %v184, %v223
        %v240 = vmul.f32 %v189, %v195
        %v241 = vmul.f32 %v189, %v199
        %v242 = vmul.f32 %v189, %v203
        %v243 = vmul.f32 %v189, %v207
        %v244 = vmul.f32 %v189, %v211
        %v245 = vmul.f32 %v189, %v215
        %v246 = vmul.f32 %v189, %v219
        %v247 = vmul.f32 %v189, %v223
        %248 = vset.pattern.permute.xlu0 17
        %249 = vperm.xlu0 %248, %v178
        %v250 = vpop.permute.xlu0 %249
        %252 = vset.pattern.permute.xlu0 17
        %253 = vperm.xlu0 %252, %v179
        %v254 = vpop.permute.xlu0 %253
        %v256 = vadd.f32 %v232, %v250
        %v257 = vadd.f32 %v233, %v250
        %v258 = vadd.f32 %v234, %v250
        %v259 = vadd.f32 %v235, %v250
        %v260 = vadd.f32 %v236, %v250
        %v261 = vadd.f32 %v237, %v250
        %v262 = vadd.f32 %v238, %v250
        %v263 = vadd.f32 %v239, %v250
        %v264 = vadd.f32 %v240, %v254
        %v265 = vadd.f32 %v241, %v254
        %v266 = vadd.f32 %v242, %v254
        %v267 = vadd.f32 %v243, %v254
        %v268 = vadd.f32 %v244, %v254
        %v269 = vadd.f32 %v245, %v254
        %v270 = vadd.f32 %v246, %v254
        %v271 = vadd.f32 %v247, %v254
        %v272 = vand.u32 2147483647, %v256
        %vm273 = vcmp.le.f32.partialorder %v272, 0.7853982
        %vm274 = vcmp.lt.s32.totalorder %v256, 0
        %v275 = vand.u32 %v256, 2139095040
        %v276 = vshrl.u32 %v275, 23
        %v277 = vsub.s32 %v276, 127
        %v278 = vand.u32 2147483647, %v256
        %v279 = vand.u32 %v278, 8388607
        %v280 = vor.u32 %v279, 8388608
        %v281 = vsub.s32 0, %v280
        %v282 = vadd.s32 %v277, 1
        %vm283 = vcmp.gt.s32.totalorder %v282, 0
        %v284 = vsel %vm283, %v282, 0
        %v285 = vshrl.u32 %v284, 5
        %v286 = vand.u32 %v284, 31
        %v287 = vsub.s32 32, %v286
        %v288 = vshrl.u32 683565275, %v287
        %v289 = vshll.u32 683565275, %v286
        %v290 = vshrl.u32 2475754826, %v287
        %v291 = vor.u32 %v289, %v290
        %v292 = vshll.u32 2475754826, %v286
        %v293 = vshrl.u32 2131351028, %v287
        %v294 = vor.u32 %v292, %v293
        %v295 = vshll.u32 2131351028, %v286
        %v296 = vshrl.u32 2102212464, %v287
        %v297 = vor.u32 %v295, %v296
        %v298 = vshll.u32 2102212464, %v286
        %v299 = vshrl.u32 920167782, %v287
        %v300 = vor.u32 %v298, %v299
        %v301 = vshll.u32 920167782, %v286
        %v302 = vshrl.u32 1326507024, %v287
        %v303 = vor.u32 %v301, %v302
        %vm304 = vcmp.lt.s32.totalorder %v285, 1
        %vm305 = vcmp.lt.s32.totalorder %v285, 2
        %vm306 = vcmp.lt.s32.totalorder %v285, 3
        %vm307 = vcmp.lt.s32.totalorder %v285, 4
        %v308 = vsel %vm304, %v288, %v291
        %v309 = vsel %vm307, %v297, 2102212464
        %v310 = vsel %vm306, %v294, %v309
        %v311 = vsel %vm305, %v308, %v310
        %v312 = vsel %vm304, %v291, %v294
        %v313 = vsel %vm307, %v300, 920167782
        %v314 = vsel %vm306, %v297, %v313
        %v315 = vsel %vm305, %v312, %v314
        %v316 = vsel %vm304, %v294, %v297
        %v317 = vsel %vm307, %v303, 1326507024
        %v318 = vsel %vm306, %v300, %v317
        %v319 = vsel %vm305, %v316, %v318
        %v320 = vshll.u32 %v280, 8
        %v321 = vmul.u32.u64.compose %v320, %v319
        %v322 = vextract.low.u32 %v321
        %v323 = vextract.high.u32 %v321
        %v324 = vmul.u32.u64.compose %v320, %v315
        %v325 = vextract.low.u32 %v324
        %v326 = vextract.high.u32 %v324
        %v327 = vmul.u32 %v320, %v311
        %v328 = vadd.s32 %v323, %v325
        %vm329 = vc.u32 %v323, %v325
        %v330 = vadd.s32 %v326, 1
        %v331 = vsel %vm329, %v330, %v326
        %v332 = vadd.s32 %v327, %v331
        %v333 = vadd.s32 %v332, 536870912
        %v334 = vshrl.u32 %v333, 30
        %v335 = vshll.u32 %v334, 30
        %v336 = vsub.s32 %v332, %v335
        %vm337 = vcmp.lt.s32.totalorder %v336, 0
        %v338 = vsub.s32 0, %v336
        %v339 = vsel %vm337, %v338, %v336
        %v340 = vclz %v339
        %v341 = vsub.s32 %v340, 2
        %vm342 = vcmp.gt.s32.totalorder 0, %v341
        %v343 = vsel %vm342, 0, %v341
        %v344 = vsub.s32 32, %v343
        %v345 = vshll.u32 %v336, %v343
        %v346 = vshrl.u32 %v328, %v344
        %v347 = vor.u32 %v345, %v346
        %v348 = vsub.s32 4294967266, %v343
        %v349 = vadd.s32 %v348, 127
        %v350 = vshll.u32 %v349, 23
        %v351 = vor.u32 4788187, %v350
        %v352 = vand.u32 2147483647, %v351
        %v354 = vcvt.s32.f32 %v347
        %v355 = vmul.f32 %v354, %v352
        %v356 = vxor.u32 %v355, 2147483648
        %v357 = vsel %vm274, %v356, %v355
        %v358 = vsub.s32 4, %v334
        %v359 = vsel %vm274, %v358, %v334
        %v360 = vsel %vm273, %v256, %v357
        %v361 = vsel %vm273, 0, %v359
        %v362 = vcosq.f32.pop %v360
        %v363 = vsinq.f32.pop %v360
        %vm364 = vweird.f32 %v256
        %v365 = vadd.s32 %v361, 3
        %v366 = vand.u32 %v365, 3
        %vm367 = vcmp.lt.s32.totalorder %v366, 2
        %vm368 = vcmp.eq.s32.totalorder %v366, 0
        %v369 = vxor.u32 %v363, 2147483648
        %v370 = vsel %vm368, %v362, %v369
        %vm371 = vcmp.eq.s32.totalorder %v366, 2
        %v372 = vxor.u32 %v362, 2147483648
        %v373 = vsel %vm371, %v372, %v363
        %v374 = vsel %vm367, %v370, %v373
        %v375 = vsel %vm364, nan, %v374
        %v376 = vand.u32 2147483647, %v257
        %vm377 = vcmp.le.f32.partialorder %v376, 0.7853982
        %vm378 = vcmp.lt.s32.totalorder %v257, 0
        %v379 = vand.u32 %v257, 2139095040
        %v380 = vshrl.u32 %v379, 23
        %v381 = vsub.s32 %v380, 127
        %v382 = vand.u32 2147483647, %v257
        %v383 = vand.u32 %v382, 8388607
        %v384 = vor.u32 %v383, 8388608
        %v385 = vsub.s32 0, %v384
        %v386 = vadd.s32 %v381, 1
        %vm387 = vcmp.gt.s32.totalorder %v386, 0
        %v388 = vsel %vm387, %v386, 0
        %v389 = vshrl.u32 %v388, 5
        %v390 = vand.u32 %v388, 31
        %v391 = vsub.s32 32, %v390
        %v392 = vshrl.u32 683565275, %v391
        %v393 = vshll.u32 683565275, %v390
        %v394 = vshrl.u32 2475754826, %v391
        %v395 = vor.u32 %v393, %v394
        %v396 = vshll.u32 2475754826, %v390
        %v397 = vshrl.u32 2131351028, %v391
        %v398 = vor.u32 %v396, %v397
        %v399 = vshll.u32 2131351028, %v390
        %v400 = vshrl.u32 2102212464, %v391
        %v401 = vor.u32 %v399, %v400
        %v402 = vshll.u32 2102212464, %v390
        %v403 = vshrl.u32 920167782, %v391
        %v404 = vor.u32 %v402, %v403
        %v405 = vshll.u32 920167782, %v390
        %v406 = vshrl.u32 1326507024, %v391
        %v407 = vor.u32 %v405, %v406
        %vm408 = vcmp.lt.s32.totalorder %v389, 1
        %vm409 = vcmp.lt.s32.totalorder %v389, 2
        %vm410 = vcmp.lt.s32.totalorder %v389, 3
        %vm411 = vcmp.lt.s32.totalorder %v389, 4
        %v412 = vsel %vm408, %v392, %v395
        %v413 = vsel %vm411, %v401, 2102212464
        %v414 = vsel %vm410, %v398, %v413
        %v415 = vsel %vm409, %v412, %v414
        %v416 = vsel %vm408, %v395, %v398
        %v417 = vsel %vm411, %v404, 920167782
        %v418 = vsel %vm410, %v401, %v417
        %v419 = vsel %vm409, %v416, %v418
        %v420 = vsel %vm408, %v398, %v401
        %v421 = vsel %vm411, %v407, 1326507024
        %v422 = vsel %vm410, %v404, %v421
        %v423 = vsel %vm409, %v420, %v422
        %v424 = vshll.u32 %v384, 8
        %v425 = vmul.u32.u64.compose %v424, %v423
        %v426 = vextract.low.u32 %v425
        %v427 = vextract.high.u32 %v425
        %v428 = vmul.u32.u64.compose %v424, %v419
        %v429 = vextract.low.u32 %v428
        %v430 = vextract.high.u32 %v428
        %v431 = vmul.u32 %v424, %v415
        %v432 = vadd.s32 %v427, %v429
        %vm433 = vc.u32 %v427, %v429
        %v434 = vadd.s32 %v430, 1
        %v435 = vsel %vm433, %v434, %v430
        %v436 = vadd.s32 %v431, %v435
        %v437 = vadd.s32 %v436, 536870912
        %v438 = vshrl.u32 %v437, 30
        %v439 = vshll.u32 %v438, 30
        %v440 = vsub.s32 %v436, %v439
        %vm441 = vcmp.lt.s32.totalorder %v440, 0
        %v442 = vsub.s32 0, %v440
        %v443 = vsel %vm441, %v442, %v440
        %v444 = vclz %v443
        %v445 = vsub.s32 %v444, 2
        %vm446 = vcmp.gt.s32.totalorder 0, %v445
        %v447 = vsel %vm446, 0, %v445
        %v448 = vsub.s32 32, %v447
        %v449 = vshll.u32 %v440, %v447
        %v450 = vshrl.u32 %v432, %v448
        %v451 = vor.u32 %v449, %v450
        %v452 = vsub.s32 4294967266, %v447
        %v453 = vadd.s32 %v452, 127
        %v454 = vshll.u32 %v453, 23
        %v455 = vor.u32 4788187, %v454
        %v456 = vand.u32 2147483647, %v455
        %v458 = vcvt.s32.f32 %v451
        %v459 = vmul.f32 %v458, %v456
        %v460 = vxor.u32 %v459, 2147483648
        %v461 = vsel %vm378, %v460, %v459
        %v462 = vsub.s32 4, %v438
        %v463 = vsel %vm378, %v462, %v438
        %v464 = vsel %vm377, %v257, %v461
        %v465 = vsel %vm377, 0, %v463
        %v466 = vcosq.f32.pop %v464
        %v467 = vsinq.f32.pop %v464
        %vm468 = vweird.f32 %v257
        %v469 = vadd.s32 %v465, 3
        %v470 = vand.u32 %v469, 3
        %vm471 = vcmp.lt.s32.totalorder %v470, 2
        %vm472 = vcmp.eq.s32.totalorder %v470, 0
        %v473 = vxor.u32 %v467, 2147483648
        %v474 = vsel %vm472, %v466, %v473
        %vm475 = vcmp.eq.s32.totalorder %v470, 2
        %v476 = vxor.u32 %v466, 2147483648
        %v477 = vsel %vm475, %v476, %v467
        %v478 = vsel %vm471, %v474, %v477
        %v479 = vsel %vm468, nan, %v478
        %v480 = vand.u32 2147483647, %v258
        %vm481 = vcmp.le.f32.partialorder %v480, 0.7853982
        %vm482 = vcmp.lt.s32.totalorder %v258, 0
        %v483 = vand.u32 %v258, 2139095040
        %v484 = vshrl.u32 %v483, 23
        %v485 = vsub.s32 %v484, 127
        %v486 = vand.u32 2147483647, %v258
        %v487 = vand.u32 %v486, 8388607
        %v488 = vor.u32 %v487, 8388608
        %v489 = vsub.s32 0, %v488
        %v490 = vadd.s32 %v485, 1
        %vm491 = vcmp.gt.s32.totalorder %v490, 0
        %v492 = vsel %vm491, %v490, 0
        %v493 = vshrl.u32 %v492, 5
        %v494 = vand.u32 %v492, 31
        %v495 = vsub.s32 32, %v494
        %v496 = vshrl.u32 683565275, %v495
        %v497 = vshll.u32 683565275, %v494
        %v498 = vshrl.u32 2475754826, %v495
        %v499 = vor.u32 %v497, %v498
        %v500 = vshll.u32 2475754826, %v494
        %v501 = vshrl.u32 2131351028, %v495
        %v502 = vor.u32 %v500, %v501
        %v503 = vshll.u32 2131351028, %v494
        %v504 = vshrl.u32 2102212464, %v495
        %v505 = vor.u32 %v503, %v504
        %v506 = vshll.u32 2102212464, %v494
        %v507 = vshrl.u32 920167782, %v495
        %v508 = vor.u32 %v506, %v507
        %v509 = vshll.u32 920167782, %v494
        %v510 = vshrl.u32 1326507024, %v495
        %v511 = vor.u32 %v509, %v510
        %vm512 = vcmp.lt.s32.totalorder %v493, 1
        %vm513 = vcmp.lt.s32.totalorder %v493, 2
        %vm514 = vcmp.lt.s32.totalorder %v493, 3
        %vm515 = vcmp.lt.s32.totalorder %v493, 4
        %v516 = vsel %vm512, %v496, %v499
        %v517 = vsel %vm515, %v505, 2102212464
        %v518 = vsel %vm514, %v502, %v517
        %v519 = vsel %vm513, %v516, %v518
        %v520 = vsel %vm512, %v499, %v502
        %v521 = vsel %vm515, %v508, 920167782
        %v522 = vsel %vm514, %v505, %v521
        %v523 = vsel %vm513, %v520, %v522
        %v524 = vsel %vm512, %v502, %v505
        %v525 = vsel %vm515, %v511, 1326507024
        %v526 = vsel %vm514, %v508, %v525
        %v527 = vsel %vm513, %v524, %v526
        %v528 = vshll.u32 %v488, 8
        %v529 = vmul.u32.u64.compose %v528, %v527
        %v530 = vextract.low.u32 %v529
        %v531 = vextract.high.u32 %v529
        %v532 = vmul.u32.u64.compose %v528, %v523
        %v533 = vextract.low.u32 %v532
        %v534 = vextract.high.u32 %v532
        %v535 = vmul.u32 %v528, %v519
        %v536 = vadd.s32 %v531, %v533
        %vm537 = vc.u32 %v531, %v533
        %v538 = vadd.s32 %v534, 1
        %v539 = vsel %vm537, %v538, %v534
        %v540 = vadd.s32 %v535, %v539
        %v541 = vadd.s32 %v540, 536870912
        %v542 = vshrl.u32 %v541, 30
        %v543 = vshll.u32 %v542, 30
        %v544 = vsub.s32 %v540, %v543
        %vm545 = vcmp.lt.s32.totalorder %v544, 0
        %v546 = vsub.s32 0, %v544
        %v547 = vsel %vm545, %v546, %v544
        %v548 = vclz %v547
        %v549 = vsub.s32 %v548, 2
        %vm550 = vcmp.gt.s32.totalorder 0, %v549
        %v551 = vsel %vm550, 0, %v549
        %v552 = vsub.s32 32, %v551
        %v553 = vshll.u32 %v544, %v551
        %v554 = vshrl.u32 %v536, %v552
        %v555 = vor.u32 %v553, %v554
        %v556 = vsub.s32 4294967266, %v551
        %v557 = vadd.s32 %v556, 127
        %v558 = vshll.u32 %v557, 23
        %v559 = vor.u32 4788187, %v558
        %v560 = vand.u32 2147483647, %v559
        %v562 = vcvt.s32.f32 %v555
        %v563 = vmul.f32 %v562, %v560
        %v564 = vxor.u32 %v563, 2147483648
        %v565 = vsel %vm482, %v564, %v563
        %v566 = vsub.s32 4, %v542
        %v567 = vsel %vm482, %v566, %v542
        %v568 = vsel %vm481, %v258, %v565
        %v569 = vsel %vm481, 0, %v567
        %v570 = vcosq.f32.pop %v568
        %v571 = vsinq.f32.pop %v568
        %vm572 = vweird.f32 %v258
        %v573 = vadd.s32 %v569, 3
        %v574 = vand.u32 %v573, 3
        %vm575 = vcmp.lt.s32.totalorder %v574, 2
        %vm576 = vcmp.eq.s32.totalorder %v574, 0
        %v577 = vxor.u32 %v571, 2147483648
        %v578 = vsel %vm576, %v570, %v577
        %vm579 = vcmp.eq.s32.totalorder %v574, 2
        %v580 = vxor.u32 %v570, 2147483648
        %v581 = vsel %vm579, %v580, %v571
        %v582 = vsel %vm575, %v578, %v581
        %v583 = vsel %vm572, nan, %v582
        %v584 = vand.u32 2147483647, %v259
        %vm585 = vcmp.le.f32.partialorder %v584, 0.7853982
        %vm586 = vcmp.lt.s32.totalorder %v259, 0
        %v587 = vand.u32 %v259, 2139095040
        %v588 = vshrl.u32 %v587, 23
        %v589 = vsub.s32 %v588, 127
        %v590 = vand.u32 2147483647, %v259
        %v591 = vand.u32 %v590, 8388607
        %v592 = vor.u32 %v591, 8388608
        %v593 = vsub.s32 0, %v592
        %v594 = vadd.s32 %v589, 1
        %vm595 = vcmp.gt.s32.totalorder %v594, 0
        %v596 = vsel %vm595, %v594, 0
        %v597 = vshrl.u32 %v596, 5
        %v598 = vand.u32 %v596, 31
        %v599 = vsub.s32 32, %v598
        %v600 = vshrl.u32 683565275, %v599
        %v601 = vshll.u32 683565275, %v598
        %v602 = vshrl.u32 2475754826, %v599
        %v603 = vor.u32 %v601, %v602
        %v604 = vshll.u32 2475754826, %v598
        %v605 = vshrl.u32 2131351028, %v599
        %v606 = vor.u32 %v604, %v605
        %v607 = vshll.u32 2131351028, %v598
        %v608 = vshrl.u32 2102212464, %v599
        %v609 = vor.u32 %v607, %v608
        %v610 = vshll.u32 2102212464, %v598
        %v611 = vshrl.u32 920167782, %v599
        %v612 = vor.u32 %v610, %v611
        %v613 = vshll.u32 920167782, %v598
        %v614 = vshrl.u32 1326507024, %v599
        %v615 = vor.u32 %v613, %v614
        %vm616 = vcmp.lt.s32.totalorder %v597, 1
        %vm617 = vcmp.lt.s32.totalorder %v597, 2
        %vm618 = vcmp.lt.s32.totalorder %v597, 3
        %vm619 = vcmp.lt.s32.totalorder %v597, 4
        %v620 = vsel %vm616, %v600, %v603
        %v621 = vsel %vm619, %v609, 2102212464
        %v622 = vsel %vm618, %v606, %v621
        %v623 = vsel %vm617, %v620, %v622
        %v624 = vsel %vm616, %v603, %v606
        %v625 = vsel %vm619, %v612, 920167782
        %v626 = vsel %vm618, %v609, %v625
        %v627 = vsel %vm617, %v624, %v626
        %v628 = vsel %vm616, %v606, %v609
        %v629 = vsel %vm619, %v615, 1326507024
        %v630 = vsel %vm618, %v612, %v629
        %v631 = vsel %vm617, %v628, %v630
        %v632 = vshll.u32 %v592, 8
        %v633 = vmul.u32.u64.compose %v632, %v631
        %v634 = vextract.low.u32 %v633
        %v635 = vextract.high.u32 %v633
        %v636 = vmul.u32.u64.compose %v632, %v627
        %v637 = vextract.low.u32 %v636
        %v638 = vextract.high.u32 %v636
        %v639 = vmul.u32 %v632, %v623
        %v640 = vadd.s32 %v635, %v637
        %vm641 = vc.u32 %v635, %v637
        %v642 = vadd.s32 %v638, 1
        %v643 = vsel %vm641, %v642, %v638
        %v644 = vadd.s32 %v639, %v643
        %v645 = vadd.s32 %v644, 536870912
        %v646 = vshrl.u32 %v645, 30
        %v647 = vshll.u32 %v646, 30
        %v648 = vsub.s32 %v644, %v647
        %vm649 = vcmp.lt.s32.totalorder %v648, 0
        %v650 = vsub.s32 0, %v648
        %v651 = vsel %vm649, %v650, %v648
        %v652 = vclz %v651
        %v653 = vsub.s32 %v652, 2
        %vm654 = vcmp.gt.s32.totalorder 0, %v653
        %v655 = vsel %vm654, 0, %v653
        %v656 = vsub.s32 32, %v655
        %v657 = vshll.u32 %v648, %v655
        %v658 = vshrl.u32 %v640, %v656
        %v659 = vor.u32 %v657, %v658
        %v660 = vsub.s32 4294967266, %v655
        %v661 = vadd.s32 %v660, 127
        %v662 = vshll.u32 %v661, 23
        %v663 = vor.u32 4788187, %v662
        %v664 = vand.u32 2147483647, %v663
        %v666 = vcvt.s32.f32 %v659
        %v667 = vmul.f32 %v666, %v664
        %v668 = vxor.u32 %v667, 2147483648
        %v669 = vsel %vm586, %v668, %v667
        %v670 = vsub.s32 4, %v646
        %v671 = vsel %vm586, %v670, %v646
        %v672 = vsel %vm585, %v259, %v669
        %v673 = vsel %vm585, 0, %v671
        %v674 = vcosq.f32.pop %v672
        %v675 = vsinq.f32.pop %v672
        %vm676 = vweird.f32 %v259
        %v677 = vadd.s32 %v673, 3
        %v678 = vand.u32 %v677, 3
        %vm679 = vcmp.lt.s32.totalorder %v678, 2
        %vm680 = vcmp.eq.s32.totalorder %v678, 0
        %v681 = vxor.u32 %v675, 2147483648
        %v682 = vsel %vm680, %v674, %v681
        %vm683 = vcmp.eq.s32.totalorder %v678, 2
        %v684 = vxor.u32 %v674, 2147483648
        %v685 = vsel %vm683, %v684, %v675
        %v686 = vsel %vm679, %v682, %v685
        %v687 = vsel %vm676, nan, %v686
        %v688 = vand.u32 2147483647, %v260
        %vm689 = vcmp.le.f32.partialorder %v688, 0.7853982
        %vm690 = vcmp.lt.s32.totalorder %v260, 0
        %v691 = vand.u32 %v260, 2139095040
        %v692 = vshrl.u32 %v691, 23
        %v693 = vsub.s32 %v692, 127
        %v694 = vand.u32 2147483647, %v260
        %v695 = vand.u32 %v694, 8388607
        %v696 = vor.u32 %v695, 8388608
        %v697 = vsub.s32 0, %v696
        %v698 = vadd.s32 %v693, 1
        %vm699 = vcmp.gt.s32.totalorder %v698, 0
        %v700 = vsel %vm699, %v698, 0
        %v701 = vshrl.u32 %v700, 5
        %v702 = vand.u32 %v700, 31
        %v703 = vsub.s32 32, %v702
        %v704 = vshrl.u32 683565275, %v703
        %v705 = vshll.u32 683565275, %v702
        %v706 = vshrl.u32 2475754826, %v703
        %v707 = vor.u32 %v705, %v706
        %v708 = vshll.u32 2475754826, %v702
        %v709 = vshrl.u32 2131351028, %v703
        %v710 = vor.u32 %v708, %v709
        %v711 = vshll.u32 2131351028, %v702
        %v712 = vshrl.u32 2102212464, %v703
        %v713 = vor.u32 %v711, %v712
        %v714 = vshll.u32 2102212464, %v702
        %v715 = vshrl.u32 920167782, %v703
        %v716 = vor.u32 %v714, %v715
        %v717 = vshll.u32 920167782, %v702
        %v718 = vshrl.u32 1326507024, %v703
        %v719 = vor.u32 %v717, %v718
        %vm720 = vcmp.lt.s32.totalorder %v701, 1
        %vm721 = vcmp.lt.s32.totalorder %v701, 2
        %vm722 = vcmp.lt.s32.totalorder %v701, 3
        %vm723 = vcmp.lt.s32.totalorder %v701, 4
        %v724 = vsel %vm720, %v704, %v707
        %v725 = vsel %vm723, %v713, 2102212464
        %v726 = vsel %vm722, %v710, %v725
        %v727 = vsel %vm721, %v724, %v726
        %v728 = vsel %vm720, %v707, %v710
        %v729 = vsel %vm723, %v716, 920167782
        %v730 = vsel %vm722, %v713, %v729
        %v731 = vsel %vm721, %v728, %v730
        %v732 = vsel %vm720, %v710, %v713
        %v733 = vsel %vm723, %v719, 1326507024
        %v734 = vsel %vm722, %v716, %v733
        %v735 = vsel %vm721, %v732, %v734
        %v736 = vshll.u32 %v696, 8
        %v737 = vmul.u32.u64.compose %v736, %v735
        %v738 = vextract.low.u32 %v737
        %v739 = vextract.high.u32 %v737
        %v740 = vmul.u32.u64.compose %v736, %v731
        %v741 = vextract.low.u32 %v740
        %v742 = vextract.high.u32 %v740
        %v743 = vmul.u32 %v736, %v727
        %v744 = vadd.s32 %v739, %v741
        %vm745 = vc.u32 %v739, %v741
        %v746 = vadd.s32 %v742, 1
        %v747 = vsel %vm745, %v746, %v742
        %v748 = vadd.s32 %v743, %v747
        %v749 = vadd.s32 %v748, 536870912
        %v750 = vshrl.u32 %v749, 30
        %v751 = vshll.u32 %v750, 30
        %v752 = vsub.s32 %v748, %v751
        %vm753 = vcmp.lt.s32.totalorder %v752, 0
        %v754 = vsub.s32 0, %v752
        %v755 = vsel %vm753, %v754, %v752
        %v756 = vclz %v755
        %v757 = vsub.s32 %v756, 2
        %vm758 = vcmp.gt.s32.totalorder 0, %v757
        %v759 = vsel %vm758, 0, %v757
        %v760 = vsub.s32 32, %v759
        %v761 = vshll.u32 %v752, %v759
        %v762 = vshrl.u32 %v744, %v760
        %v763 = vor.u32 %v761, %v762
        %v764 = vsub.s32 4294967266, %v759
        %v765 = vadd.s32 %v764, 127
        %v766 = vshll.u32 %v765, 23
        %v767 = vor.u32 4788187, %v766
        %v768 = vand.u32 2147483647, %v767
        %v770 = vcvt.s32.f32 %v763
        %v771 = vmul.f32 %v770, %v768
        %v772 = vxor.u32 %v771, 2147483648
        %v773 = vsel %vm690, %v772, %v771
        %v774 = vsub.s32 4, %v750
        %v775 = vsel %vm690, %v774, %v750
        %v776 = vsel %vm689, %v260, %v773
        %v777 = vsel %vm689, 0, %v775
        %v778 = vcosq.f32.pop %v776
        %v779 = vsinq.f32.pop %v776
        %vm780 = vweird.f32 %v260
        %v781 = vadd.s32 %v777, 3
        %v782 = vand.u32 %v781, 3
        %vm783 = vcmp.lt.s32.totalorder %v782, 2
        %vm784 = vcmp.eq.s32.totalorder %v782, 0
        %v785 = vxor.u32 %v779, 2147483648
        %v786 = vsel %vm784, %v778, %v785
        %vm787 = vcmp.eq.s32.totalorder %v782, 2
        %v788 = vxor.u32 %v778, 2147483648
        %v789 = vsel %vm787, %v788, %v779
        %v790 = vsel %vm783, %v786, %v789
        %v791 = vsel %vm780, nan, %v790
        %v792 = vand.u32 2147483647, %v261
        %vm793 = vcmp.le.f32.partialorder %v792, 0.7853982
        %vm794 = vcmp.lt.s32.totalorder %v261, 0
        %v795 = vand.u32 %v261, 2139095040
        %v796 = vshrl.u32 %v795, 23
        %v797 = vsub.s32 %v796, 127
        %v798 = vand.u32 2147483647, %v261
        %v799 = vand.u32 %v798, 8388607
        %v800 = vor.u32 %v799, 8388608
        %v801 = vsub.s32 0, %v800
        %v802 = vadd.s32 %v797, 1
        %vm803 = vcmp.gt.s32.totalorder %v802, 0
        %v804 = vsel %vm803, %v802, 0
        %v805 = vshrl.u32 %v804, 5
        %v806 = vand.u32 %v804, 31
        %v807 = vsub.s32 32, %v806
        %v808 = vshrl.u32 683565275, %v807
        %v809 = vshll.u32 683565275, %v806
        %v810 = vshrl.u32 2475754826, %v807
        %v811 = vor.u32 %v809, %v810
        %v812 = vshll.u32 2475754826, %v806
        %v813 = vshrl.u32 2131351028, %v807
        %v814 = vor.u32 %v812, %v813
        %v815 = vshll.u32 2131351028, %v806
        %v816 = vshrl.u32 2102212464, %v807
        %v817 = vor.u32 %v815, %v816
        %v818 = vshll.u32 2102212464, %v806
        %v819 = vshrl.u32 920167782, %v807
        %v820 = vor.u32 %v818, %v819
        %v821 = vshll.u32 920167782, %v806
        %v822 = vshrl.u32 1326507024, %v807
        %v823 = vor.u32 %v821, %v822
        %vm824 = vcmp.lt.s32.totalorder %v805, 1
        %vm825 = vcmp.lt.s32.totalorder %v805, 2
        %vm826 = vcmp.lt.s32.totalorder %v805, 3
        %vm827 = vcmp.lt.s32.totalorder %v805, 4
        %v828 = vsel %vm824, %v808, %v811
        %v829 = vsel %vm827, %v817, 2102212464
        %v830 = vsel %vm826, %v814, %v829
        %v831 = vsel %vm825, %v828, %v830
        %v832 = vsel %vm824, %v811, %v814
        %v833 = vsel %vm827, %v820, 920167782
        %v834 = vsel %vm826, %v817, %v833
        %v835 = vsel %vm825, %v832, %v834
        %v836 = vsel %vm824, %v814, %v817
        %v837 = vsel %vm827, %v823, 1326507024
        %v838 = vsel %vm826, %v820, %v837
        %v839 = vsel %vm825, %v836, %v838
        %v840 = vshll.u32 %v800, 8
        %v841 = vmul.u32.u64.compose %v840, %v839
        %v842 = vextract.low.u32 %v841
        %v843 = vextract.high.u32 %v841
        %v844 = vmul.u32.u64.compose %v840, %v835
        %v845 = vextract.low.u32 %v844
        %v846 = vextract.high.u32 %v844
        %v847 = vmul.u32 %v840, %v831
        %v848 = vadd.s32 %v843, %v845
        %vm849 = vc.u32 %v843, %v845
        %v850 = vadd.s32 %v846, 1
        %v851 = vsel %vm849, %v850, %v846
        %v852 = vadd.s32 %v847, %v851
        %v853 = vadd.s32 %v852, 536870912
        %v854 = vshrl.u32 %v853, 30
        %v855 = vshll.u32 %v854, 30
        %v856 = vsub.s32 %v852, %v855
        %vm857 = vcmp.lt.s32.totalorder %v856, 0
        %v858 = vsub.s32 0, %v856
        %v859 = vsel %vm857, %v858, %v856
        %v860 = vclz %v859
        %v861 = vsub.s32 %v860, 2
        %vm862 = vcmp.gt.s32.totalorder 0, %v861
        %v863 = vsel %vm862, 0, %v861
        %v864 = vsub.s32 32, %v863
        %v865 = vshll.u32 %v856, %v863
        %v866 = vshrl.u32 %v848, %v864
        %v867 = vor.u32 %v865, %v866
        %v868 = vsub.s32 4294967266, %v863
        %v869 = vadd.s32 %v868, 127
        %v870 = vshll.u32 %v869, 23
        %v871 = vor.u32 4788187, %v870
        %v872 = vand.u32 2147483647, %v871
        %v874 = vcvt.s32.f32 %v867
        %v875 = vmul.f32 %v874, %v872
        %v876 = vxor.u32 %v875, 2147483648
        %v877 = vsel %vm794, %v876, %v875
        %v878 = vsub.s32 4, %v854
        %v879 = vsel %vm794, %v878, %v854
        %v880 = vsel %vm793, %v261, %v877
        %v881 = vsel %vm793, 0, %v879
        %v882 = vcosq.f32.pop %v880
        %v883 = vsinq.f32.pop %v880
        %vm884 = vweird.f32 %v261
        %v885 = vadd.s32 %v881, 3
        %v886 = vand.u32 %v885, 3
        %vm887 = vcmp.lt.s32.totalorder %v886, 2
        %vm888 = vcmp.eq.s32.totalorder %v886, 0
        %v889 = vxor.u32 %v883, 2147483648
        %v890 = vsel %vm888, %v882, %v889
        %vm891 = vcmp.eq.s32.totalorder %v886, 2
        %v892 = vxor.u32 %v882, 2147483648
        %v893 = vsel %vm891, %v892, %v883
        %v894 = vsel %vm887, %v890, %v893
        %v895 = vsel %vm884, nan, %v894
        %v896 = vand.u32 2147483647, %v262
        %vm897 = vcmp.le.f32.partialorder %v896, 0.7853982
        %vm898 = vcmp.lt.s32.totalorder %v262, 0
        %v899 = vand.u32 %v262, 2139095040
        %v900 = vshrl.u32 %v899, 23
        %v901 = vsub.s32 %v900, 127
        %v902 = vand.u32 2147483647, %v262
        %v903 = vand.u32 %v902, 8388607
        %v904 = vor.u32 %v903, 8388608
        %v905 = vsub.s32 0, %v904
        %v906 = vadd.s32 %v901, 1
        %vm907 = vcmp.gt.s32.totalorder %v906, 0
        %v908 = vsel %vm907, %v906, 0
        %v909 = vshrl.u32 %v908, 5
        %v910 = vand.u32 %v908, 31
        %v911 = vsub.s32 32, %v910
        %v912 = vshrl.u32 683565275, %v911
        %v913 = vshll.u32 683565275, %v910
        %v914 = vshrl.u32 2475754826, %v911
        %v915 = vor.u32 %v913, %v914
        %v916 = vshll.u32 2475754826, %v910
        %v917 = vshrl.u32 2131351028, %v911
        %v918 = vor.u32 %v916, %v917
        %v919 = vshll.u32 2131351028, %v910
        %v920 = vshrl.u32 2102212464, %v911
        %v921 = vor.u32 %v919, %v920
        %v922 = vshll.u32 2102212464, %v910
        %v923 = vshrl.u32 920167782, %v911
        %v924 = vor.u32 %v922, %v923
        %v925 = vshll.u32 920167782, %v910
        %v926 = vshrl.u32 1326507024, %v911
        %v927 = vor.u32 %v925, %v926
        %vm928 = vcmp.lt.s32.totalorder %v909, 1
        %vm929 = vcmp.lt.s32.totalorder %v909, 2
        %vm930 = vcmp.lt.s32.totalorder %v909, 3
        %vm931 = vcmp.lt.s32.totalorder %v909, 4
        %v932 = vsel %vm928, %v912, %v915
        %v933 = vsel %vm931, %v921, 2102212464
        %v934 = vsel %vm930, %v918, %v933
        %v935 = vsel %vm929, %v932, %v934
        %v936 = vsel %vm928, %v915, %v918
        %v937 = vsel %vm931, %v924, 920167782
        %v938 = vsel %vm930, %v921, %v937
        %v939 = vsel %vm929, %v936, %v938
        %v940 = vsel %vm928, %v918, %v921
        %v941 = vsel %vm931, %v927, 1326507024
        %v942 = vsel %vm930, %v924, %v941
        %v943 = vsel %vm929, %v940, %v942
        %v944 = vshll.u32 %v904, 8
        %v945 = vmul.u32.u64.compose %v944, %v943
        %v946 = vextract.low.u32 %v945
        %v947 = vextract.high.u32 %v945
        %v948 = vmul.u32.u64.compose %v944, %v939
        %v949 = vextract.low.u32 %v948
        %v950 = vextract.high.u32 %v948
        %v951 = vmul.u32 %v944, %v935
        %v952 = vadd.s32 %v947, %v949
        %vm953 = vc.u32 %v947, %v949
        %v954 = vadd.s32 %v950, 1
        %v955 = vsel %vm953, %v954, %v950
        %v956 = vadd.s32 %v951, %v955
        %v957 = vadd.s32 %v956, 536870912
        %v958 = vshrl.u32 %v957, 30
        %v959 = vshll.u32 %v958, 30
        %v960 = vsub.s32 %v956, %v959
        %vm961 = vcmp.lt.s32.totalorder %v960, 0
        %v962 = vsub.s32 0, %v960
        %v963 = vsel %vm961, %v962, %v960
        %v964 = vclz %v963
        %v965 = vsub.s32 %v964, 2
        %vm966 = vcmp.gt.s32.totalorder 0, %v965
        %v967 = vsel %vm966, 0, %v965
        %v968 = vsub.s32 32, %v967
        %v969 = vshll.u32 %v960, %v967
        %v970 = vshrl.u32 %v952, %v968
        %v971 = vor.u32 %v969, %v970
        %v972 = vsub.s32 4294967266, %v967
        %v973 = vadd.s32 %v972, 127
        %v974 = vshll.u32 %v973, 23
        %v975 = vor.u32 4788187, %v974
        %v976 = vand.u32 2147483647, %v975
        %v978 = vcvt.s32.f32 %v971
        %v979 = vmul.f32 %v978, %v976
        %v980 = vxor.u32 %v979, 2147483648
        %v981 = vsel %vm898, %v980, %v979
        %v982 = vsub.s32 4, %v958
        %v983 = vsel %vm898, %v982, %v958
        %v984 = vsel %vm897, %v262, %v981
        %v985 = vsel %vm897, 0, %v983
        %v986 = vcosq.f32.pop %v984
        %v987 = vsinq.f32.pop %v984
        %vm988 = vweird.f32 %v262
        %v989 = vadd.s32 %v985, 3
        %v990 = vand.u32 %v989, 3
        %vm991 = vcmp.lt.s32.totalorder %v990, 2
        %vm992 = vcmp.eq.s32.totalorder %v990, 0
        %v993 = vxor.u32 %v987, 2147483648
        %v994 = vsel %vm992, %v986, %v993
        %vm995 = vcmp.eq.s32.totalorder %v990, 2
        %v996 = vxor.u32 %v986, 2147483648
        %v997 = vsel %vm995, %v996, %v987
        %v998 = vsel %vm991, %v994, %v997
        %v999 = vsel %vm988, nan, %v998
        %v1000 = vand.u32 2147483647, %v263
        %vm1001 = vcmp.le.f32.partialorder %v1000, 0.7853982
        %vm1002 = vcmp.lt.s32.totalorder %v263, 0
        %v1003 = vand.u32 %v263, 2139095040
        %v1004 = vshrl.u32 %v1003, 23
        %v1005 = vsub.s32 %v1004, 127
        %v1006 = vand.u32 2147483647, %v263
        %v1007 = vand.u32 %v1006, 8388607
        %v1008 = vor.u32 %v1007, 8388608
        %v1009 = vsub.s32 0, %v1008
        %v1010 = vadd.s32 %v1005, 1
        %vm1011 = vcmp.gt.s32.totalorder %v1010, 0
        %v1012 = vsel %vm1011, %v1010, 0
        %v1013 = vshrl.u32 %v1012, 5
        %v1014 = vand.u32 %v1012, 31
        %v1015 = vsub.s32 32, %v1014
        %v1016 = vshrl.u32 683565275, %v1015
        %v1017 = vshll.u32 683565275, %v1014
        %v1018 = vshrl.u32 2475754826, %v1015
        %v1019 = vor.u32 %v1017, %v1018
        %v1020 = vshll.u32 2475754826, %v1014
        %v1021 = vshrl.u32 2131351028, %v1015
        %v1022 = vor.u32 %v1020, %v1021
        %v1023 = vshll.u32 2131351028, %v1014
        %v1024 = vshrl.u32 2102212464, %v1015
        %v1025 = vor.u32 %v1023, %v1024
        %v1026 = vshll.u32 2102212464, %v1014
        %v1027 = vshrl.u32 920167782, %v1015
        %v1028 = vor.u32 %v1026, %v1027
        %v1029 = vshll.u32 920167782, %v1014
        %v1030 = vshrl.u32 1326507024, %v1015
        %v1031 = vor.u32 %v1029, %v1030
        %vm1032 = vcmp.lt.s32.totalorder %v1013, 1
        %vm1033 = vcmp.lt.s32.totalorder %v1013, 2
        %vm1034 = vcmp.lt.s32.totalorder %v1013, 3
        %vm1035 = vcmp.lt.s32.totalorder %v1013, 4
        %v1036 = vsel %vm1032, %v1016, %v1019
        %v1037 = vsel %vm1035, %v1025, 2102212464
        %v1038 = vsel %vm1034, %v1022, %v1037
        %v1039 = vsel %vm1033, %v1036, %v1038
        %v1040 = vsel %vm1032, %v1019, %v1022
        %v1041 = vsel %vm1035, %v1028, 920167782
        %v1042 = vsel %vm1034, %v1025, %v1041
        %v1043 = vsel %vm1033, %v1040, %v1042
        %v1044 = vsel %vm1032, %v1022, %v1025
        %v1045 = vsel %vm1035, %v1031, 1326507024
        %v1046 = vsel %vm1034, %v1028, %v1045
        %v1047 = vsel %vm1033, %v1044, %v1046
        %v1048 = vshll.u32 %v1008, 8
        %v1049 = vmul.u32.u64.compose %v1048, %v1047
        %v1050 = vextract.low.u32 %v1049
        %v1051 = vextract.high.u32 %v1049
        %v1052 = vmul.u32.u64.compose %v1048, %v1043
        %v1053 = vextract.low.u32 %v1052
        %v1054 = vextract.high.u32 %v1052
        %v1055 = vmul.u32 %v1048, %v1039
        %v1056 = vadd.s32 %v1051, %v1053
        %vm1057 = vc.u32 %v1051, %v1053
        %v1058 = vadd.s32 %v1054, 1
        %v1059 = vsel %vm1057, %v1058, %v1054
        %v1060 = vadd.s32 %v1055, %v1059
        %v1061 = vadd.s32 %v1060, 536870912
        %v1062 = vshrl.u32 %v1061, 30
        %v1063 = vshll.u32 %v1062, 30
        %v1064 = vsub.s32 %v1060, %v1063
        %vm1065 = vcmp.lt.s32.totalorder %v1064, 0
        %v1066 = vsub.s32 0, %v1064
        %v1067 = vsel %vm1065, %v1066, %v1064
        %v1068 = vclz %v1067
        %v1069 = vsub.s32 %v1068, 2
        %vm1070 = vcmp.gt.s32.totalorder 0, %v1069
        %v1071 = vsel %vm1070, 0, %v1069
        %v1072 = vsub.s32 32, %v1071
        %v1073 = vshll.u32 %v1064, %v1071
        %v1074 = vshrl.u32 %v1056, %v1072
        %v1075 = vor.u32 %v1073, %v1074
        %v1076 = vsub.s32 4294967266, %v1071
        %v1077 = vadd.s32 %v1076, 127
        %v1078 = vshll.u32 %v1077, 23
        %v1079 = vor.u32 4788187, %v1078
        %v1080 = vand.u32 2147483647, %v1079
        %v1082 = vcvt.s32.f32 %v1075
        %v1083 = vmul.f32 %v1082, %v1080
        %v1084 = vxor.u32 %v1083, 2147483648
        %v1085 = vsel %vm1002, %v1084, %v1083
        %v1086 = vsub.s32 4, %v1062
        %v1087 = vsel %vm1002, %v1086, %v1062
        %v1088 = vsel %vm1001, %v263, %v1085
        %v1089 = vsel %vm1001, 0, %v1087
        %v1090 = vcosq.f32.pop %v1088
        %v1091 = vsinq.f32.pop %v1088
        %vm1092 = vweird.f32 %v263
        %v1093 = vadd.s32 %v1089, 3
        %v1094 = vand.u32 %v1093, 3
        %vm1095 = vcmp.lt.s32.totalorder %v1094, 2
        %vm1096 = vcmp.eq.s32.totalorder %v1094, 0
        %v1097 = vxor.u32 %v1091, 2147483648
        %v1098 = vsel %vm1096, %v1090, %v1097
        %vm1099 = vcmp.eq.s32.totalorder %v1094, 2
        %v1100 = vxor.u32 %v1090, 2147483648
        %v1101 = vsel %vm1099, %v1100, %v1091
        %v1102 = vsel %vm1095, %v1098, %v1101
        %v1103 = vsel %vm1092, nan, %v1102
        %v1104 = vand.u32 2147483647, %v264
        %vm1105 = vcmp.le.f32.partialorder %v1104, 0.7853982
        %vm1106 = vcmp.lt.s32.totalorder %v264, 0
        %v1107 = vand.u32 %v264, 2139095040
        %v1108 = vshrl.u32 %v1107, 23
        %v1109 = vsub.s32 %v1108, 127
        %v1110 = vand.u32 2147483647, %v264
        %v1111 = vand.u32 %v1110, 8388607
        %v1112 = vor.u32 %v1111, 8388608
        %v1113 = vsub.s32 0, %v1112
        %v1114 = vadd.s32 %v1109, 1
        %vm1115 = vcmp.gt.s32.totalorder %v1114, 0
        %v1116 = vsel %vm1115, %v1114, 0
        %v1117 = vshrl.u32 %v1116, 5
        %v1118 = vand.u32 %v1116, 31
        %v1119 = vsub.s32 32, %v1118
        %v1120 = vshrl.u32 683565275, %v1119
        %v1121 = vshll.u32 683565275, %v1118
        %v1122 = vshrl.u32 2475754826, %v1119
        %v1123 = vor.u32 %v1121, %v1122
        %v1124 = vshll.u32 2475754826, %v1118
        %v1125 = vshrl.u32 2131351028, %v1119
        %v1126 = vor.u32 %v1124, %v1125
        %v1127 = vshll.u32 2131351028, %v1118
        %v1128 = vshrl.u32 2102212464, %v1119
        %v1129 = vor.u32 %v1127, %v1128
        %v1130 = vshll.u32 2102212464, %v1118
        %v1131 = vshrl.u32 920167782, %v1119
        %v1132 = vor.u32 %v1130, %v1131
        %v1133 = vshll.u32 920167782, %v1118
        %v1134 = vshrl.u32 1326507024, %v1119
        %v1135 = vor.u32 %v1133, %v1134
        %vm1136 = vcmp.lt.s32.totalorder %v1117, 1
        %vm1137 = vcmp.lt.s32.totalorder %v1117, 2
        %vm1138 = vcmp.lt.s32.totalorder %v1117, 3
        %vm1139 = vcmp.lt.s32.totalorder %v1117, 4
        %v1140 = vsel %vm1136, %v1120, %v1123
        %v1141 = vsel %vm1139, %v1129, 2102212464
        %v1142 = vsel %vm1138, %v1126, %v1141
        %v1143 = vsel %vm1137, %v1140, %v1142
        %v1144 = vsel %vm1136, %v1123, %v1126
        %v1145 = vsel %vm1139, %v1132, 920167782
        %v1146 = vsel %vm1138, %v1129, %v1145
        %v1147 = vsel %vm1137, %v1144, %v1146
        %v1148 = vsel %vm1136, %v1126, %v1129
        %v1149 = vsel %vm1139, %v1135, 1326507024
        %v1150 = vsel %vm1138, %v1132, %v1149
        %v1151 = vsel %vm1137, %v1148, %v1150
        %v1152 = vshll.u32 %v1112, 8
        %v1153 = vmul.u32.u64.compose %v1152, %v1151
        %v1154 = vextract.low.u32 %v1153
        %v1155 = vextract.high.u32 %v1153
        %v1156 = vmul.u32.u64.compose %v1152, %v1147
        %v1157 = vextract.low.u32 %v1156
        %v1158 = vextract.high.u32 %v1156
        %v1159 = vmul.u32 %v1152, %v1143
        %v1160 = vadd.s32 %v1155, %v1157
        %vm1161 = vc.u32 %v1155, %v1157
        %v1162 = vadd.s32 %v1158, 1
        %v1163 = vsel %vm1161, %v1162, %v1158
        %v1164 = vadd.s32 %v1159, %v1163
        %v1165 = vadd.s32 %v1164, 536870912
        %v1166 = vshrl.u32 %v1165, 30
        %v1167 = vshll.u32 %v1166, 30
        %v1168 = vsub.s32 %v1164, %v1167
        %vm1169 = vcmp.lt.s32.totalorder %v1168, 0
        %v1170 = vsub.s32 0, %v1168
        %v1171 = vsel %vm1169, %v1170, %v1168
        %v1172 = vclz %v1171
        %v1173 = vsub.s32 %v1172, 2
        %vm1174 = vcmp.gt.s32.totalorder 0, %v1173
        %v1175 = vsel %vm1174, 0, %v1173
        %v1176 = vsub.s32 32, %v1175
        %v1177 = vshll.u32 %v1168, %v1175
        %v1178 = vshrl.u32 %v1160, %v1176
        %v1179 = vor.u32 %v1177, %v1178
        %v1180 = vsub.s32 4294967266, %v1175
        %v1181 = vadd.s32 %v1180, 127
        %v1182 = vshll.u32 %v1181, 23
        %v1183 = vor.u32 4788187, %v1182
        %v1184 = vand.u32 2147483647, %v1183
        %v1186 = vcvt.s32.f32 %v1179
        %v1187 = vmul.f32 %v1186, %v1184
        %v1188 = vxor.u32 %v1187, 2147483648
        %v1189 = vsel %vm1106, %v1188, %v1187
        %v1190 = vsub.s32 4, %v1166
        %v1191 = vsel %vm1106, %v1190, %v1166
        %v1192 = vsel %vm1105, %v264, %v1189
        %v1193 = vsel %vm1105, 0, %v1191
        %v1194 = vcosq.f32.pop %v1192
        %v1195 = vsinq.f32.pop %v1192
        %vm1196 = vweird.f32 %v264
        %v1197 = vadd.s32 %v1193, 3
        %v1198 = vand.u32 %v1197, 3
        %vm1199 = vcmp.lt.s32.totalorder %v1198, 2
        %vm1200 = vcmp.eq.s32.totalorder %v1198, 0
        %v1201 = vxor.u32 %v1195, 2147483648
        %v1202 = vsel %vm1200, %v1194, %v1201
        %vm1203 = vcmp.eq.s32.totalorder %v1198, 2
        %v1204 = vxor.u32 %v1194, 2147483648
        %v1205 = vsel %vm1203, %v1204, %v1195
        %v1206 = vsel %vm1199, %v1202, %v1205
        %v1207 = vsel %vm1196, nan, %v1206
        %v1208 = vand.u32 2147483647, %v265
        %vm1209 = vcmp.le.f32.partialorder %v1208, 0.7853982
        %vm1210 = vcmp.lt.s32.totalorder %v265, 0
        %v1211 = vand.u32 %v265, 2139095040
        %v1212 = vshrl.u32 %v1211, 23
        %v1213 = vsub.s32 %v1212, 127
        %v1214 = vand.u32 2147483647, %v265
        %v1215 = vand.u32 %v1214, 8388607
        %v1216 = vor.u32 %v1215, 8388608
        %v1217 = vsub.s32 0, %v1216
        %v1218 = vadd.s32 %v1213, 1
        %vm1219 = vcmp.gt.s32.totalorder %v1218, 0
        %v1220 = vsel %vm1219, %v1218, 0
        %v1221 = vshrl.u32 %v1220, 5
        %v1222 = vand.u32 %v1220, 31
        %v1223 = vsub.s32 32, %v1222
        %v1224 = vshrl.u32 683565275, %v1223
        %v1225 = vshll.u32 683565275, %v1222
        %v1226 = vshrl.u32 2475754826, %v1223
        %v1227 = vor.u32 %v1225, %v1226
        %v1228 = vshll.u32 2475754826, %v1222
        %v1229 = vshrl.u32 2131351028, %v1223
        %v1230 = vor.u32 %v1228, %v1229
        %v1231 = vshll.u32 2131351028, %v1222
        %v1232 = vshrl.u32 2102212464, %v1223
        %v1233 = vor.u32 %v1231, %v1232
        %v1234 = vshll.u32 2102212464, %v1222
        %v1235 = vshrl.u32 920167782, %v1223
        %v1236 = vor.u32 %v1234, %v1235
        %v1237 = vshll.u32 920167782, %v1222
        %v1238 = vshrl.u32 1326507024, %v1223
        %v1239 = vor.u32 %v1237, %v1238
        %vm1240 = vcmp.lt.s32.totalorder %v1221, 1
        %vm1241 = vcmp.lt.s32.totalorder %v1221, 2
        %vm1242 = vcmp.lt.s32.totalorder %v1221, 3
        %vm1243 = vcmp.lt.s32.totalorder %v1221, 4
        %v1244 = vsel %vm1240, %v1224, %v1227
        %v1245 = vsel %vm1243, %v1233, 2102212464
        %v1246 = vsel %vm1242, %v1230, %v1245
        %v1247 = vsel %vm1241, %v1244, %v1246
        %v1248 = vsel %vm1240, %v1227, %v1230
        %v1249 = vsel %vm1243, %v1236, 920167782
        %v1250 = vsel %vm1242, %v1233, %v1249
        %v1251 = vsel %vm1241, %v1248, %v1250
        %v1252 = vsel %vm1240, %v1230, %v1233
        %v1253 = vsel %vm1243, %v1239, 1326507024
        %v1254 = vsel %vm1242, %v1236, %v1253
        %v1255 = vsel %vm1241, %v1252, %v1254
        %v1256 = vshll.u32 %v1216, 8
        %v1257 = vmul.u32.u64.compose %v1256, %v1255
        %v1258 = vextract.low.u32 %v1257
        %v1259 = vextract.high.u32 %v1257
        %v1260 = vmul.u32.u64.compose %v1256, %v1251
        %v1261 = vextract.low.u32 %v1260
        %v1262 = vextract.high.u32 %v1260
        %v1263 = vmul.u32 %v1256, %v1247
        %v1264 = vadd.s32 %v1259, %v1261
        %vm1265 = vc.u32 %v1259, %v1261
        %v1266 = vadd.s32 %v1262, 1
        %v1267 = vsel %vm1265, %v1266, %v1262
        %v1268 = vadd.s32 %v1263, %v1267
        %v1269 = vadd.s32 %v1268, 536870912
        %v1270 = vshrl.u32 %v1269, 30
        %v1271 = vshll.u32 %v1270, 30
        %v1272 = vsub.s32 %v1268, %v1271
        %vm1273 = vcmp.lt.s32.totalorder %v1272, 0
        %v1274 = vsub.s32 0, %v1272
        %v1275 = vsel %vm1273, %v1274, %v1272
        %v1276 = vclz %v1275
        %v1277 = vsub.s32 %v1276, 2
        %vm1278 = vcmp.gt.s32.totalorder 0, %v1277
        %v1279 = vsel %vm1278, 0, %v1277
        %v1280 = vsub.s32 32, %v1279
        %v1281 = vshll.u32 %v1272, %v1279
        %v1282 = vshrl.u32 %v1264, %v1280
        %v1283 = vor.u32 %v1281, %v1282
        %v1284 = vsub.s32 4294967266, %v1279
        %v1285 = vadd.s32 %v1284, 127
        %v1286 = vshll.u32 %v1285, 23
        %v1287 = vor.u32 4788187, %v1286
        %v1288 = vand.u32 2147483647, %v1287
        %v1290 = vcvt.s32.f32 %v1283
        %v1291 = vmul.f32 %v1290, %v1288
        %v1292 = vxor.u32 %v1291, 2147483648
        %v1293 = vsel %vm1210, %v1292, %v1291
        %v1294 = vsub.s32 4, %v1270
        %v1295 = vsel %vm1210, %v1294, %v1270
        %v1296 = vsel %vm1209, %v265, %v1293
        %v1297 = vsel %vm1209, 0, %v1295
        %v1298 = vcosq.f32.pop %v1296
        %v1299 = vsinq.f32.pop %v1296
        %vm1300 = vweird.f32 %v265
        %v1301 = vadd.s32 %v1297, 3
        %v1302 = vand.u32 %v1301, 3
        %vm1303 = vcmp.lt.s32.totalorder %v1302, 2
        %vm1304 = vcmp.eq.s32.totalorder %v1302, 0
        %v1305 = vxor.u32 %v1299, 2147483648
        %v1306 = vsel %vm1304, %v1298, %v1305
        %vm1307 = vcmp.eq.s32.totalorder %v1302, 2
        %v1308 = vxor.u32 %v1298, 2147483648
        %v1309 = vsel %vm1307, %v1308, %v1299
        %v1310 = vsel %vm1303, %v1306, %v1309
        %v1311 = vsel %vm1300, nan, %v1310
        %v1312 = vand.u32 2147483647, %v266
        %vm1313 = vcmp.le.f32.partialorder %v1312, 0.7853982
        %vm1314 = vcmp.lt.s32.totalorder %v266, 0
        %v1315 = vand.u32 %v266, 2139095040
        %v1316 = vshrl.u32 %v1315, 23
        %v1317 = vsub.s32 %v1316, 127
        %v1318 = vand.u32 2147483647, %v266
        %v1319 = vand.u32 %v1318, 8388607
        %v1320 = vor.u32 %v1319, 8388608
        %v1321 = vsub.s32 0, %v1320
        %v1322 = vadd.s32 %v1317, 1
        %vm1323 = vcmp.gt.s32.totalorder %v1322, 0
        %v1324 = vsel %vm1323, %v1322, 0
        %v1325 = vshrl.u32 %v1324, 5
        %v1326 = vand.u32 %v1324, 31
        %v1327 = vsub.s32 32, %v1326
        %v1328 = vshrl.u32 683565275, %v1327
        %v1329 = vshll.u32 683565275, %v1326
        %v1330 = vshrl.u32 2475754826, %v1327
        %v1331 = vor.u32 %v1329, %v1330
        %v1332 = vshll.u32 2475754826, %v1326
        %v1333 = vshrl.u32 2131351028, %v1327
        %v1334 = vor.u32 %v1332, %v1333
        %v1335 = vshll.u32 2131351028, %v1326
        %v1336 = vshrl.u32 2102212464, %v1327
        %v1337 = vor.u32 %v1335, %v1336
        %v1338 = vshll.u32 2102212464, %v1326
        %v1339 = vshrl.u32 920167782, %v1327
        %v1340 = vor.u32 %v1338, %v1339
        %v1341 = vshll.u32 920167782, %v1326
        %v1342 = vshrl.u32 1326507024, %v1327
        %v1343 = vor.u32 %v1341, %v1342
        %vm1344 = vcmp.lt.s32.totalorder %v1325, 1
        %vm1345 = vcmp.lt.s32.totalorder %v1325, 2
        %vm1346 = vcmp.lt.s32.totalorder %v1325, 3
        %vm1347 = vcmp.lt.s32.totalorder %v1325, 4
        %v1348 = vsel %vm1344, %v1328, %v1331
        %v1349 = vsel %vm1347, %v1337, 2102212464
        %v1350 = vsel %vm1346, %v1334, %v1349
        %v1351 = vsel %vm1345, %v1348, %v1350
        %v1352 = vsel %vm1344, %v1331, %v1334
        %v1353 = vsel %vm1347, %v1340, 920167782
        %v1354 = vsel %vm1346, %v1337, %v1353
        %v1355 = vsel %vm1345, %v1352, %v1354
        %v1356 = vsel %vm1344, %v1334, %v1337
        %v1357 = vsel %vm1347, %v1343, 1326507024
        %v1358 = vsel %vm1346, %v1340, %v1357
        %v1359 = vsel %vm1345, %v1356, %v1358
        %v1360 = vshll.u32 %v1320, 8
        %v1361 = vmul.u32.u64.compose %v1360, %v1359
        %v1362 = vextract.low.u32 %v1361
        %v1363 = vextract.high.u32 %v1361
        %v1364 = vmul.u32.u64.compose %v1360, %v1355
        %v1365 = vextract.low.u32 %v1364
        %v1366 = vextract.high.u32 %v1364
        %v1367 = vmul.u32 %v1360, %v1351
        %v1368 = vadd.s32 %v1363, %v1365
        %vm1369 = vc.u32 %v1363, %v1365
        %v1370 = vadd.s32 %v1366, 1
        %v1371 = vsel %vm1369, %v1370, %v1366
        %v1372 = vadd.s32 %v1367, %v1371
        %v1373 = vadd.s32 %v1372, 536870912
        %v1374 = vshrl.u32 %v1373, 30
        %v1375 = vshll.u32 %v1374, 30
        %v1376 = vsub.s32 %v1372, %v1375
        %vm1377 = vcmp.lt.s32.totalorder %v1376, 0
        %v1378 = vsub.s32 0, %v1376
        %v1379 = vsel %vm1377, %v1378, %v1376
        %v1380 = vclz %v1379
        %v1381 = vsub.s32 %v1380, 2
        %vm1382 = vcmp.gt.s32.totalorder 0, %v1381
        %v1383 = vsel %vm1382, 0, %v1381
        %v1384 = vsub.s32 32, %v1383
        %v1385 = vshll.u32 %v1376, %v1383
        %v1386 = vshrl.u32 %v1368, %v1384
        %v1387 = vor.u32 %v1385, %v1386
        %v1388 = vsub.s32 4294967266, %v1383
        %v1389 = vadd.s32 %v1388, 127
        %v1390 = vshll.u32 %v1389, 23
        %v1391 = vor.u32 4788187, %v1390
        %v1392 = vand.u32 2147483647, %v1391
        %v1394 = vcvt.s32.f32 %v1387
        %v1395 = vmul.f32 %v1394, %v1392
        %v1396 = vxor.u32 %v1395, 2147483648
        %v1397 = vsel %vm1314, %v1396, %v1395
        %v1398 = vsub.s32 4, %v1374
        %v1399 = vsel %vm1314, %v1398, %v1374
        %v1400 = vsel %vm1313, %v266, %v1397
        %v1401 = vsel %vm1313, 0, %v1399
        %v1402 = vcosq.f32.pop %v1400
        %v1403 = vsinq.f32.pop %v1400
        %vm1404 = vweird.f32 %v266
        %v1405 = vadd.s32 %v1401, 3
        %v1406 = vand.u32 %v1405, 3
        %vm1407 = vcmp.lt.s32.totalorder %v1406, 2
        %vm1408 = vcmp.eq.s32.totalorder %v1406, 0
        %v1409 = vxor.u32 %v1403, 2147483648
        %v1410 = vsel %vm1408, %v1402, %v1409
        %vm1411 = vcmp.eq.s32.totalorder %v1406, 2
        %v1412 = vxor.u32 %v1402, 2147483648
        %v1413 = vsel %vm1411, %v1412, %v1403
        %v1414 = vsel %vm1407, %v1410, %v1413
        %v1415 = vsel %vm1404, nan, %v1414
        %v1416 = vand.u32 2147483647, %v267
        %vm1417 = vcmp.le.f32.partialorder %v1416, 0.7853982
        %vm1418 = vcmp.lt.s32.totalorder %v267, 0
        %v1419 = vand.u32 %v267, 2139095040
        %v1420 = vshrl.u32 %v1419, 23
        %v1421 = vsub.s32 %v1420, 127
        %v1422 = vand.u32 2147483647, %v267
        %v1423 = vand.u32 %v1422, 8388607
        %v1424 = vor.u32 %v1423, 8388608
        %v1425 = vsub.s32 0, %v1424
        %v1426 = vadd.s32 %v1421, 1
        %vm1427 = vcmp.gt.s32.totalorder %v1426, 0
        %v1428 = vsel %vm1427, %v1426, 0
        %v1429 = vshrl.u32 %v1428, 5
        %v1430 = vand.u32 %v1428, 31
        %v1431 = vsub.s32 32, %v1430
        %v1432 = vshrl.u32 683565275, %v1431
        %v1433 = vshll.u32 683565275, %v1430
        %v1434 = vshrl.u32 2475754826, %v1431
        %v1435 = vor.u32 %v1433, %v1434
        %v1436 = vshll.u32 2475754826, %v1430
        %v1437 = vshrl.u32 2131351028, %v1431
        %v1438 = vor.u32 %v1436, %v1437
        %v1439 = vshll.u32 2131351028, %v1430
        %v1440 = vshrl.u32 2102212464, %v1431
        %v1441 = vor.u32 %v1439, %v1440
        %v1442 = vshll.u32 2102212464, %v1430
        %v1443 = vshrl.u32 920167782, %v1431
        %v1444 = vor.u32 %v1442, %v1443
        %v1445 = vshll.u32 920167782, %v1430
        %v1446 = vshrl.u32 1326507024, %v1431
        %v1447 = vor.u32 %v1445, %v1446
        %vm1448 = vcmp.lt.s32.totalorder %v1429, 1
        %vm1449 = vcmp.lt.s32.totalorder %v1429, 2
        %vm1450 = vcmp.lt.s32.totalorder %v1429, 3
        %vm1451 = vcmp.lt.s32.totalorder %v1429, 4
        %v1452 = vsel %vm1448, %v1432, %v1435
        %v1453 = vsel %vm1451, %v1441, 2102212464
        %v1454 = vsel %vm1450, %v1438, %v1453
        %v1455 = vsel %vm1449, %v1452, %v1454
        %v1456 = vsel %vm1448, %v1435, %v1438
        %v1457 = vsel %vm1451, %v1444, 920167782
        %v1458 = vsel %vm1450, %v1441, %v1457
        %v1459 = vsel %vm1449, %v1456, %v1458
        %v1460 = vsel %vm1448, %v1438, %v1441
        %v1461 = vsel %vm1451, %v1447, 1326507024
        %v1462 = vsel %vm1450, %v1444, %v1461
        %v1463 = vsel %vm1449, %v1460, %v1462
        %v1464 = vshll.u32 %v1424, 8
        %v1465 = vmul.u32.u64.compose %v1464, %v1463
        %v1466 = vextract.low.u32 %v1465
        %v1467 = vextract.high.u32 %v1465
        %v1468 = vmul.u32.u64.compose %v1464, %v1459
        %v1469 = vextract.low.u32 %v1468
        %v1470 = vextract.high.u32 %v1468
        %v1471 = vmul.u32 %v1464, %v1455
        %v1472 = vadd.s32 %v1467, %v1469
        %vm1473 = vc.u32 %v1467, %v1469
        %v1474 = vadd.s32 %v1470, 1
        %v1475 = vsel %vm1473, %v1474, %v1470
        %v1476 = vadd.s32 %v1471, %v1475
        %v1477 = vadd.s32 %v1476, 536870912
        %v1478 = vshrl.u32 %v1477, 30
        %v1479 = vshll.u32 %v1478, 30
        %v1480 = vsub.s32 %v1476, %v1479
        %vm1481 = vcmp.lt.s32.totalorder %v1480, 0
        %v1482 = vsub.s32 0, %v1480
        %v1483 = vsel %vm1481, %v1482, %v1480
        %v1484 = vclz %v1483
        %v1485 = vsub.s32 %v1484, 2
        %vm1486 = vcmp.gt.s32.totalorder 0, %v1485
        %v1487 = vsel %vm1486, 0, %v1485
        %v1488 = vsub.s32 32, %v1487
        %v1489 = vshll.u32 %v1480, %v1487
        %v1490 = vshrl.u32 %v1472, %v1488
        %v1491 = vor.u32 %v1489, %v1490
        %v1492 = vsub.s32 4294967266, %v1487
        %v1493 = vadd.s32 %v1492, 127
        %v1494 = vshll.u32 %v1493, 23
        %v1495 = vor.u32 4788187, %v1494
        %v1496 = vand.u32 2147483647, %v1495
        %v1498 = vcvt.s32.f32 %v1491
        %v1499 = vmul.f32 %v1498, %v1496
        %v1500 = vxor.u32 %v1499, 2147483648
        %v1501 = vsel %vm1418, %v1500, %v1499
        %v1502 = vsub.s32 4, %v1478
        %v1503 = vsel %vm1418, %v1502, %v1478
        %v1504 = vsel %vm1417, %v267, %v1501
        %v1505 = vsel %vm1417, 0, %v1503
        %v1506 = vcosq.f32.pop %v1504
        %v1507 = vsinq.f32.pop %v1504
        %vm1508 = vweird.f32 %v267
        %v1509 = vadd.s32 %v1505, 3
        %v1510 = vand.u32 %v1509, 3
        %vm1511 = vcmp.lt.s32.totalorder %v1510, 2
        %vm1512 = vcmp.eq.s32.totalorder %v1510, 0
        %v1513 = vxor.u32 %v1507, 2147483648
        %v1514 = vsel %vm1512, %v1506, %v1513
        %vm1515 = vcmp.eq.s32.totalorder %v1510, 2
        %v1516 = vxor.u32 %v1506, 2147483648
        %v1517 = vsel %vm1515, %v1516, %v1507
        %v1518 = vsel %vm1511, %v1514, %v1517
        %v1519 = vsel %vm1508, nan, %v1518
        %v1520 = vand.u32 2147483647, %v268
        %vm1521 = vcmp.le.f32.partialorder %v1520, 0.7853982
        %vm1522 = vcmp.lt.s32.totalorder %v268, 0
        %v1523 = vand.u32 %v268, 2139095040
        %v1524 = vshrl.u32 %v1523, 23
        %v1525 = vsub.s32 %v1524, 127
        %v1526 = vand.u32 2147483647, %v268
        %v1527 = vand.u32 %v1526, 8388607
        %v1528 = vor.u32 %v1527, 8388608
        %v1529 = vsub.s32 0, %v1528
        %v1530 = vadd.s32 %v1525, 1
        %vm1531 = vcmp.gt.s32.totalorder %v1530, 0
        %v1532 = vsel %vm1531, %v1530, 0
        %v1533 = vshrl.u32 %v1532, 5
        %v1534 = vand.u32 %v1532, 31
        %v1535 = vsub.s32 32, %v1534
        %v1536 = vshrl.u32 683565275, %v1535
        %v1537 = vshll.u32 683565275, %v1534
        %v1538 = vshrl.u32 2475754826, %v1535
        %v1539 = vor.u32 %v1537, %v1538
        %v1540 = vshll.u32 2475754826, %v1534
        %v1541 = vshrl.u32 2131351028, %v1535
        %v1542 = vor.u32 %v1540, %v1541
        %v1543 = vshll.u32 2131351028, %v1534
        %v1544 = vshrl.u32 2102212464, %v1535
        %v1545 = vor.u32 %v1543, %v1544
        %v1546 = vshll.u32 2102212464, %v1534
        %v1547 = vshrl.u32 920167782, %v1535
        %v1548 = vor.u32 %v1546, %v1547
        %v1549 = vshll.u32 920167782, %v1534
        %v1550 = vshrl.u32 1326507024, %v1535
        %v1551 = vor.u32 %v1549, %v1550
        %vm1552 = vcmp.lt.s32.totalorder %v1533, 1
        %vm1553 = vcmp.lt.s32.totalorder %v1533, 2
        %vm1554 = vcmp.lt.s32.totalorder %v1533, 3
        %vm1555 = vcmp.lt.s32.totalorder %v1533, 4
        %v1556 = vsel %vm1552, %v1536, %v1539
        %v1557 = vsel %vm1555, %v1545, 2102212464
        %v1558 = vsel %vm1554, %v1542, %v1557
        %v1559 = vsel %vm1553, %v1556, %v1558
        %v1560 = vsel %vm1552, %v1539, %v1542
        %v1561 = vsel %vm1555, %v1548, 920167782
        %v1562 = vsel %vm1554, %v1545, %v1561
        %v1563 = vsel %vm1553, %v1560, %v1562
        %v1564 = vsel %vm1552, %v1542, %v1545
        %v1565 = vsel %vm1555, %v1551, 1326507024
        %v1566 = vsel %vm1554, %v1548, %v1565
        %v1567 = vsel %vm1553, %v1564, %v1566
        %v1568 = vshll.u32 %v1528, 8
        %v1569 = vmul.u32.u64.compose %v1568, %v1567
        %v1570 = vextract.low.u32 %v1569
        %v1571 = vextract.high.u32 %v1569
        %v1572 = vmul.u32.u64.compose %v1568, %v1563
        %v1573 = vextract.low.u32 %v1572
        %v1574 = vextract.high.u32 %v1572
        %v1575 = vmul.u32 %v1568, %v1559
        %v1576 = vadd.s32 %v1571, %v1573
        %vm1577 = vc.u32 %v1571, %v1573
        %v1578 = vadd.s32 %v1574, 1
        %v1579 = vsel %vm1577, %v1578, %v1574
        %v1580 = vadd.s32 %v1575, %v1579
        %v1581 = vadd.s32 %v1580, 536870912
        %v1582 = vshrl.u32 %v1581, 30
        %v1583 = vshll.u32 %v1582, 30
        %v1584 = vsub.s32 %v1580, %v1583
        %vm1585 = vcmp.lt.s32.totalorder %v1584, 0
        %v1586 = vsub.s32 0, %v1584
        %v1587 = vsel %vm1585, %v1586, %v1584
        %v1588 = vclz %v1587
        %v1589 = vsub.s32 %v1588, 2
        %vm1590 = vcmp.gt.s32.totalorder 0, %v1589
        %v1591 = vsel %vm1590, 0, %v1589
        %v1592 = vsub.s32 32, %v1591
        %v1593 = vshll.u32 %v1584, %v1591
        %v1594 = vshrl.u32 %v1576, %v1592
        %v1595 = vor.u32 %v1593, %v1594
        %v1596 = vsub.s32 4294967266, %v1591
        %v1597 = vadd.s32 %v1596, 127
        %v1598 = vshll.u32 %v1597, 23
        %v1599 = vor.u32 4788187, %v1598
        %v1600 = vand.u32 2147483647, %v1599
        %v1602 = vcvt.s32.f32 %v1595
        %v1603 = vmul.f32 %v1602, %v1600
        %v1604 = vxor.u32 %v1603, 2147483648
        %v1605 = vsel %vm1522, %v1604, %v1603
        %v1606 = vsub.s32 4, %v1582
        %v1607 = vsel %vm1522, %v1606, %v1582
        %v1608 = vsel %vm1521, %v268, %v1605
        %v1609 = vsel %vm1521, 0, %v1607
        %v1610 = vcosq.f32.pop %v1608
        %v1611 = vsinq.f32.pop %v1608
        %vm1612 = vweird.f32 %v268
        %v1613 = vadd.s32 %v1609, 3
        %v1614 = vand.u32 %v1613, 3
        %vm1615 = vcmp.lt.s32.totalorder %v1614, 2
        %vm1616 = vcmp.eq.s32.totalorder %v1614, 0
        %v1617 = vxor.u32 %v1611, 2147483648
        %v1618 = vsel %vm1616, %v1610, %v1617
        %vm1619 = vcmp.eq.s32.totalorder %v1614, 2
        %v1620 = vxor.u32 %v1610, 2147483648
        %v1621 = vsel %vm1619, %v1620, %v1611
        %v1622 = vsel %vm1615, %v1618, %v1621
        %v1623 = vsel %vm1612, nan, %v1622
        %v1624 = vand.u32 2147483647, %v269
        %vm1625 = vcmp.le.f32.partialorder %v1624, 0.7853982
        %vm1626 = vcmp.lt.s32.totalorder %v269, 0
        %v1627 = vand.u32 %v269, 2139095040
        %v1628 = vshrl.u32 %v1627, 23
        %v1629 = vsub.s32 %v1628, 127
        %v1630 = vand.u32 2147483647, %v269
        %v1631 = vand.u32 %v1630, 8388607
        %v1632 = vor.u32 %v1631, 8388608
        %v1633 = vsub.s32 0, %v1632
        %v1634 = vadd.s32 %v1629, 1
        %vm1635 = vcmp.gt.s32.totalorder %v1634, 0
        %v1636 = vsel %vm1635, %v1634, 0
        %v1637 = vshrl.u32 %v1636, 5
        %v1638 = vand.u32 %v1636, 31
        %v1639 = vsub.s32 32, %v1638
        %v1640 = vshrl.u32 683565275, %v1639
        %v1641 = vshll.u32 683565275, %v1638
        %v1642 = vshrl.u32 2475754826, %v1639
        %v1643 = vor.u32 %v1641, %v1642
        %v1644 = vshll.u32 2475754826, %v1638
        %v1645 = vshrl.u32 2131351028, %v1639
        %v1646 = vor.u32 %v1644, %v1645
        %v1647 = vshll.u32 2131351028, %v1638
        %v1648 = vshrl.u32 2102212464, %v1639
        %v1649 = vor.u32 %v1647, %v1648
        %v1650 = vshll.u32 2102212464, %v1638
        %v1651 = vshrl.u32 920167782, %v1639
        %v1652 = vor.u32 %v1650, %v1651
        %v1653 = vshll.u32 920167782, %v1638
        %v1654 = vshrl.u32 1326507024, %v1639
        %v1655 = vor.u32 %v1653, %v1654
        %vm1656 = vcmp.lt.s32.totalorder %v1637, 1
        %vm1657 = vcmp.lt.s32.totalorder %v1637, 2
        %vm1658 = vcmp.lt.s32.totalorder %v1637, 3
        %vm1659 = vcmp.lt.s32.totalorder %v1637, 4
        %v1660 = vsel %vm1656, %v1640, %v1643
        %v1661 = vsel %vm1659, %v1649, 2102212464
        %v1662 = vsel %vm1658, %v1646, %v1661
        %v1663 = vsel %vm1657, %v1660, %v1662
        %v1664 = vsel %vm1656, %v1643, %v1646
        %v1665 = vsel %vm1659, %v1652, 920167782
        %v1666 = vsel %vm1658, %v1649, %v1665
        %v1667 = vsel %vm1657, %v1664, %v1666
        %v1668 = vsel %vm1656, %v1646, %v1649
        %v1669 = vsel %vm1659, %v1655, 1326507024
        %v1670 = vsel %vm1658, %v1652, %v1669
        %v1671 = vsel %vm1657, %v1668, %v1670
        %v1672 = vshll.u32 %v1632, 8
        %v1673 = vmul.u32.u64.compose %v1672, %v1671
        %v1674 = vextract.low.u32 %v1673
        %v1675 = vextract.high.u32 %v1673
        %v1676 = vmul.u32.u64.compose %v1672, %v1667
        %v1677 = vextract.low.u32 %v1676
        %v1678 = vextract.high.u32 %v1676
        %v1679 = vmul.u32 %v1672, %v1663
        %v1680 = vadd.s32 %v1675, %v1677
        %vm1681 = vc.u32 %v1675, %v1677
        %v1682 = vadd.s32 %v1678, 1
        %v1683 = vsel %vm1681, %v1682, %v1678
        %v1684 = vadd.s32 %v1679, %v1683
        %v1685 = vadd.s32 %v1684, 536870912
        %v1686 = vshrl.u32 %v1685, 30
        %v1687 = vshll.u32 %v1686, 30
        %v1688 = vsub.s32 %v1684, %v1687
        %vm1689 = vcmp.lt.s32.totalorder %v1688, 0
        %v1690 = vsub.s32 0, %v1688
        %v1691 = vsel %vm1689, %v1690, %v1688
        %v1692 = vclz %v1691
        %v1693 = vsub.s32 %v1692, 2
        %vm1694 = vcmp.gt.s32.totalorder 0, %v1693
        %v1695 = vsel %vm1694, 0, %v1693
        %v1696 = vsub.s32 32, %v1695
        %v1697 = vshll.u32 %v1688, %v1695
        %v1698 = vshrl.u32 %v1680, %v1696
        %v1699 = vor.u32 %v1697, %v1698
        %v1700 = vsub.s32 4294967266, %v1695
        %v1701 = vadd.s32 %v1700, 127
        %v1702 = vshll.u32 %v1701, 23
        %v1703 = vor.u32 4788187, %v1702
        %v1704 = vand.u32 2147483647, %v1703
        %v1706 = vcvt.s32.f32 %v1699
        %v1707 = vmul.f32 %v1706, %v1704
        %v1708 = vxor.u32 %v1707, 2147483648
        %v1709 = vsel %vm1626, %v1708, %v1707
        %v1710 = vsub.s32 4, %v1686
        %v1711 = vsel %vm1626, %v1710, %v1686
        %v1712 = vsel %vm1625, %v269, %v1709
        %v1713 = vsel %vm1625, 0, %v1711
        %v1714 = vcosq.f32.pop %v1712
        %v1715 = vsinq.f32.pop %v1712
        %vm1716 = vweird.f32 %v269
        %v1717 = vadd.s32 %v1713, 3
        %v1718 = vand.u32 %v1717, 3
        %vm1719 = vcmp.lt.s32.totalorder %v1718, 2
        %vm1720 = vcmp.eq.s32.totalorder %v1718, 0
        %v1721 = vxor.u32 %v1715, 2147483648
        %v1722 = vsel %vm1720, %v1714, %v1721
        %vm1723 = vcmp.eq.s32.totalorder %v1718, 2
        %v1724 = vxor.u32 %v1714, 2147483648
        %v1725 = vsel %vm1723, %v1724, %v1715
        %v1726 = vsel %vm1719, %v1722, %v1725
        %v1727 = vsel %vm1716, nan, %v1726
        %v1728 = vand.u32 2147483647, %v270
        %vm1729 = vcmp.le.f32.partialorder %v1728, 0.7853982
        %vm1730 = vcmp.lt.s32.totalorder %v270, 0
        %v1731 = vand.u32 %v270, 2139095040
        %v1732 = vshrl.u32 %v1731, 23
        %v1733 = vsub.s32 %v1732, 127
        %v1734 = vand.u32 2147483647, %v270
        %v1735 = vand.u32 %v1734, 8388607
        %v1736 = vor.u32 %v1735, 8388608
        %v1737 = vsub.s32 0, %v1736
        %v1738 = vadd.s32 %v1733, 1
        %vm1739 = vcmp.gt.s32.totalorder %v1738, 0
        %v1740 = vsel %vm1739, %v1738, 0
        %v1741 = vshrl.u32 %v1740, 5
        %v1742 = vand.u32 %v1740, 31
        %v1743 = vsub.s32 32, %v1742
        %v1744 = vshrl.u32 683565275, %v1743
        %v1745 = vshll.u32 683565275, %v1742
        %v1746 = vshrl.u32 2475754826, %v1743
        %v1747 = vor.u32 %v1745, %v1746
        %v1748 = vshll.u32 2475754826, %v1742
        %v1749 = vshrl.u32 2131351028, %v1743
        %v1750 = vor.u32 %v1748, %v1749
        %v1751 = vshll.u32 2131351028, %v1742
        %v1752 = vshrl.u32 2102212464, %v1743
        %v1753 = vor.u32 %v1751, %v1752
        %v1754 = vshll.u32 2102212464, %v1742
        %v1755 = vshrl.u32 920167782, %v1743
        %v1756 = vor.u32 %v1754, %v1755
        %v1757 = vshll.u32 920167782, %v1742
        %v1758 = vshrl.u32 1326507024, %v1743
        %v1759 = vor.u32 %v1757, %v1758
        %vm1760 = vcmp.lt.s32.totalorder %v1741, 1
        %vm1761 = vcmp.lt.s32.totalorder %v1741, 2
        %vm1762 = vcmp.lt.s32.totalorder %v1741, 3
        %vm1763 = vcmp.lt.s32.totalorder %v1741, 4
        %v1764 = vsel %vm1760, %v1744, %v1747
        %v1765 = vsel %vm1763, %v1753, 2102212464
        %v1766 = vsel %vm1762, %v1750, %v1765
        %v1767 = vsel %vm1761, %v1764, %v1766
        %v1768 = vsel %vm1760, %v1747, %v1750
        %v1769 = vsel %vm1763, %v1756, 920167782
        %v1770 = vsel %vm1762, %v1753, %v1769
        %v1771 = vsel %vm1761, %v1768, %v1770
        %v1772 = vsel %vm1760, %v1750, %v1753
        %v1773 = vsel %vm1763, %v1759, 1326507024
        %v1774 = vsel %vm1762, %v1756, %v1773
        %v1775 = vsel %vm1761, %v1772, %v1774
        %v1776 = vshll.u32 %v1736, 8
        %v1777 = vmul.u32.u64.compose %v1776, %v1775
        %v1778 = vextract.low.u32 %v1777
        %v1779 = vextract.high.u32 %v1777
        %v1780 = vmul.u32.u64.compose %v1776, %v1771
        %v1781 = vextract.low.u32 %v1780
        %v1782 = vextract.high.u32 %v1780
        %v1783 = vmul.u32 %v1776, %v1767
        %v1784 = vadd.s32 %v1779, %v1781
        %vm1785 = vc.u32 %v1779, %v1781
        %v1786 = vadd.s32 %v1782, 1
        %v1787 = vsel %vm1785, %v1786, %v1782
        %v1788 = vadd.s32 %v1783, %v1787
        %v1789 = vadd.s32 %v1788, 536870912
        %v1790 = vshrl.u32 %v1789, 30
        %v1791 = vshll.u32 %v1790, 30
        %v1792 = vsub.s32 %v1788, %v1791
        %vm1793 = vcmp.lt.s32.totalorder %v1792, 0
        %v1794 = vsub.s32 0, %v1792
        %v1795 = vsel %vm1793, %v1794, %v1792
        %v1796 = vclz %v1795
        %v1797 = vsub.s32 %v1796, 2
        %vm1798 = vcmp.gt.s32.totalorder 0, %v1797
        %v1799 = vsel %vm1798, 0, %v1797
        %v1800 = vsub.s32 32, %v1799
        %v1801 = vshll.u32 %v1792, %v1799
        %v1802 = vshrl.u32 %v1784, %v1800
        %v1803 = vor.u32 %v1801, %v1802
        %v1804 = vsub.s32 4294967266, %v1799
        %v1805 = vadd.s32 %v1804, 127
        %v1806 = vshll.u32 %v1805, 23
        %v1807 = vor.u32 4788187, %v1806
        %v1808 = vand.u32 2147483647, %v1807
        %v1810 = vcvt.s32.f32 %v1803
        %v1811 = vmul.f32 %v1810, %v1808
        %v1812 = vxor.u32 %v1811, 2147483648
        %v1813 = vsel %vm1730, %v1812, %v1811
        %v1814 = vsub.s32 4, %v1790
        %v1815 = vsel %vm1730, %v1814, %v1790
        %v1816 = vsel %vm1729, %v270, %v1813
        %v1817 = vsel %vm1729, 0, %v1815
        %v1818 = vcosq.f32.pop %v1816
        %v1819 = vsinq.f32.pop %v1816
        %vm1820 = vweird.f32 %v270
        %v1821 = vadd.s32 %v1817, 3
        %v1822 = vand.u32 %v1821, 3
        %vm1823 = vcmp.lt.s32.totalorder %v1822, 2
        %vm1824 = vcmp.eq.s32.totalorder %v1822, 0
        %v1825 = vxor.u32 %v1819, 2147483648
        %v1826 = vsel %vm1824, %v1818, %v1825
        %vm1827 = vcmp.eq.s32.totalorder %v1822, 2
        %v1828 = vxor.u32 %v1818, 2147483648
        %v1829 = vsel %vm1827, %v1828, %v1819
        %v1830 = vsel %vm1823, %v1826, %v1829
        %v1831 = vsel %vm1820, nan, %v1830
        %v1832 = vand.u32 2147483647, %v271
        %vm1833 = vcmp.le.f32.partialorder %v1832, 0.7853982
        %vm1834 = vcmp.lt.s32.totalorder %v271, 0
        %v1835 = vand.u32 %v271, 2139095040
        %v1836 = vshrl.u32 %v1835, 23
        %v1837 = vsub.s32 %v1836, 127
        %v1838 = vand.u32 2147483647, %v271
        %v1839 = vand.u32 %v1838, 8388607
        %v1840 = vor.u32 %v1839, 8388608
        %v1841 = vsub.s32 0, %v1840
        %v1842 = vadd.s32 %v1837, 1
        %vm1843 = vcmp.gt.s32.totalorder %v1842, 0
        %v1844 = vsel %vm1843, %v1842, 0
        %v1845 = vshrl.u32 %v1844, 5
        %v1846 = vand.u32 %v1844, 31
        %v1847 = vsub.s32 32, %v1846
        %v1848 = vshrl.u32 683565275, %v1847
        %v1849 = vshll.u32 683565275, %v1846
        %v1850 = vshrl.u32 2475754826, %v1847
        %v1851 = vor.u32 %v1849, %v1850
        %v1852 = vshll.u32 2475754826, %v1846
        %v1853 = vshrl.u32 2131351028, %v1847
        %v1854 = vor.u32 %v1852, %v1853
        %v1855 = vshll.u32 2131351028, %v1846
        %v1856 = vshrl.u32 2102212464, %v1847
        %v1857 = vor.u32 %v1855, %v1856
        %v1858 = vshll.u32 2102212464, %v1846
        %v1859 = vshrl.u32 920167782, %v1847
        %v1860 = vor.u32 %v1858, %v1859
        %v1861 = vshll.u32 920167782, %v1846
        %v1862 = vshrl.u32 1326507024, %v1847
        %v1863 = vor.u32 %v1861, %v1862
        %vm1864 = vcmp.lt.s32.totalorder %v1845, 1
        %vm1865 = vcmp.lt.s32.totalorder %v1845, 2
        %vm1866 = vcmp.lt.s32.totalorder %v1845, 3
        %vm1867 = vcmp.lt.s32.totalorder %v1845, 4
        %v1868 = vsel %vm1864, %v1848, %v1851
        %v1869 = vsel %vm1867, %v1857, 2102212464
        %v1870 = vsel %vm1866, %v1854, %v1869
        %v1871 = vsel %vm1865, %v1868, %v1870
        %v1872 = vsel %vm1864, %v1851, %v1854
        %v1873 = vsel %vm1867, %v1860, 920167782
        %v1874 = vsel %vm1866, %v1857, %v1873
        %v1875 = vsel %vm1865, %v1872, %v1874
        %v1876 = vsel %vm1864, %v1854, %v1857
        %v1877 = vsel %vm1867, %v1863, 1326507024
        %v1878 = vsel %vm1866, %v1860, %v1877
        %v1879 = vsel %vm1865, %v1876, %v1878
        %v1880 = vshll.u32 %v1840, 8
        %v1881 = vmul.u32.u64.compose %v1880, %v1879
        %v1882 = vextract.low.u32 %v1881
        %v1883 = vextract.high.u32 %v1881
        %v1884 = vmul.u32.u64.compose %v1880, %v1875
        %v1885 = vextract.low.u32 %v1884
        %v1886 = vextract.high.u32 %v1884
        %v1887 = vmul.u32 %v1880, %v1871
        %v1888 = vadd.s32 %v1883, %v1885
        %vm1889 = vc.u32 %v1883, %v1885
        %v1890 = vadd.s32 %v1886, 1
        %v1891 = vsel %vm1889, %v1890, %v1886
        %v1892 = vadd.s32 %v1887, %v1891
        %v1893 = vadd.s32 %v1892, 536870912
        %v1894 = vshrl.u32 %v1893, 30
        %v1895 = vshll.u32 %v1894, 30
        %v1896 = vsub.s32 %v1892, %v1895
        %vm1897 = vcmp.lt.s32.totalorder %v1896, 0
        %v1898 = vsub.s32 0, %v1896
        %v1899 = vsel %vm1897, %v1898, %v1896
        %v1900 = vclz %v1899
        %v1901 = vsub.s32 %v1900, 2
        %vm1902 = vcmp.gt.s32.totalorder 0, %v1901
        %v1903 = vsel %vm1902, 0, %v1901
        %v1904 = vsub.s32 32, %v1903
        %v1905 = vshll.u32 %v1896, %v1903
        %v1906 = vshrl.u32 %v1888, %v1904
        %v1907 = vor.u32 %v1905, %v1906
        %v1908 = vsub.s32 4294967266, %v1903
        %v1909 = vadd.s32 %v1908, 127
        %v1910 = vshll.u32 %v1909, 23
        %v1911 = vor.u32 4788187, %v1910
        %v1912 = vand.u32 2147483647, %v1911
        %v1914 = vcvt.s32.f32 %v1907
        %v1915 = vmul.f32 %v1914, %v1912
        %v1916 = vxor.u32 %v1915, 2147483648
        %v1917 = vsel %vm1834, %v1916, %v1915
        %v1918 = vsub.s32 4, %v1894
        %v1919 = vsel %vm1834, %v1918, %v1894
        %v1920 = vsel %vm1833, %v271, %v1917
        %v1921 = vsel %vm1833, 0, %v1919
        %v1922 = vcosq.f32.pop %v1920
        %v1923 = vsinq.f32.pop %v1920
        %vm1924 = vweird.f32 %v271
        %v1925 = vadd.s32 %v1921, 3
        %v1926 = vand.u32 %v1925, 3
        %vm1927 = vcmp.lt.s32.totalorder %v1926, 2
        %vm1928 = vcmp.eq.s32.totalorder %v1926, 0
        %v1929 = vxor.u32 %v1923, 2147483648
        %v1930 = vsel %vm1928, %v1922, %v1929
        %vm1931 = vcmp.eq.s32.totalorder %v1926, 2
        %v1932 = vxor.u32 %v1922, 2147483648
        %v1933 = vsel %vm1931, %v1932, %v1923
        %v1934 = vsel %vm1927, %v1930, %v1933
        %v1935 = vsel %vm1924, nan, %v1934
        %1936 = vset.pattern.permute.xlu0 18
        %1937 = vperm.xlu0 %1936, %v178
        %v1938 = vpop.permute.xlu0 %1937
        %1940 = vset.pattern.permute.xlu0 18
        %1941 = vperm.xlu0 %1940, %v179
        %v1942 = vpop.permute.xlu0 %1941
        %vm1944 = vcmask 130048
        %v1945 = vsel %vm1944, %v178, 0
        %v1947 = vsel %vm1944, %v179, 0
        %1949 = vmatprep.subr.mxu0 0.0
        %1950 = vmatpush1.msra.mxu0 0.0
        %1951 = vmatprep.subr.mxu0 0.0
        %1952 = vmatpush1.msra.mxu0 0.0
        %1953 = vmatprep.subr.mxu0 0.0
        %1954 = vmatpush1.msra.mxu0 0.0
        %1955 = vmatprep.subr.mxu0 0.0
        %1956 = vmatpush1.msra.mxu0 0.0
        %1957 = vmatprep.subr.mxu0 0.0
        %1958 = vmatpush1.msra.mxu0 0.0
        %1959 = vmatprep.subr.mxu0 0.0
        %1960 = vmatpush1.msra.mxu0 0.0
        %1961 = vmatprep.subr.mxu0 0.0
        %1962 = vmatpush1.msra.mxu0 0.0
        %1963 = vmatprep.subr.mxu0 0.0
        %1964 = vmatpush1.msra.mxu0 0.0
        %1965 = vmatprep.subr.mxu0 0.0
        %1966 = vmatpush1.msra.mxu0 0.0
        %1967 = vmatprep.subr.mxu0 0.0
        %1968 = vmatpush1.msra.mxu0 0.0
        %1969 = vmatprep.subr.mxu0 0.0
        %1970 = vmatpush1.msra.mxu0 0.0
        %1971 = vmatprep.subr.mxu0 0.0
        %1972 = vmatpush1.msra.mxu0 0.0
        %1973 = vmatprep.subr.mxu0 0.0
        %1974 = vmatpush1.msra.mxu0 0.0
        %1975 = vmatprep.subr.mxu0 0.0
        %1976 = vmatpush1.msra.mxu0 0.0
        %1977 = vmatprep.subr.mxu0 %v1311
        %1978 = vmatpush1.msra.mxu0 %v1207
        %1979 = vmatprep.subr.mxu0 %v479
        %1980 = vmatpush1.msra.mxu0 %v375
        %1981 = vmatprep.subr.mxu0 0.0
        %1982 = vmatpush2.msra.mxu0 0.0
        %1983 = vmatprep.subr.mxu0 0.0
        %1984 = vmatpush2.msra.mxu0 0.0
        %1985 = vmatprep.subr.mxu0 0.0
        %1986 = vmatpush2.msra.mxu0 0.0
        %1987 = vmatprep.subr.mxu0 0.0
        %1988 = vmatpush2.msra.mxu0 0.0
        %1989 = vmatprep.subr.mxu0 0.0
        %1990 = vmatpush2.msra.mxu0 0.0
        %1991 = vmatprep.subr.mxu0 0.0
        %1992 = vmatpush2.msra.mxu0 0.0
        %1993 = vmatprep.subr.mxu0 0.0
        %1994 = vmatpush2.msra.mxu0 0.0
        %1995 = vmatprep.subr.mxu0 0.0
        %1996 = vmatpush2.msra.mxu0 0.0
        %1997 = vmatprep.subr.mxu0 0.0
        %1998 = vmatpush2.msra.mxu0 0.0
        %1999 = vmatprep.subr.mxu0 0.0
        %2000 = vmatpush2.msra.mxu0 0.0
        %2001 = vmatprep.subr.mxu0 0.0
        %2002 = vmatpush2.msra.mxu0 0.0
        %2003 = vmatprep.subr.mxu0 0.0
        %2004 = vmatpush2.msra.mxu0 0.0
        %2005 = vmatprep.subr.mxu0 0.0
        %2006 = vmatpush2.msra.mxu0 0.0
        %2007 = vmatprep.subr.mxu0 0.0
        %2008 = vmatpush2.msra.mxu0 0.0
        %2009 = vmatprep.subr.mxu0 0.0
        %2010 = vmatpush2.msra.mxu0 0.0
        %2011 = vmatprep.subr.mxu0 0.0
        %2012 = vmatpush2.msra.mxu0 0.0
        %2013 = vmatprep.mubr.f32.mxu0 0.0
        %2014 = vmatmul.mubr.f32.gmra.mxu0 %v1945
        %v2015 = vpop.f32.mrf.mxu0
        %v2016 = vadd.f32 %v1938, %v2015
        %v2017 = vpop.f32.mrf.mxu0
        %v2018 = vadd.f32 %v1938, %v2017
        %2019 = vmatprep.mubr.f32.mxu0 0.0
        %2020 = vmatmul.mubr.f32.gmra.mxu0 %v1947
        %v2021 = vpop.f32.mrf.mxu0
        %v2022 = vadd.f32 %v1942, %v2021
        %v2023 = vpop.f32.mrf.mxu0
        %v2024 = vadd.f32 %v1942, %v2023
        %2025 = vdwg.mxu0
        %2026 = vmatprep.subr.mxu0 0.0
        %2027 = vmatpush1.msra.mxu0 0.0
        %2028 = vmatprep.subr.mxu0 0.0
        %2029 = vmatpush1.msra.mxu0 0.0
        %2030 = vmatprep.subr.mxu0 0.0
        %2031 = vmatpush1.msra.mxu0 0.0
        %2032 = vmatprep.subr.mxu0 0.0
        %2033 = vmatpush1.msra.mxu0 0.0
        %2034 = vmatprep.subr.mxu0 0.0
        %2035 = vmatpush1.msra.mxu0 0.0
        %2036 = vmatprep.subr.mxu0 0.0
        %2037 = vmatpush1.msra.mxu0 0.0
        %2038 = vmatprep.subr.mxu0 0.0
        %2039 = vmatpush1.msra.mxu0 0.0
        %2040 = vmatprep.subr.mxu0 0.0
        %2041 = vmatpush1.msra.mxu0 0.0
        %2042 = vmatprep.subr.mxu0 0.0
        %2043 = vmatpush1.msra.mxu0 0.0
        %2044 = vmatprep.subr.mxu0 0.0
        %2045 = vmatpush1.msra.mxu0 0.0
        %2046 = vmatprep.subr.mxu0 0.0
        %2047 = vmatpush1.msra.mxu0 0.0
        %2048 = vmatprep.subr.mxu0 0.0
        %2049 = vmatpush1.msra.mxu0 0.0
        %2050 = vmatprep.subr.mxu0 0.0
        %2051 = vmatpush1.msra.mxu0 0.0
        %2052 = vmatprep.subr.mxu0 0.0
        %2053 = vmatpush1.msra.mxu0 0.0
        %2054 = vmatprep.subr.mxu0 %v1519
        %2055 = vmatpush1.msra.mxu0 %v1415
        %2056 = vmatprep.subr.mxu0 %v687
        %2057 = vmatpush1.msra.mxu0 %v583
        %2058 = vmatprep.subr.mxu0 0.0
        %2059 = vmatpush2.msra.mxu0 0.0
        %2060 = vmatprep.subr.mxu0 0.0
        %2061 = vmatpush2.msra.mxu0 0.0
        %2062 = vmatprep.subr.mxu0 0.0
        %2063 = vmatpush2.msra.mxu0 0.0
        %2064 = vmatprep.subr.mxu0 0.0
        %2065 = vmatpush2.msra.mxu0 0.0
        %2066 = vmatprep.subr.mxu0 0.0
        %2067 = vmatpush2.msra.mxu0 0.0
        %2068 = vmatprep.subr.mxu0 0.0
        %2069 = vmatpush2.msra.mxu0 0.0
        %2070 = vmatprep.subr.mxu0 0.0
        %2071 = vmatpush2.msra.mxu0 0.0
        %2072 = vmatprep.subr.mxu0 0.0
        %2073 = vmatpush2.msra.mxu0 0.0
        %2074 = vmatprep.subr.mxu0 0.0
        %2075 = vmatpush2.msra.mxu0 0.0
        %2076 = vmatprep.subr.mxu0 0.0
        %2077 = vmatpush2.msra.mxu0 0.0
        %2078 = vmatprep.subr.mxu0 0.0
        %2079 = vmatpush2.msra.mxu0 0.0
        %2080 = vmatprep.subr.mxu0 0.0
        %2081 = vmatpush2.msra.mxu0 0.0
        %2082 = vmatprep.subr.mxu0 0.0
        %2083 = vmatpush2.msra.mxu0 0.0
        %2084 = vmatprep.subr.mxu0 0.0
        %2085 = vmatpush2.msra.mxu0 0.0
        %2086 = vmatprep.subr.mxu0 0.0
        %2087 = vmatpush2.msra.mxu0 0.0
        %2088 = vmatprep.subr.mxu0 0.0
        %2089 = vmatpush2.msra.mxu0 0.0
        %2090 = vmatprep.mubr.f32.mxu0 0.0
        %2091 = vmatmul.mubr.f32.gmra.mxu0 %v1945
        %v2092 = vpop.f32.mrf.mxu0
        %v2093 = vadd.f32 %v1938, %v2092
        %v2094 = vpop.f32.mrf.mxu0
        %v2095 = vadd.f32 %v1938, %v2094
        %2096 = vmatprep.mubr.f32.mxu0 0.0
        %2097 = vmatmul.mubr.f32.gmra.mxu0 %v1947
        %v2098 = vpop.f32.mrf.mxu0
        %v2099 = vadd.f32 %v1942, %v2098
        %v2100 = vpop.f32.mrf.mxu0
        %v2101 = vadd.f32 %v1942, %v2100
        %2102 = vdwg.mxu0
        %2103 = vmatprep.subr.mxu0 0.0
        %2104 = vmatpush1.msra.mxu0 0.0
        %2105 = vmatprep.subr.mxu0 0.0
        %2106 = vmatpush1.msra.mxu0 0.0
        %2107 = vmatprep.subr.mxu0 0.0
        %2108 = vmatpush1.msra.mxu0 0.0
        %2109 = vmatprep.subr.mxu0 0.0
        %2110 = vmatpush1.msra.mxu0 0.0
        %2111 = vmatprep.subr.mxu0 0.0
        %2112 = vmatpush1.msra.mxu0 0.0
        %2113 = vmatprep.subr.mxu0 0.0
        %2114 = vmatpush1.msra.mxu0 0.0
        %2115 = vmatprep.subr.mxu0 0.0
        %2116 = vmatpush1.msra.mxu0 0.0
        %2117 = vmatprep.subr.mxu0 0.0
        %2118 = vmatpush1.msra.mxu0 0.0
        %2119 = vmatprep.subr.mxu0 0.0
        %2120 = vmatpush1.msra.mxu0 0.0
        %2121 = vmatprep.subr.mxu0 0.0
        %2122 = vmatpush1.msra.mxu0 0.0
        %2123 = vmatprep.subr.mxu0 0.0
        %2124 = vmatpush1.msra.mxu0 0.0
        %2125 = vmatprep.subr.mxu0 0.0
        %2126 = vmatpush1.msra.mxu0 0.0
        %2127 = vmatprep.subr.mxu0 0.0
        %2128 = vmatpush1.msra.mxu0 0.0
        %2129 = vmatprep.subr.mxu0 0.0
        %2130 = vmatpush1.msra.mxu0 0.0
        %2131 = vmatprep.subr.mxu0 %v1727
        %2132 = vmatpush1.msra.mxu0 %v1623
        %2133 = vmatprep.subr.mxu0 %v895
        %2134 = vmatpush1.msra.mxu0 %v791
        %2135 = vmatprep.subr.mxu0 0.0
        %2136 = vmatpush2.msra.mxu0 0.0
        %2137 = vmatprep.subr.mxu0 0.0
        %2138 = vmatpush2.msra.mxu0 0.0
        %2139 = vmatprep.subr.mxu0 0.0
        %2140 = vmatpush2.msra.mxu0 0.0
        %2141 = vmatprep.subr.mxu0 0.0
        %2142 = vmatpush2.msra.mxu0 0.0
        %2143 = vmatprep.subr.mxu0 0.0
        %2144 = vmatpush2.msra.mxu0 0.0
        %2145 = vmatprep.subr.mxu0 0.0
        %2146 = vmatpush2.msra.mxu0 0.0
        %2147 = vmatprep.subr.mxu0 0.0
        %2148 = vmatpush2.msra.mxu0 0.0
        %2149 = vmatprep.subr.mxu0 0.0
        %2150 = vmatpush2.msra.mxu0 0.0
        %2151 = vmatprep.subr.mxu0 0.0
        %2152 = vmatpush2.msra.mxu0 0.0
        %2153 = vmatprep.subr.mxu0 0.0
        %2154 = vmatpush2.msra.mxu0 0.0
        %2155 = vmatprep.subr.mxu0 0.0
        %2156 = vmatpush2.msra.mxu0 0.0
        %2157 = vmatprep.subr.mxu0 0.0
        %2158 = vmatpush2.msra.mxu0 0.0
        %2159 = vmatprep.subr.mxu0 0.0
        %2160 = vmatpush2.msra.mxu0 0.0
        %2161 = vmatprep.subr.mxu0 0.0
        %2162 = vmatpush2.msra.mxu0 0.0
        %2163 = vmatprep.subr.mxu0 0.0
        %2164 = vmatpush2.msra.mxu0 0.0
        %2165 = vmatprep.subr.mxu0 0.0
        %2166 = vmatpush2.msra.mxu0 0.0
        %2167 = vmatprep.mubr.f32.mxu0 0.0
        %2168 = vmatmul.mubr.f32.gmra.mxu0 %v1945
        %v2169 = vpop.f32.mrf.mxu0
        %v2170 = vadd.f32 %v1938, %v2169
        %v2171 = vpop.f32.mrf.mxu0
        %v2172 = vadd.f32 %v1938, %v2171
        %2173 = vmatprep.mubr.f32.mxu0 0.0
        %2174 = vmatmul.mubr.f32.gmra.mxu0 %v1947
        %v2175 = vpop.f32.mrf.mxu0
        %v2176 = vadd.f32 %v1942, %v2175
        %v2177 = vpop.f32.mrf.mxu0
        %v2178 = vadd.f32 %v1942, %v2177
        %2179 = vdwg.mxu0
        %2180 = vmatprep.subr.mxu0 0.0
        %2181 = vmatpush1.msra.mxu0 0.0
        %2182 = vmatprep.subr.mxu0 0.0
        %2183 = vmatpush1.msra.mxu0 0.0
        %2184 = vmatprep.subr.mxu0 0.0
        %2185 = vmatpush1.msra.mxu0 0.0
        %2186 = vmatprep.subr.mxu0 0.0
        %2187 = vmatpush1.msra.mxu0 0.0
        %2188 = vmatprep.subr.mxu0 0.0
        %2189 = vmatpush1.msra.mxu0 0.0
        %2190 = vmatprep.subr.mxu0 0.0
        %2191 = vmatpush1.msra.mxu0 0.0
        %2192 = vmatprep.subr.mxu0 0.0
        %2193 = vmatpush1.msra.mxu0 0.0
        %2194 = vmatprep.subr.mxu0 0.0
        %2195 = vmatpush1.msra.mxu0 0.0
        %2196 = vmatprep.subr.mxu0 0.0
        %2197 = vmatpush1.msra.mxu0 0.0
        %2198 = vmatprep.subr.mxu0 0.0
        %2199 = vmatpush1.msra.mxu0 0.0
        %2200 = vmatprep.subr.mxu0 0.0
        %2201 = vmatpush1.msra.mxu0 0.0
        %2202 = vmatprep.subr.mxu0 0.0
        %2203 = vmatpush1.msra.mxu0 0.0
        %2204 = vmatprep.subr.mxu0 0.0
        %2205 = vmatpush1.msra.mxu0 0.0
        %2206 = vmatprep.subr.mxu0 0.0
        %2207 = vmatpush1.msra.mxu0 0.0
        %2208 = vmatprep.subr.mxu0 %v1935
        %2209 = vmatpush1.msra.mxu0 %v1831
        %2210 = vmatprep.subr.mxu0 %v1103
        %2211 = vmatpush1.msra.mxu0 %v999
        %2212 = vmatprep.subr.mxu0 0.0
        %2213 = vmatpush2.msra.mxu0 0.0
        %2214 = vmatprep.subr.mxu0 0.0
        %2215 = vmatpush2.msra.mxu0 0.0
        %2216 = vmatprep.subr.mxu0 0.0
        %2217 = vmatpush2.msra.mxu0 0.0
        %2218 = vmatprep.subr.mxu0 0.0
        %2219 = vmatpush2.msra.mxu0 0.0
        %2220 = vmatprep.subr.mxu0 0.0
        %2221 = vmatpush2.msra.mxu0 0.0
        %2222 = vmatprep.subr.mxu0 0.0
        %2223 = vmatpush2.msra.mxu0 0.0
        %2224 = vmatprep.subr.mxu0 0.0
        %2225 = vmatpush2.msra.mxu0 0.0
        %2226 = vmatprep.subr.mxu0 0.0
        %2227 = vmatpush2.msra.mxu0 0.0
        %2228 = vmatprep.subr.mxu0 0.0
        %2229 = vmatpush2.msra.mxu0 0.0
        %2230 = vmatprep.subr.mxu0 0.0
        %2231 = vmatpush2.msra.mxu0 0.0
        %2232 = vmatprep.subr.mxu0 0.0
        %2233 = vmatpush2.msra.mxu0 0.0
        %2234 = vmatprep.subr.mxu0 0.0
        %2235 = vmatpush2.msra.mxu0 0.0
        %2236 = vmatprep.subr.mxu0 0.0
        %2237 = vmatpush2.msra.mxu0 0.0
        %2238 = vmatprep.subr.mxu0 0.0
        %2239 = vmatpush2.msra.mxu0 0.0
        %2240 = vmatprep.subr.mxu0 0.0
        %2241 = vmatpush2.msra.mxu0 0.0
        %2242 = vmatprep.subr.mxu0 0.0
        %2243 = vmatpush2.msra.mxu0 0.0
        %2244 = vmatprep.mubr.f32.mxu0 0.0
        %2245 = vmatmul.mubr.f32.gmra.mxu0 %v1945
        %v2246 = vpop.f32.mrf.mxu0
        %v2247 = vadd.f32 %v1938, %v2246
        %v2248 = vpop.f32.mrf.mxu0
        %v2249 = vadd.f32 %v1938, %v2248
        %2250 = vmatprep.mubr.f32.mxu0 0.0
        %2251 = vmatmul.mubr.f32.gmra.mxu0 %v1947
        %v2252 = vpop.f32.mrf.mxu0
        %v2253 = vadd.f32 %v1942, %v2252
        %v2254 = vpop.f32.mrf.mxu0
        %v2255 = vadd.f32 %v1942, %v2254
        %2256 = vdwg.mxu0
        %v2257 = vand.u32 2147483647, %v2016
        %vm2258 = vcmp.le.f32.partialorder %v2257, 0.7853982
        %vm2259 = vcmp.lt.s32.totalorder %v2016, 0
        %v2260 = vand.u32 %v2016, 2139095040
        %v2261 = vshrl.u32 %v2260, 23
        %v2262 = vsub.s32 %v2261, 127
        %v2263 = vand.u32 2147483647, %v2016
        %v2264 = vand.u32 %v2263, 8388607
        %v2265 = vor.u32 %v2264, 8388608
        %v2266 = vsub.s32 0, %v2265
        %v2267 = vadd.s32 %v2262, 1
        %vm2268 = vcmp.gt.s32.totalorder %v2267, 0
        %v2269 = vsel %vm2268, %v2267, 0
        %v2270 = vshrl.u32 %v2269, 5
        %v2271 = vand.u32 %v2269, 31
        %v2272 = vsub.s32 32, %v2271
        %v2273 = vshrl.u32 683565275, %v2272
        %v2274 = vshll.u32 683565275, %v2271
        %v2275 = vshrl.u32 2475754826, %v2272
        %v2276 = vor.u32 %v2274, %v2275
        %v2277 = vshll.u32 2475754826, %v2271
        %v2278 = vshrl.u32 2131351028, %v2272
        %v2279 = vor.u32 %v2277, %v2278
        %v2280 = vshll.u32 2131351028, %v2271
        %v2281 = vshrl.u32 2102212464, %v2272
        %v2282 = vor.u32 %v2280, %v2281
        %v2283 = vshll.u32 2102212464, %v2271
        %v2284 = vshrl.u32 920167782, %v2272
        %v2285 = vor.u32 %v2283, %v2284
        %v2286 = vshll.u32 920167782, %v2271
        %v2287 = vshrl.u32 1326507024, %v2272
        %v2288 = vor.u32 %v2286, %v2287
        %vm2289 = vcmp.lt.s32.totalorder %v2270, 1
        %vm2290 = vcmp.lt.s32.totalorder %v2270, 2
        %vm2291 = vcmp.lt.s32.totalorder %v2270, 3
        %vm2292 = vcmp.lt.s32.totalorder %v2270, 4
        %v2293 = vsel %vm2289, %v2273, %v2276
        %v2294 = vsel %vm2292, %v2282, 2102212464
        %v2295 = vsel %vm2291, %v2279, %v2294
        %v2296 = vsel %vm2290, %v2293, %v2295
        %v2297 = vsel %vm2289, %v2276, %v2279
        %v2298 = vsel %vm2292, %v2285, 920167782
        %v2299 = vsel %vm2291, %v2282, %v2298
        %v2300 = vsel %vm2290, %v2297, %v2299
        %v2301 = vsel %vm2289, %v2279, %v2282
        %v2302 = vsel %vm2292, %v2288, 1326507024
        %v2303 = vsel %vm2291, %v2285, %v2302
        %v2304 = vsel %vm2290, %v2301, %v2303
        %v2305 = vshll.u32 %v2265, 8
        %v2306 = vmul.u32.u64.compose %v2305, %v2304
        %v2307 = vextract.low.u32 %v2306
        %v2308 = vextract.high.u32 %v2306
        %v2309 = vmul.u32.u64.compose %v2305, %v2300
        %v2310 = vextract.low.u32 %v2309
        %v2311 = vextract.high.u32 %v2309
        %v2312 = vmul.u32 %v2305, %v2296
        %v2313 = vadd.s32 %v2308, %v2310
        %vm2314 = vc.u32 %v2308, %v2310
        %v2315 = vadd.s32 %v2311, 1
        %v2316 = vsel %vm2314, %v2315, %v2311
        %v2317 = vadd.s32 %v2312, %v2316
        %v2318 = vadd.s32 %v2317, 536870912
        %v2319 = vshrl.u32 %v2318, 30
        %v2320 = vshll.u32 %v2319, 30
        %v2321 = vsub.s32 %v2317, %v2320
        %vm2322 = vcmp.lt.s32.totalorder %v2321, 0
        %v2323 = vsub.s32 0, %v2321
        %v2324 = vsel %vm2322, %v2323, %v2321
        %v2325 = vclz %v2324
        %v2326 = vsub.s32 %v2325, 2
        %vm2327 = vcmp.gt.s32.totalorder 0, %v2326
        %v2328 = vsel %vm2327, 0, %v2326
        %v2329 = vsub.s32 32, %v2328
        %v2330 = vshll.u32 %v2321, %v2328
        %v2331 = vshrl.u32 %v2313, %v2329
        %v2332 = vor.u32 %v2330, %v2331
        %v2333 = vsub.s32 4294967266, %v2328
        %v2334 = vadd.s32 %v2333, 127
        %v2335 = vshll.u32 %v2334, 23
        %v2336 = vor.u32 4788187, %v2335
        %v2337 = vand.u32 2147483647, %v2336
        %v2339 = vcvt.s32.f32 %v2332
        %v2340 = vmul.f32 %v2339, %v2337
        %v2341 = vxor.u32 %v2340, 2147483648
        %v2342 = vsel %vm2259, %v2341, %v2340
        %v2343 = vsub.s32 4, %v2319
        %v2344 = vsel %vm2259, %v2343, %v2319
        %v2345 = vsel %vm2258, %v2016, %v2342
        %v2346 = vsel %vm2258, 0, %v2344
        %v2347 = vcosq.f32.pop %v2345
        %v2348 = vsinq.f32.pop %v2345
        %vm2349 = vweird.f32 %v2016
        %v2350 = vadd.s32 %v2346, 3
        %v2351 = vand.u32 %v2350, 3
        %vm2352 = vcmp.lt.s32.totalorder %v2351, 2
        %vm2353 = vcmp.eq.s32.totalorder %v2351, 0
        %v2354 = vxor.u32 %v2348, 2147483648
        %v2355 = vsel %vm2353, %v2347, %v2354
        %vm2356 = vcmp.eq.s32.totalorder %v2351, 2
        %v2357 = vxor.u32 %v2347, 2147483648
        %v2358 = vsel %vm2356, %v2357, %v2348
        %v2359 = vsel %vm2352, %v2355, %v2358
        %v2360 = vsel %vm2349, nan, %v2359
        %v2361 = vand.u32 2147483647, %v2018
        %vm2362 = vcmp.le.f32.partialorder %v2361, 0.7853982
        %vm2363 = vcmp.lt.s32.totalorder %v2018, 0
        %v2364 = vand.u32 %v2018, 2139095040
        %v2365 = vshrl.u32 %v2364, 23
        %v2366 = vsub.s32 %v2365, 127
        %v2367 = vand.u32 2147483647, %v2018
        %v2368 = vand.u32 %v2367, 8388607
        %v2369 = vor.u32 %v2368, 8388608
        %v2370 = vsub.s32 0, %v2369
        %v2371 = vadd.s32 %v2366, 1
        %vm2372 = vcmp.gt.s32.totalorder %v2371, 0
        %v2373 = vsel %vm2372, %v2371, 0
        %v2374 = vshrl.u32 %v2373, 5
        %v2375 = vand.u32 %v2373, 31
        %v2376 = vsub.s32 32, %v2375
        %v2377 = vshrl.u32 683565275, %v2376
        %v2378 = vshll.u32 683565275, %v2375
        %v2379 = vshrl.u32 2475754826, %v2376
        %v2380 = vor.u32 %v2378, %v2379
        %v2381 = vshll.u32 2475754826, %v2375
        %v2382 = vshrl.u32 2131351028, %v2376
        %v2383 = vor.u32 %v2381, %v2382
        %v2384 = vshll.u32 2131351028, %v2375
        %v2385 = vshrl.u32 2102212464, %v2376
        %v2386 = vor.u32 %v2384, %v2385
        %v2387 = vshll.u32 2102212464, %v2375
        %v2388 = vshrl.u32 920167782, %v2376
        %v2389 = vor.u32 %v2387, %v2388
        %v2390 = vshll.u32 920167782, %v2375
        %v2391 = vshrl.u32 1326507024, %v2376
        %v2392 = vor.u32 %v2390, %v2391
        %vm2393 = vcmp.lt.s32.totalorder %v2374, 1
        %vm2394 = vcmp.lt.s32.totalorder %v2374, 2
        %vm2395 = vcmp.lt.s32.totalorder %v2374, 3
        %vm2396 = vcmp.lt.s32.totalorder %v2374, 4
        %v2397 = vsel %vm2393, %v2377, %v2380
        %v2398 = vsel %vm2396, %v2386, 2102212464
        %v2399 = vsel %vm2395, %v2383, %v2398
        %v2400 = vsel %vm2394, %v2397, %v2399
        %v2401 = vsel %vm2393, %v2380, %v2383
        %v2402 = vsel %vm2396, %v2389, 920167782
        %v2403 = vsel %vm2395, %v2386, %v2402
        %v2404 = vsel %vm2394, %v2401, %v2403
        %v2405 = vsel %vm2393, %v2383, %v2386
        %v2406 = vsel %vm2396, %v2392, 1326507024
        %v2407 = vsel %vm2395, %v2389, %v2406
        %v2408 = vsel %vm2394, %v2405, %v2407
        %v2409 = vshll.u32 %v2369, 8
        %v2410 = vmul.u32.u64.compose %v2409, %v2408
        %v2411 = vextract.low.u32 %v2410
        %v2412 = vextract.high.u32 %v2410
        %v2413 = vmul.u32.u64.compose %v2409, %v2404
        %v2414 = vextract.low.u32 %v2413
        %v2415 = vextract.high.u32 %v2413
        %v2416 = vmul.u32 %v2409, %v2400
        %v2417 = vadd.s32 %v2412, %v2414
        %vm2418 = vc.u32 %v2412, %v2414
        %v2419 = vadd.s32 %v2415, 1
        %v2420 = vsel %vm2418, %v2419, %v2415
        %v2421 = vadd.s32 %v2416, %v2420
        %v2422 = vadd.s32 %v2421, 536870912
        %v2423 = vshrl.u32 %v2422, 30
        %v2424 = vshll.u32 %v2423, 30
        %v2425 = vsub.s32 %v2421, %v2424
        %vm2426 = vcmp.lt.s32.totalorder %v2425, 0
        %v2427 = vsub.s32 0, %v2425
        %v2428 = vsel %vm2426, %v2427, %v2425
        %v2429 = vclz %v2428
        %v2430 = vsub.s32 %v2429, 2
        %vm2431 = vcmp.gt.s32.totalorder 0, %v2430
        %v2432 = vsel %vm2431, 0, %v2430
        %v2433 = vsub.s32 32, %v2432
        %v2434 = vshll.u32 %v2425, %v2432
        %v2435 = vshrl.u32 %v2417, %v2433
        %v2436 = vor.u32 %v2434, %v2435
        %v2437 = vsub.s32 4294967266, %v2432
        %v2438 = vadd.s32 %v2437, 127
        %v2439 = vshll.u32 %v2438, 23
        %v2440 = vor.u32 4788187, %v2439
        %v2441 = vand.u32 2147483647, %v2440
        %v2443 = vcvt.s32.f32 %v2436
        %v2444 = vmul.f32 %v2443, %v2441
        %v2445 = vxor.u32 %v2444, 2147483648
        %v2446 = vsel %vm2363, %v2445, %v2444
        %v2447 = vsub.s32 4, %v2423
        %v2448 = vsel %vm2363, %v2447, %v2423
        %v2449 = vsel %vm2362, %v2018, %v2446
        %v2450 = vsel %vm2362, 0, %v2448
        %v2451 = vcosq.f32.pop %v2449
        %v2452 = vsinq.f32.pop %v2449
        %vm2453 = vweird.f32 %v2018
        %v2454 = vadd.s32 %v2450, 3
        %v2455 = vand.u32 %v2454, 3
        %vm2456 = vcmp.lt.s32.totalorder %v2455, 2
        %vm2457 = vcmp.eq.s32.totalorder %v2455, 0
        %v2458 = vxor.u32 %v2452, 2147483648
        %v2459 = vsel %vm2457, %v2451, %v2458
        %vm2460 = vcmp.eq.s32.totalorder %v2455, 2
        %v2461 = vxor.u32 %v2451, 2147483648
        %v2462 = vsel %vm2460, %v2461, %v2452
        %v2463 = vsel %vm2456, %v2459, %v2462
        %v2464 = vsel %vm2453, nan, %v2463
        %v2465 = vand.u32 2147483647, %v2093
        %vm2466 = vcmp.le.f32.partialorder %v2465, 0.7853982
        %vm2467 = vcmp.lt.s32.totalorder %v2093, 0
        %v2468 = vand.u32 %v2093, 2139095040
        %v2469 = vshrl.u32 %v2468, 23
        %v2470 = vsub.s32 %v2469, 127
        %v2471 = vand.u32 2147483647, %v2093
        %v2472 = vand.u32 %v2471, 8388607
        %v2473 = vor.u32 %v2472, 8388608
        %v2474 = vsub.s32 0, %v2473
        %v2475 = vadd.s32 %v2470, 1
        %vm2476 = vcmp.gt.s32.totalorder %v2475, 0
        %v2477 = vsel %vm2476, %v2475, 0
        %v2478 = vshrl.u32 %v2477, 5
        %v2479 = vand.u32 %v2477, 31
        %v2480 = vsub.s32 32, %v2479
        %v2481 = vshrl.u32 683565275, %v2480
        %v2482 = vshll.u32 683565275, %v2479
        %v2483 = vshrl.u32 2475754826, %v2480
        %v2484 = vor.u32 %v2482, %v2483
        %v2485 = vshll.u32 2475754826, %v2479
        %v2486 = vshrl.u32 2131351028, %v2480
        %v2487 = vor.u32 %v2485, %v2486
        %v2488 = vshll.u32 2131351028, %v2479
        %v2489 = vshrl.u32 2102212464, %v2480
        %v2490 = vor.u32 %v2488, %v2489
        %v2491 = vshll.u32 2102212464, %v2479
        %v2492 = vshrl.u32 920167782, %v2480
        %v2493 = vor.u32 %v2491, %v2492
        %v2494 = vshll.u32 920167782, %v2479
        %v2495 = vshrl.u32 1326507024, %v2480
        %v2496 = vor.u32 %v2494, %v2495
        %vm2497 = vcmp.lt.s32.totalorder %v2478, 1
        %vm2498 = vcmp.lt.s32.totalorder %v2478, 2
        %vm2499 = vcmp.lt.s32.totalorder %v2478, 3
        %vm2500 = vcmp.lt.s32.totalorder %v2478, 4
        %v2501 = vsel %vm2497, %v2481, %v2484
        %v2502 = vsel %vm2500, %v2490, 2102212464
        %v2503 = vsel %vm2499, %v2487, %v2502
        %v2504 = vsel %vm2498, %v2501, %v2503
        %v2505 = vsel %vm2497, %v2484, %v2487
        %v2506 = vsel %vm2500, %v2493, 920167782
        %v2507 = vsel %vm2499, %v2490, %v2506
        %v2508 = vsel %vm2498, %v2505, %v2507
        %v2509 = vsel %vm2497, %v2487, %v2490
        %v2510 = vsel %vm2500, %v2496, 1326507024
        %v2511 = vsel %vm2499, %v2493, %v2510
        %v2512 = vsel %vm2498, %v2509, %v2511
        %v2513 = vshll.u32 %v2473, 8
        %v2514 = vmul.u32.u64.compose %v2513, %v2512
        %v2515 = vextract.low.u32 %v2514
        %v2516 = vextract.high.u32 %v2514
        %v2517 = vmul.u32.u64.compose %v2513, %v2508
        %v2518 = vextract.low.u32 %v2517
        %v2519 = vextract.high.u32 %v2517
        %v2520 = vmul.u32 %v2513, %v2504
        %v2521 = vadd.s32 %v2516, %v2518
        %vm2522 = vc.u32 %v2516, %v2518
        %v2523 = vadd.s32 %v2519, 1
        %v2524 = vsel %vm2522, %v2523, %v2519
        %v2525 = vadd.s32 %v2520, %v2524
        %v2526 = vadd.s32 %v2525, 536870912
        %v2527 = vshrl.u32 %v2526, 30
        %v2528 = vshll.u32 %v2527, 30
        %v2529 = vsub.s32 %v2525, %v2528
        %vm2530 = vcmp.lt.s32.totalorder %v2529, 0
        %v2531 = vsub.s32 0, %v2529
        %v2532 = vsel %vm2530, %v2531, %v2529
        %v2533 = vclz %v2532
        %v2534 = vsub.s32 %v2533, 2
        %vm2535 = vcmp.gt.s32.totalorder 0, %v2534
        %v2536 = vsel %vm2535, 0, %v2534
        %v2537 = vsub.s32 32, %v2536
        %v2538 = vshll.u32 %v2529, %v2536
        %v2539 = vshrl.u32 %v2521, %v2537
        %v2540 = vor.u32 %v2538, %v2539
        %v2541 = vsub.s32 4294967266, %v2536
        %v2542 = vadd.s32 %v2541, 127
        %v2543 = vshll.u32 %v2542, 23
        %v2544 = vor.u32 4788187, %v2543
        %v2545 = vand.u32 2147483647, %v2544
        %v2547 = vcvt.s32.f32 %v2540
        %v2548 = vmul.f32 %v2547, %v2545
        %v2549 = vxor.u32 %v2548, 2147483648
        %v2550 = vsel %vm2467, %v2549, %v2548
        %v2551 = vsub.s32 4, %v2527
        %v2552 = vsel %vm2467, %v2551, %v2527
        %v2553 = vsel %vm2466, %v2093, %v2550
        %v2554 = vsel %vm2466, 0, %v2552
        %v2555 = vcosq.f32.pop %v2553
        %v2556 = vsinq.f32.pop %v2553
        %vm2557 = vweird.f32 %v2093
        %v2558 = vadd.s32 %v2554, 3
        %v2559 = vand.u32 %v2558, 3
        %vm2560 = vcmp.lt.s32.totalorder %v2559, 2
        %vm2561 = vcmp.eq.s32.totalorder %v2559, 0
        %v2562 = vxor.u32 %v2556, 2147483648
        %v2563 = vsel %vm2561, %v2555, %v2562
        %vm2564 = vcmp.eq.s32.totalorder %v2559, 2
        %v2565 = vxor.u32 %v2555, 2147483648
        %v2566 = vsel %vm2564, %v2565, %v2556
        %v2567 = vsel %vm2560, %v2563, %v2566
        %v2568 = vsel %vm2557, nan, %v2567
        %v2569 = vand.u32 2147483647, %v2095
        %vm2570 = vcmp.le.f32.partialorder %v2569, 0.7853982
        %vm2571 = vcmp.lt.s32.totalorder %v2095, 0
        %v2572 = vand.u32 %v2095, 2139095040
        %v2573 = vshrl.u32 %v2572, 23
        %v2574 = vsub.s32 %v2573, 127
        %v2575 = vand.u32 2147483647, %v2095
        %v2576 = vand.u32 %v2575, 8388607
        %v2577 = vor.u32 %v2576, 8388608
        %v2578 = vsub.s32 0, %v2577
        %v2579 = vadd.s32 %v2574, 1
        %vm2580 = vcmp.gt.s32.totalorder %v2579, 0
        %v2581 = vsel %vm2580, %v2579, 0
        %v2582 = vshrl.u32 %v2581, 5
        %v2583 = vand.u32 %v2581, 31
        %v2584 = vsub.s32 32, %v2583
        %v2585 = vshrl.u32 683565275, %v2584
        %v2586 = vshll.u32 683565275, %v2583
        %v2587 = vshrl.u32 2475754826, %v2584
        %v2588 = vor.u32 %v2586, %v2587
        %v2589 = vshll.u32 2475754826, %v2583
        %v2590 = vshrl.u32 2131351028, %v2584
        %v2591 = vor.u32 %v2589, %v2590
        %v2592 = vshll.u32 2131351028, %v2583
        %v2593 = vshrl.u32 2102212464, %v2584
        %v2594 = vor.u32 %v2592, %v2593
        %v2595 = vshll.u32 2102212464, %v2583
        %v2596 = vshrl.u32 920167782, %v2584
        %v2597 = vor.u32 %v2595, %v2596
        %v2598 = vshll.u32 920167782, %v2583
        %v2599 = vshrl.u32 1326507024, %v2584
        %v2600 = vor.u32 %v2598, %v2599
        %vm2601 = vcmp.lt.s32.totalorder %v2582, 1
        %vm2602 = vcmp.lt.s32.totalorder %v2582, 2
        %vm2603 = vcmp.lt.s32.totalorder %v2582, 3
        %vm2604 = vcmp.lt.s32.totalorder %v2582, 4
        %v2605 = vsel %vm2601, %v2585, %v2588
        %v2606 = vsel %vm2604, %v2594, 2102212464
        %v2607 = vsel %vm2603, %v2591, %v2606
        %v2608 = vsel %vm2602, %v2605, %v2607
        %v2609 = vsel %vm2601, %v2588, %v2591
        %v2610 = vsel %vm2604, %v2597, 920167782
        %v2611 = vsel %vm2603, %v2594, %v2610
        %v2612 = vsel %vm2602, %v2609, %v2611
        %v2613 = vsel %vm2601, %v2591, %v2594
        %v2614 = vsel %vm2604, %v2600, 1326507024
        %v2615 = vsel %vm2603, %v2597, %v2614
        %v2616 = vsel %vm2602, %v2613, %v2615
        %v2617 = vshll.u32 %v2577, 8
        %v2618 = vmul.u32.u64.compose %v2617, %v2616
        %v2619 = vextract.low.u32 %v2618
        %v2620 = vextract.high.u32 %v2618
        %v2621 = vmul.u32.u64.compose %v2617, %v2612
        %v2622 = vextract.low.u32 %v2621
        %v2623 = vextract.high.u32 %v2621
        %v2624 = vmul.u32 %v2617, %v2608
        %v2625 = vadd.s32 %v2620, %v2622
        %vm2626 = vc.u32 %v2620, %v2622
        %v2627 = vadd.s32 %v2623, 1
        %v2628 = vsel %vm2626, %v2627, %v2623
        %v2629 = vadd.s32 %v2624, %v2628
        %v2630 = vadd.s32 %v2629, 536870912
        %v2631 = vshrl.u32 %v2630, 30
        %v2632 = vshll.u32 %v2631, 30
        %v2633 = vsub.s32 %v2629, %v2632
        %vm2634 = vcmp.lt.s32.totalorder %v2633, 0
        %v2635 = vsub.s32 0, %v2633
        %v2636 = vsel %vm2634, %v2635, %v2633
        %v2637 = vclz %v2636
        %v2638 = vsub.s32 %v2637, 2
        %vm2639 = vcmp.gt.s32.totalorder 0, %v2638
        %v2640 = vsel %vm2639, 0, %v2638
        %v2641 = vsub.s32 32, %v2640
        %v2642 = vshll.u32 %v2633, %v2640
        %v2643 = vshrl.u32 %v2625, %v2641
        %v2644 = vor.u32 %v2642, %v2643
        %v2645 = vsub.s32 4294967266, %v2640
        %v2646 = vadd.s32 %v2645, 127
        %v2647 = vshll.u32 %v2646, 23
        %v2648 = vor.u32 4788187, %v2647
        %v2649 = vand.u32 2147483647, %v2648
        %v2651 = vcvt.s32.f32 %v2644
        %v2652 = vmul.f32 %v2651, %v2649
        %v2653 = vxor.u32 %v2652, 2147483648
        %v2654 = vsel %vm2571, %v2653, %v2652
        %v2655 = vsub.s32 4, %v2631
        %v2656 = vsel %vm2571, %v2655, %v2631
        %v2657 = vsel %vm2570, %v2095, %v2654
        %v2658 = vsel %vm2570, 0, %v2656
        %v2659 = vcosq.f32.pop %v2657
        %v2660 = vsinq.f32.pop %v2657
        %vm2661 = vweird.f32 %v2095
        %v2662 = vadd.s32 %v2658, 3
        %v2663 = vand.u32 %v2662, 3
        %vm2664 = vcmp.lt.s32.totalorder %v2663, 2
        %vm2665 = vcmp.eq.s32.totalorder %v2663, 0
        %v2666 = vxor.u32 %v2660, 2147483648
        %v2667 = vsel %vm2665, %v2659, %v2666
        %vm2668 = vcmp.eq.s32.totalorder %v2663, 2
        %v2669 = vxor.u32 %v2659, 2147483648
        %v2670 = vsel %vm2668, %v2669, %v2660
        %v2671 = vsel %vm2664, %v2667, %v2670
        %v2672 = vsel %vm2661, nan, %v2671
        %v2673 = vand.u32 2147483647, %v2170
        %vm2674 = vcmp.le.f32.partialorder %v2673, 0.7853982
        %vm2675 = vcmp.lt.s32.totalorder %v2170, 0
        %v2676 = vand.u32 %v2170, 2139095040
        %v2677 = vshrl.u32 %v2676, 23
        %v2678 = vsub.s32 %v2677, 127
        %v2679 = vand.u32 2147483647, %v2170
        %v2680 = vand.u32 %v2679, 8388607
        %v2681 = vor.u32 %v2680, 8388608
        %v2682 = vsub.s32 0, %v2681
        %v2683 = vadd.s32 %v2678, 1
        %vm2684 = vcmp.gt.s32.totalorder %v2683, 0
        %v2685 = vsel %vm2684, %v2683, 0
        %v2686 = vshrl.u32 %v2685, 5
        %v2687 = vand.u32 %v2685, 31
        %v2688 = vsub.s32 32, %v2687
        %v2689 = vshrl.u32 683565275, %v2688
        %v2690 = vshll.u32 683565275, %v2687
        %v2691 = vshrl.u32 2475754826, %v2688
        %v2692 = vor.u32 %v2690, %v2691
        %v2693 = vshll.u32 2475754826, %v2687
        %v2694 = vshrl.u32 2131351028, %v2688
        %v2695 = vor.u32 %v2693, %v2694
        %v2696 = vshll.u32 2131351028, %v2687
        %v2697 = vshrl.u32 2102212464, %v2688
        %v2698 = vor.u32 %v2696, %v2697
        %v2699 = vshll.u32 2102212464, %v2687
        %v2700 = vshrl.u32 920167782, %v2688
        %v2701 = vor.u32 %v2699, %v2700
        %v2702 = vshll.u32 920167782, %v2687
        %v2703 = vshrl.u32 1326507024, %v2688
        %v2704 = vor.u32 %v2702, %v2703
        %vm2705 = vcmp.lt.s32.totalorder %v2686, 1
        %vm2706 = vcmp.lt.s32.totalorder %v2686, 2
        %vm2707 = vcmp.lt.s32.totalorder %v2686, 3
        %vm2708 = vcmp.lt.s32.totalorder %v2686, 4
        %v2709 = vsel %vm2705, %v2689, %v2692
        %v2710 = vsel %vm2708, %v2698, 2102212464
        %v2711 = vsel %vm2707, %v2695, %v2710
        %v2712 = vsel %vm2706, %v2709, %v2711
        %v2713 = vsel %vm2705, %v2692, %v2695
        %v2714 = vsel %vm2708, %v2701, 920167782
        %v2715 = vsel %vm2707, %v2698, %v2714
        %v2716 = vsel %vm2706, %v2713, %v2715
        %v2717 = vsel %vm2705, %v2695, %v2698
        %v2718 = vsel %vm2708, %v2704, 1326507024
        %v2719 = vsel %vm2707, %v2701, %v2718
        %v2720 = vsel %vm2706, %v2717, %v2719
        %v2721 = vshll.u32 %v2681, 8
        %v2722 = vmul.u32.u64.compose %v2721, %v2720
        %v2723 = vextract.low.u32 %v2722
        %v2724 = vextract.high.u32 %v2722
        %v2725 = vmul.u32.u64.compose %v2721, %v2716
        %v2726 = vextract.low.u32 %v2725
        %v2727 = vextract.high.u32 %v2725
        %v2728 = vmul.u32 %v2721, %v2712
        %v2729 = vadd.s32 %v2724, %v2726
        %vm2730 = vc.u32 %v2724, %v2726
        %v2731 = vadd.s32 %v2727, 1
        %v2732 = vsel %vm2730, %v2731, %v2727
        %v2733 = vadd.s32 %v2728, %v2732
        %v2734 = vadd.s32 %v2733, 536870912
        %v2735 = vshrl.u32 %v2734, 30
        %v2736 = vshll.u32 %v2735, 30
        %v2737 = vsub.s32 %v2733, %v2736
        %vm2738 = vcmp.lt.s32.totalorder %v2737, 0
        %v2739 = vsub.s32 0, %v2737
        %v2740 = vsel %vm2738, %v2739, %v2737
        %v2741 = vclz %v2740
        %v2742 = vsub.s32 %v2741, 2
        %vm2743 = vcmp.gt.s32.totalorder 0, %v2742
        %v2744 = vsel %vm2743, 0, %v2742
        %v2745 = vsub.s32 32, %v2744
        %v2746 = vshll.u32 %v2737, %v2744
        %v2747 = vshrl.u32 %v2729, %v2745
        %v2748 = vor.u32 %v2746, %v2747
        %v2749 = vsub.s32 4294967266, %v2744
        %v2750 = vadd.s32 %v2749, 127
        %v2751 = vshll.u32 %v2750, 23
        %v2752 = vor.u32 4788187, %v2751
        %v2753 = vand.u32 2147483647, %v2752
        %v2755 = vcvt.s32.f32 %v2748
        %v2756 = vmul.f32 %v2755, %v2753
        %v2757 = vxor.u32 %v2756, 2147483648
        %v2758 = vsel %vm2675, %v2757, %v2756
        %v2759 = vsub.s32 4, %v2735
        %v2760 = vsel %vm2675, %v2759, %v2735
        %v2761 = vsel %vm2674, %v2170, %v2758
        %v2762 = vsel %vm2674, 0, %v2760
        %v2763 = vcosq.f32.pop %v2761
        %v2764 = vsinq.f32.pop %v2761
        %vm2765 = vweird.f32 %v2170
        %v2766 = vadd.s32 %v2762, 3
        %v2767 = vand.u32 %v2766, 3
        %vm2768 = vcmp.lt.s32.totalorder %v2767, 2
        %vm2769 = vcmp.eq.s32.totalorder %v2767, 0
        %v2770 = vxor.u32 %v2764, 2147483648
        %v2771 = vsel %vm2769, %v2763, %v2770
        %vm2772 = vcmp.eq.s32.totalorder %v2767, 2
        %v2773 = vxor.u32 %v2763, 2147483648
        %v2774 = vsel %vm2772, %v2773, %v2764
        %v2775 = vsel %vm2768, %v2771, %v2774
        %v2776 = vsel %vm2765, nan, %v2775
        %v2777 = vand.u32 2147483647, %v2172
        %vm2778 = vcmp.le.f32.partialorder %v2777, 0.7853982
        %vm2779 = vcmp.lt.s32.totalorder %v2172, 0
        %v2780 = vand.u32 %v2172, 2139095040
        %v2781 = vshrl.u32 %v2780, 23
        %v2782 = vsub.s32 %v2781, 127
        %v2783 = vand.u32 2147483647, %v2172
        %v2784 = vand.u32 %v2783, 8388607
        %v2785 = vor.u32 %v2784, 8388608
        %v2786 = vsub.s32 0, %v2785
        %v2787 = vadd.s32 %v2782, 1
        %vm2788 = vcmp.gt.s32.totalorder %v2787, 0
        %v2789 = vsel %vm2788, %v2787, 0
        %v2790 = vshrl.u32 %v2789, 5
        %v2791 = vand.u32 %v2789, 31
        %v2792 = vsub.s32 32, %v2791
        %v2793 = vshrl.u32 683565275, %v2792
        %v2794 = vshll.u32 683565275, %v2791
        %v2795 = vshrl.u32 2475754826, %v2792
        %v2796 = vor.u32 %v2794, %v2795
        %v2797 = vshll.u32 2475754826, %v2791
        %v2798 = vshrl.u32 2131351028, %v2792
        %v2799 = vor.u32 %v2797, %v2798
        %v2800 = vshll.u32 2131351028, %v2791
        %v2801 = vshrl.u32 2102212464, %v2792
        %v2802 = vor.u32 %v2800, %v2801
        %v2803 = vshll.u32 2102212464, %v2791
        %v2804 = vshrl.u32 920167782, %v2792
        %v2805 = vor.u32 %v2803, %v2804
        %v2806 = vshll.u32 920167782, %v2791
        %v2807 = vshrl.u32 1326507024, %v2792
        %v2808 = vor.u32 %v2806, %v2807
        %vm2809 = vcmp.lt.s32.totalorder %v2790, 1
        %vm2810 = vcmp.lt.s32.totalorder %v2790, 2
        %vm2811 = vcmp.lt.s32.totalorder %v2790, 3
        %vm2812 = vcmp.lt.s32.totalorder %v2790, 4
        %v2813 = vsel %vm2809, %v2793, %v2796
        %v2814 = vsel %vm2812, %v2802, 2102212464
        %v2815 = vsel %vm2811, %v2799, %v2814
        %v2816 = vsel %vm2810, %v2813, %v2815
        %v2817 = vsel %vm2809, %v2796, %v2799
        %v2818 = vsel %vm2812, %v2805, 920167782
        %v2819 = vsel %vm2811, %v2802, %v2818
        %v2820 = vsel %vm2810, %v2817, %v2819
        %v2821 = vsel %vm2809, %v2799, %v2802
        %v2822 = vsel %vm2812, %v2808, 1326507024
        %v2823 = vsel %vm2811, %v2805, %v2822
        %v2824 = vsel %vm2810, %v2821, %v2823
        %v2825 = vshll.u32 %v2785, 8
        %v2826 = vmul.u32.u64.compose %v2825, %v2824
        %v2827 = vextract.low.u32 %v2826
        %v2828 = vextract.high.u32 %v2826
        %v2829 = vmul.u32.u64.compose %v2825, %v2820
        %v2830 = vextract.low.u32 %v2829
        %v2831 = vextract.high.u32 %v2829
        %v2832 = vmul.u32 %v2825, %v2816
        %v2833 = vadd.s32 %v2828, %v2830
        %vm2834 = vc.u32 %v2828, %v2830
        %v2835 = vadd.s32 %v2831, 1
        %v2836 = vsel %vm2834, %v2835, %v2831
        %v2837 = vadd.s32 %v2832, %v2836
        %v2838 = vadd.s32 %v2837, 536870912
        %v2839 = vshrl.u32 %v2838, 30
        %v2840 = vshll.u32 %v2839, 30
        %v2841 = vsub.s32 %v2837, %v2840
        %vm2842 = vcmp.lt.s32.totalorder %v2841, 0
        %v2843 = vsub.s32 0, %v2841
        %v2844 = vsel %vm2842, %v2843, %v2841
        %v2845 = vclz %v2844
        %v2846 = vsub.s32 %v2845, 2
        %vm2847 = vcmp.gt.s32.totalorder 0, %v2846
        %v2848 = vsel %vm2847, 0, %v2846
        %v2849 = vsub.s32 32, %v2848
        %v2850 = vshll.u32 %v2841, %v2848
        %v2851 = vshrl.u32 %v2833, %v2849
        %v2852 = vor.u32 %v2850, %v2851
        %v2853 = vsub.s32 4294967266, %v2848
        %v2854 = vadd.s32 %v2853, 127
        %v2855 = vshll.u32 %v2854, 23
        %v2856 = vor.u32 4788187, %v2855
        %v2857 = vand.u32 2147483647, %v2856
        %v2859 = vcvt.s32.f32 %v2852
        %v2860 = vmul.f32 %v2859, %v2857
        %v2861 = vxor.u32 %v2860, 2147483648
        %v2862 = vsel %vm2779, %v2861, %v2860
        %v2863 = vsub.s32 4, %v2839
        %v2864 = vsel %vm2779, %v2863, %v2839
        %v2865 = vsel %vm2778, %v2172, %v2862
        %v2866 = vsel %vm2778, 0, %v2864
        %v2867 = vcosq.f32.pop %v2865
        %v2868 = vsinq.f32.pop %v2865
        %vm2869 = vweird.f32 %v2172
        %v2870 = vadd.s32 %v2866, 3
        %v2871 = vand.u32 %v2870, 3
        %vm2872 = vcmp.lt.s32.totalorder %v2871, 2
        %vm2873 = vcmp.eq.s32.totalorder %v2871, 0
        %v2874 = vxor.u32 %v2868, 2147483648
        %v2875 = vsel %vm2873, %v2867, %v2874
        %vm2876 = vcmp.eq.s32.totalorder %v2871, 2
        %v2877 = vxor.u32 %v2867, 2147483648
        %v2878 = vsel %vm2876, %v2877, %v2868
        %v2879 = vsel %vm2872, %v2875, %v2878
        %v2880 = vsel %vm2869, nan, %v2879
        %v2881 = vand.u32 2147483647, %v2247
        %vm2882 = vcmp.le.f32.partialorder %v2881, 0.7853982
        %vm2883 = vcmp.lt.s32.totalorder %v2247, 0
        %v2884 = vand.u32 %v2247, 2139095040
        %v2885 = vshrl.u32 %v2884, 23
        %v2886 = vsub.s32 %v2885, 127
        %v2887 = vand.u32 2147483647, %v2247
        %v2888 = vand.u32 %v2887, 8388607
        %v2889 = vor.u32 %v2888, 8388608
        %v2890 = vsub.s32 0, %v2889
        %v2891 = vadd.s32 %v2886, 1
        %vm2892 = vcmp.gt.s32.totalorder %v2891, 0
        %v2893 = vsel %vm2892, %v2891, 0
        %v2894 = vshrl.u32 %v2893, 5
        %v2895 = vand.u32 %v2893, 31
        %v2896 = vsub.s32 32, %v2895
        %v2897 = vshrl.u32 683565275, %v2896
        %v2898 = vshll.u32 683565275, %v2895
        %v2899 = vshrl.u32 2475754826, %v2896
        %v2900 = vor.u32 %v2898, %v2899
        %v2901 = vshll.u32 2475754826, %v2895
        %v2902 = vshrl.u32 2131351028, %v2896
        %v2903 = vor.u32 %v2901, %v2902
        %v2904 = vshll.u32 2131351028, %v2895
        %v2905 = vshrl.u32 2102212464, %v2896
        %v2906 = vor.u32 %v2904, %v2905
        %v2907 = vshll.u32 2102212464, %v2895
        %v2908 = vshrl.u32 920167782, %v2896
        %v2909 = vor.u32 %v2907, %v2908
        %v2910 = vshll.u32 920167782, %v2895
        %v2911 = vshrl.u32 1326507024, %v2896
        %v2912 = vor.u32 %v2910, %v2911
        %vm2913 = vcmp.lt.s32.totalorder %v2894, 1
        %vm2914 = vcmp.lt.s32.totalorder %v2894, 2
        %vm2915 = vcmp.lt.s32.totalorder %v2894, 3
        %vm2916 = vcmp.lt.s32.totalorder %v2894, 4
        %v2917 = vsel %vm2913, %v2897, %v2900
        %v2918 = vsel %vm2916, %v2906, 2102212464
        %v2919 = vsel %vm2915, %v2903, %v2918
        %v2920 = vsel %vm2914, %v2917, %v2919
        %v2921 = vsel %vm2913, %v2900, %v2903
        %v2922 = vsel %vm2916, %v2909, 920167782
        %v2923 = vsel %vm2915, %v2906, %v2922
        %v2924 = vsel %vm2914, %v2921, %v2923
        %v2925 = vsel %vm2913, %v2903, %v2906
        %v2926 = vsel %vm2916, %v2912, 1326507024
        %v2927 = vsel %vm2915, %v2909, %v2926
        %v2928 = vsel %vm2914, %v2925, %v2927
        %v2929 = vshll.u32 %v2889, 8
        %v2930 = vmul.u32.u64.compose %v2929, %v2928
        %v2931 = vextract.low.u32 %v2930
        %v2932 = vextract.high.u32 %v2930
        %v2933 = vmul.u32.u64.compose %v2929, %v2924
        %v2934 = vextract.low.u32 %v2933
        %v2935 = vextract.high.u32 %v2933
        %v2936 = vmul.u32 %v2929, %v2920
        %v2937 = vadd.s32 %v2932, %v2934
        %vm2938 = vc.u32 %v2932, %v2934
        %v2939 = vadd.s32 %v2935, 1
        %v2940 = vsel %vm2938, %v2939, %v2935
        %v2941 = vadd.s32 %v2936, %v2940
        %v2942 = vadd.s32 %v2941, 536870912
        %v2943 = vshrl.u32 %v2942, 30
        %v2944 = vshll.u32 %v2943, 30
        %v2945 = vsub.s32 %v2941, %v2944
        %vm2946 = vcmp.lt.s32.totalorder %v2945, 0
        %v2947 = vsub.s32 0, %v2945
        %v2948 = vsel %vm2946, %v2947, %v2945
        %v2949 = vclz %v2948
        %v2950 = vsub.s32 %v2949, 2
        %vm2951 = vcmp.gt.s32.totalorder 0, %v2950
        %v2952 = vsel %vm2951, 0, %v2950
        %v2953 = vsub.s32 32, %v2952
        %v2954 = vshll.u32 %v2945, %v2952
        %v2955 = vshrl.u32 %v2937, %v2953
        %v2956 = vor.u32 %v2954, %v2955
        %v2957 = vsub.s32 4294967266, %v2952
        %v2958 = vadd.s32 %v2957, 127
        %v2959 = vshll.u32 %v2958, 23
        %v2960 = vor.u32 4788187, %v2959
        %v2961 = vand.u32 2147483647, %v2960
        %v2963 = vcvt.s32.f32 %v2956
        %v2964 = vmul.f32 %v2963, %v2961
        %v2965 = vxor.u32 %v2964, 2147483648
        %v2966 = vsel %vm2883, %v2965, %v2964
        %v2967 = vsub.s32 4, %v2943
        %v2968 = vsel %vm2883, %v2967, %v2943
        %v2969 = vsel %vm2882, %v2247, %v2966
        %v2970 = vsel %vm2882, 0, %v2968
        %v2971 = vcosq.f32.pop %v2969
        %v2972 = vsinq.f32.pop %v2969
        %vm2973 = vweird.f32 %v2247
        %v2974 = vadd.s32 %v2970, 3
        %v2975 = vand.u32 %v2974, 3
        %vm2976 = vcmp.lt.s32.totalorder %v2975, 2
        %vm2977 = vcmp.eq.s32.totalorder %v2975, 0
        %v2978 = vxor.u32 %v2972, 2147483648
        %v2979 = vsel %vm2977, %v2971, %v2978
        %vm2980 = vcmp.eq.s32.totalorder %v2975, 2
        %v2981 = vxor.u32 %v2971, 2147483648
        %v2982 = vsel %vm2980, %v2981, %v2972
        %v2983 = vsel %vm2976, %v2979, %v2982
        %v2984 = vsel %vm2973, nan, %v2983
        %v2985 = vand.u32 2147483647, %v2249
        %vm2986 = vcmp.le.f32.partialorder %v2985, 0.7853982
        %vm2987 = vcmp.lt.s32.totalorder %v2249, 0
        %v2988 = vand.u32 %v2249, 2139095040
        %v2989 = vshrl.u32 %v2988, 23
        %v2990 = vsub.s32 %v2989, 127
        %v2991 = vand.u32 2147483647, %v2249
        %v2992 = vand.u32 %v2991, 8388607
        %v2993 = vor.u32 %v2992, 8388608
        %v2994 = vsub.s32 0, %v2993
        %v2995 = vadd.s32 %v2990, 1
        %vm2996 = vcmp.gt.s32.totalorder %v2995, 0
        %v2997 = vsel %vm2996, %v2995, 0
        %v2998 = vshrl.u32 %v2997, 5
        %v2999 = vand.u32 %v2997, 31
        %v3000 = vsub.s32 32, %v2999
        %v3001 = vshrl.u32 683565275, %v3000
        %v3002 = vshll.u32 683565275, %v2999
        %v3003 = vshrl.u32 2475754826, %v3000
        %v3004 = vor.u32 %v3002, %v3003
        %v3005 = vshll.u32 2475754826, %v2999
        %v3006 = vshrl.u32 2131351028, %v3000
        %v3007 = vor.u32 %v3005, %v3006
        %v3008 = vshll.u32 2131351028, %v2999
        %v3009 = vshrl.u32 2102212464, %v3000
        %v3010 = vor.u32 %v3008, %v3009
        %v3011 = vshll.u32 2102212464, %v2999
        %v3012 = vshrl.u32 920167782, %v3000
        %v3013 = vor.u32 %v3011, %v3012
        %v3014 = vshll.u32 920167782, %v2999
        %v3015 = vshrl.u32 1326507024, %v3000
        %v3016 = vor.u32 %v3014, %v3015
        %vm3017 = vcmp.lt.s32.totalorder %v2998, 1
        %vm3018 = vcmp.lt.s32.totalorder %v2998, 2
        %vm3019 = vcmp.lt.s32.totalorder %v2998, 3
        %vm3020 = vcmp.lt.s32.totalorder %v2998, 4
        %v3021 = vsel %vm3017, %v3001, %v3004
        %v3022 = vsel %vm3020, %v3010, 2102212464
        %v3023 = vsel %vm3019, %v3007, %v3022
        %v3024 = vsel %vm3018, %v3021, %v3023
        %v3025 = vsel %vm3017, %v3004, %v3007
        %v3026 = vsel %vm3020, %v3013, 920167782
        %v3027 = vsel %vm3019, %v3010, %v3026
        %v3028 = vsel %vm3018, %v3025, %v3027
        %v3029 = vsel %vm3017, %v3007, %v3010
        %v3030 = vsel %vm3020, %v3016, 1326507024
        %v3031 = vsel %vm3019, %v3013, %v3030
        %v3032 = vsel %vm3018, %v3029, %v3031
        %v3033 = vshll.u32 %v2993, 8
        %v3034 = vmul.u32.u64.compose %v3033, %v3032
        %v3035 = vextract.low.u32 %v3034
        %v3036 = vextract.high.u32 %v3034
        %v3037 = vmul.u32.u64.compose %v3033, %v3028
        %v3038 = vextract.low.u32 %v3037
        %v3039 = vextract.high.u32 %v3037
        %v3040 = vmul.u32 %v3033, %v3024
        %v3041 = vadd.s32 %v3036, %v3038
        %vm3042 = vc.u32 %v3036, %v3038
        %v3043 = vadd.s32 %v3039, 1
        %v3044 = vsel %vm3042, %v3043, %v3039
        %v3045 = vadd.s32 %v3040, %v3044
        %v3046 = vadd.s32 %v3045, 536870912
        %v3047 = vshrl.u32 %v3046, 30
        %v3048 = vshll.u32 %v3047, 30
        %v3049 = vsub.s32 %v3045, %v3048
        %vm3050 = vcmp.lt.s32.totalorder %v3049, 0
        %v3051 = vsub.s32 0, %v3049
        %v3052 = vsel %vm3050, %v3051, %v3049
        %v3053 = vclz %v3052
        %v3054 = vsub.s32 %v3053, 2
        %vm3055 = vcmp.gt.s32.totalorder 0, %v3054
        %v3056 = vsel %vm3055, 0, %v3054
        %v3057 = vsub.s32 32, %v3056
        %v3058 = vshll.u32 %v3049, %v3056
        %v3059 = vshrl.u32 %v3041, %v3057
        %v3060 = vor.u32 %v3058, %v3059
        %v3061 = vsub.s32 4294967266, %v3056
        %v3062 = vadd.s32 %v3061, 127
        %v3063 = vshll.u32 %v3062, 23
        %v3064 = vor.u32 4788187, %v3063
        %v3065 = vand.u32 2147483647, %v3064
        %v3067 = vcvt.s32.f32 %v3060
        %v3068 = vmul.f32 %v3067, %v3065
        %v3069 = vxor.u32 %v3068, 2147483648
        %v3070 = vsel %vm2987, %v3069, %v3068
        %v3071 = vsub.s32 4, %v3047
        %v3072 = vsel %vm2987, %v3071, %v3047
        %v3073 = vsel %vm2986, %v2249, %v3070
        %v3074 = vsel %vm2986, 0, %v3072
        %v3075 = vcosq.f32.pop %v3073
        %v3076 = vsinq.f32.pop %v3073
        %vm3077 = vweird.f32 %v2249
        %v3078 = vadd.s32 %v3074, 3
        %v3079 = vand.u32 %v3078, 3
        %vm3080 = vcmp.lt.s32.totalorder %v3079, 2
        %vm3081 = vcmp.eq.s32.totalorder %v3079, 0
        %v3082 = vxor.u32 %v3076, 2147483648
        %v3083 = vsel %vm3081, %v3075, %v3082
        %vm3084 = vcmp.eq.s32.totalorder %v3079, 2
        %v3085 = vxor.u32 %v3075, 2147483648
        %v3086 = vsel %vm3084, %v3085, %v3076
        %v3087 = vsel %vm3080, %v3083, %v3086
        %v3088 = vsel %vm3077, nan, %v3087
        %v3089 = vand.u32 2147483647, %v2022
        %vm3090 = vcmp.le.f32.partialorder %v3089, 0.7853982
        %vm3091 = vcmp.lt.s32.totalorder %v2022, 0
        %v3092 = vand.u32 %v2022, 2139095040
        %v3093 = vshrl.u32 %v3092, 23
        %v3094 = vsub.s32 %v3093, 127
        %v3095 = vand.u32 2147483647, %v2022
        %v3096 = vand.u32 %v3095, 8388607
        %v3097 = vor.u32 %v3096, 8388608
        %v3098 = vsub.s32 0, %v3097
        %v3099 = vadd.s32 %v3094, 1
        %vm3100 = vcmp.gt.s32.totalorder %v3099, 0
        %v3101 = vsel %vm3100, %v3099, 0
        %v3102 = vshrl.u32 %v3101, 5
        %v3103 = vand.u32 %v3101, 31
        %v3104 = vsub.s32 32, %v3103
        %v3105 = vshrl.u32 683565275, %v3104
        %v3106 = vshll.u32 683565275, %v3103
        %v3107 = vshrl.u32 2475754826, %v3104
        %v3108 = vor.u32 %v3106, %v3107
        %v3109 = vshll.u32 2475754826, %v3103
        %v3110 = vshrl.u32 2131351028, %v3104
        %v3111 = vor.u32 %v3109, %v3110
        %v3112 = vshll.u32 2131351028, %v3103
        %v3113 = vshrl.u32 2102212464, %v3104
        %v3114 = vor.u32 %v3112, %v3113
        %v3115 = vshll.u32 2102212464, %v3103
        %v3116 = vshrl.u32 920167782, %v3104
        %v3117 = vor.u32 %v3115, %v3116
        %v3118 = vshll.u32 920167782, %v3103
        %v3119 = vshrl.u32 1326507024, %v3104
        %v3120 = vor.u32 %v3118, %v3119
        %vm3121 = vcmp.lt.s32.totalorder %v3102, 1
        %vm3122 = vcmp.lt.s32.totalorder %v3102, 2
        %vm3123 = vcmp.lt.s32.totalorder %v3102, 3
        %vm3124 = vcmp.lt.s32.totalorder %v3102, 4
        %v3125 = vsel %vm3121, %v3105, %v3108
        %v3126 = vsel %vm3124, %v3114, 2102212464
        %v3127 = vsel %vm3123, %v3111, %v3126
        %v3128 = vsel %vm3122, %v3125, %v3127
        %v3129 = vsel %vm3121, %v3108, %v3111
        %v3130 = vsel %vm3124, %v3117, 920167782
        %v3131 = vsel %vm3123, %v3114, %v3130
        %v3132 = vsel %vm3122, %v3129, %v3131
        %v3133 = vsel %vm3121, %v3111, %v3114
        %v3134 = vsel %vm3124, %v3120, 1326507024
        %v3135 = vsel %vm3123, %v3117, %v3134
        %v3136 = vsel %vm3122, %v3133, %v3135
        %v3137 = vshll.u32 %v3097, 8
        %v3138 = vmul.u32.u64.compose %v3137, %v3136
        %v3139 = vextract.low.u32 %v3138
        %v3140 = vextract.high.u32 %v3138
        %v3141 = vmul.u32.u64.compose %v3137, %v3132
        %v3142 = vextract.low.u32 %v3141
        %v3143 = vextract.high.u32 %v3141
        %v3144 = vmul.u32 %v3137, %v3128
        %v3145 = vadd.s32 %v3140, %v3142
        %vm3146 = vc.u32 %v3140, %v3142
        %v3147 = vadd.s32 %v3143, 1
        %v3148 = vsel %vm3146, %v3147, %v3143
        %v3149 = vadd.s32 %v3144, %v3148
        %v3150 = vadd.s32 %v3149, 536870912
        %v3151 = vshrl.u32 %v3150, 30
        %v3152 = vshll.u32 %v3151, 30
        %v3153 = vsub.s32 %v3149, %v3152
        %vm3154 = vcmp.lt.s32.totalorder %v3153, 0
        %v3155 = vsub.s32 0, %v3153
        %v3156 = vsel %vm3154, %v3155, %v3153
        %v3157 = vclz %v3156
        %v3158 = vsub.s32 %v3157, 2
        %vm3159 = vcmp.gt.s32.totalorder 0, %v3158
        %v3160 = vsel %vm3159, 0, %v3158
        %v3161 = vsub.s32 32, %v3160
        %v3162 = vshll.u32 %v3153, %v3160
        %v3163 = vshrl.u32 %v3145, %v3161
        %v3164 = vor.u32 %v3162, %v3163
        %v3165 = vsub.s32 4294967266, %v3160
        %v3166 = vadd.s32 %v3165, 127
        %v3167 = vshll.u32 %v3166, 23
        %v3168 = vor.u32 4788187, %v3167
        %v3169 = vand.u32 2147483647, %v3168
        %v3171 = vcvt.s32.f32 %v3164
        %v3172 = vmul.f32 %v3171, %v3169
        %v3173 = vxor.u32 %v3172, 2147483648
        %v3174 = vsel %vm3091, %v3173, %v3172
        %v3175 = vsub.s32 4, %v3151
        %v3176 = vsel %vm3091, %v3175, %v3151
        %v3177 = vsel %vm3090, %v2022, %v3174
        %v3178 = vsel %vm3090, 0, %v3176
        %v3179 = vcosq.f32.pop %v3177
        %v3180 = vsinq.f32.pop %v3177
        %vm3181 = vweird.f32 %v2022
        %v3182 = vadd.s32 %v3178, 3
        %v3183 = vand.u32 %v3182, 3
        %vm3184 = vcmp.lt.s32.totalorder %v3183, 2
        %vm3185 = vcmp.eq.s32.totalorder %v3183, 0
        %v3186 = vxor.u32 %v3180, 2147483648
        %v3187 = vsel %vm3185, %v3179, %v3186
        %vm3188 = vcmp.eq.s32.totalorder %v3183, 2
        %v3189 = vxor.u32 %v3179, 2147483648
        %v3190 = vsel %vm3188, %v3189, %v3180
        %v3191 = vsel %vm3184, %v3187, %v3190
        %v3192 = vsel %vm3181, nan, %v3191
        %v3193 = vand.u32 2147483647, %v2024
        %vm3194 = vcmp.le.f32.partialorder %v3193, 0.7853982
        %vm3195 = vcmp.lt.s32.totalorder %v2024, 0
        %v3196 = vand.u32 %v2024, 2139095040
        %v3197 = vshrl.u32 %v3196, 23
        %v3198 = vsub.s32 %v3197, 127
        %v3199 = vand.u32 2147483647, %v2024
        %v3200 = vand.u32 %v3199, 8388607
        %v3201 = vor.u32 %v3200, 8388608
        %v3202 = vsub.s32 0, %v3201
        %v3203 = vadd.s32 %v3198, 1
        %vm3204 = vcmp.gt.s32.totalorder %v3203, 0
        %v3205 = vsel %vm3204, %v3203, 0
        %v3206 = vshrl.u32 %v3205, 5
        %v3207 = vand.u32 %v3205, 31
        %v3208 = vsub.s32 32, %v3207
        %v3209 = vshrl.u32 683565275, %v3208
        %v3210 = vshll.u32 683565275, %v3207
        %v3211 = vshrl.u32 2475754826, %v3208
        %v3212 = vor.u32 %v3210, %v3211
        %v3213 = vshll.u32 2475754826, %v3207
        %v3214 = vshrl.u32 2131351028, %v3208
        %v3215 = vor.u32 %v3213, %v3214
        %v3216 = vshll.u32 2131351028, %v3207
        %v3217 = vshrl.u32 2102212464, %v3208
        %v3218 = vor.u32 %v3216, %v3217
        %v3219 = vshll.u32 2102212464, %v3207
        %v3220 = vshrl.u32 920167782, %v3208
        %v3221 = vor.u32 %v3219, %v3220
        %v3222 = vshll.u32 920167782, %v3207
        %v3223 = vshrl.u32 1326507024, %v3208
        %v3224 = vor.u32 %v3222, %v3223
        %vm3225 = vcmp.lt.s32.totalorder %v3206, 1
        %vm3226 = vcmp.lt.s32.totalorder %v3206, 2
        %vm3227 = vcmp.lt.s32.totalorder %v3206, 3
        %vm3228 = vcmp.lt.s32.totalorder %v3206, 4
        %v3229 = vsel %vm3225, %v3209, %v3212
        %v3230 = vsel %vm3228, %v3218, 2102212464
        %v3231 = vsel %vm3227, %v3215, %v3230
        %v3232 = vsel %vm3226, %v3229, %v3231
        %v3233 = vsel %vm3225, %v3212, %v3215
        %v3234 = vsel %vm3228, %v3221, 920167782
        %v3235 = vsel %vm3227, %v3218, %v3234
        %v3236 = vsel %vm3226, %v3233, %v3235
        %v3237 = vsel %vm3225, %v3215, %v3218
        %v3238 = vsel %vm3228, %v3224, 1326507024
        %v3239 = vsel %vm3227, %v3221, %v3238
        %v3240 = vsel %vm3226, %v3237, %v3239
        %v3241 = vshll.u32 %v3201, 8
        %v3242 = vmul.u32.u64.compose %v3241, %v3240
        %v3243 = vextract.low.u32 %v3242
        %v3244 = vextract.high.u32 %v3242
        %v3245 = vmul.u32.u64.compose %v3241, %v3236
        %v3246 = vextract.low.u32 %v3245
        %v3247 = vextract.high.u32 %v3245
        %v3248 = vmul.u32 %v3241, %v3232
        %v3249 = vadd.s32 %v3244, %v3246
        %vm3250 = vc.u32 %v3244, %v3246
        %v3251 = vadd.s32 %v3247, 1
        %v3252 = vsel %vm3250, %v3251, %v3247
        %v3253 = vadd.s32 %v3248, %v3252
        %v3254 = vadd.s32 %v3253, 536870912
        %v3255 = vshrl.u32 %v3254, 30
        %v3256 = vshll.u32 %v3255, 30
        %v3257 = vsub.s32 %v3253, %v3256
        %vm3258 = vcmp.lt.s32.totalorder %v3257, 0
        %v3259 = vsub.s32 0, %v3257
        %v3260 = vsel %vm3258, %v3259, %v3257
        %v3261 = vclz %v3260
        %v3262 = vsub.s32 %v3261, 2
        %vm3263 = vcmp.gt.s32.totalorder 0, %v3262
        %v3264 = vsel %vm3263, 0, %v3262
        %v3265 = vsub.s32 32, %v3264
        %v3266 = vshll.u32 %v3257, %v3264
        %v3267 = vshrl.u32 %v3249, %v3265
        %v3268 = vor.u32 %v3266, %v3267
        %v3269 = vsub.s32 4294967266, %v3264
        %v3270 = vadd.s32 %v3269, 127
        %v3271 = vshll.u32 %v3270, 23
        %v3272 = vor.u32 4788187, %v3271
        %v3273 = vand.u32 2147483647, %v3272
        %v3275 = vcvt.s32.f32 %v3268
        %v3276 = vmul.f32 %v3275, %v3273
        %v3277 = vxor.u32 %v3276, 2147483648
        %v3278 = vsel %vm3195, %v3277, %v3276
        %v3279 = vsub.s32 4, %v3255
        %v3280 = vsel %vm3195, %v3279, %v3255
        %v3281 = vsel %vm3194, %v2024, %v3278
        %v3282 = vsel %vm3194, 0, %v3280
        %v3283 = vcosq.f32.pop %v3281
        %v3284 = vsinq.f32.pop %v3281
        %vm3285 = vweird.f32 %v2024
        %v3286 = vadd.s32 %v3282, 3
        %v3287 = vand.u32 %v3286, 3
        %vm3288 = vcmp.lt.s32.totalorder %v3287, 2
        %vm3289 = vcmp.eq.s32.totalorder %v3287, 0
        %v3290 = vxor.u32 %v3284, 2147483648
        %v3291 = vsel %vm3289, %v3283, %v3290
        %vm3292 = vcmp.eq.s32.totalorder %v3287, 2
        %v3293 = vxor.u32 %v3283, 2147483648
        %v3294 = vsel %vm3292, %v3293, %v3284
        %v3295 = vsel %vm3288, %v3291, %v3294
        %v3296 = vsel %vm3285, nan, %v3295
        %v3297 = vand.u32 2147483647, %v2099
        %vm3298 = vcmp.le.f32.partialorder %v3297, 0.7853982
        %vm3299 = vcmp.lt.s32.totalorder %v2099, 0
        %v3300 = vand.u32 %v2099, 2139095040
        %v3301 = vshrl.u32 %v3300, 23
        %v3302 = vsub.s32 %v3301, 127
        %v3303 = vand.u32 2147483647, %v2099
        %v3304 = vand.u32 %v3303, 8388607
        %v3305 = vor.u32 %v3304, 8388608
        %v3306 = vsub.s32 0, %v3305
        %v3307 = vadd.s32 %v3302, 1
        %vm3308 = vcmp.gt.s32.totalorder %v3307, 0
        %v3309 = vsel %vm3308, %v3307, 0
        %v3310 = vshrl.u32 %v3309, 5
        %v3311 = vand.u32 %v3309, 31
        %v3312 = vsub.s32 32, %v3311
        %v3313 = vshrl.u32 683565275, %v3312
        %v3314 = vshll.u32 683565275, %v3311
        %v3315 = vshrl.u32 2475754826, %v3312
        %v3316 = vor.u32 %v3314, %v3315
        %v3317 = vshll.u32 2475754826, %v3311
        %v3318 = vshrl.u32 2131351028, %v3312
        %v3319 = vor.u32 %v3317, %v3318
        %v3320 = vshll.u32 2131351028, %v3311
        %v3321 = vshrl.u32 2102212464, %v3312
        %v3322 = vor.u32 %v3320, %v3321
        %v3323 = vshll.u32 2102212464, %v3311
        %v3324 = vshrl.u32 920167782, %v3312
        %v3325 = vor.u32 %v3323, %v3324
        %v3326 = vshll.u32 920167782, %v3311
        %v3327 = vshrl.u32 1326507024, %v3312
        %v3328 = vor.u32 %v3326, %v3327
        %vm3329 = vcmp.lt.s32.totalorder %v3310, 1
        %vm3330 = vcmp.lt.s32.totalorder %v3310, 2
        %vm3331 = vcmp.lt.s32.totalorder %v3310, 3
        %vm3332 = vcmp.lt.s32.totalorder %v3310, 4
        %v3333 = vsel %vm3329, %v3313, %v3316
        %v3334 = vsel %vm3332, %v3322, 2102212464
        %v3335 = vsel %vm3331, %v3319, %v3334
        %v3336 = vsel %vm3330, %v3333, %v3335
        %v3337 = vsel %vm3329, %v3316, %v3319
        %v3338 = vsel %vm3332, %v3325, 920167782
        %v3339 = vsel %vm3331, %v3322, %v3338
        %v3340 = vsel %vm3330, %v3337, %v3339
        %v3341 = vsel %vm3329, %v3319, %v3322
        %v3342 = vsel %vm3332, %v3328, 1326507024
        %v3343 = vsel %vm3331, %v3325, %v3342
        %v3344 = vsel %vm3330, %v3341, %v3343
        %v3345 = vshll.u32 %v3305, 8
        %v3346 = vmul.u32.u64.compose %v3345, %v3344
        %v3347 = vextract.low.u32 %v3346
        %v3348 = vextract.high.u32 %v3346
        %v3349 = vmul.u32.u64.compose %v3345, %v3340
        %v3350 = vextract.low.u32 %v3349
        %v3351 = vextract.high.u32 %v3349
        %v3352 = vmul.u32 %v3345, %v3336
        %v3353 = vadd.s32 %v3348, %v3350
        %vm3354 = vc.u32 %v3348, %v3350
        %v3355 = vadd.s32 %v3351, 1
        %v3356 = vsel %vm3354, %v3355, %v3351
        %v3357 = vadd.s32 %v3352, %v3356
        %v3358 = vadd.s32 %v3357, 536870912
        %v3359 = vshrl.u32 %v3358, 30
        %v3360 = vshll.u32 %v3359, 30
        %v3361 = vsub.s32 %v3357, %v3360
        %vm3362 = vcmp.lt.s32.totalorder %v3361, 0
        %v3363 = vsub.s32 0, %v3361
        %v3364 = vsel %vm3362, %v3363, %v3361
        %v3365 = vclz %v3364
        %v3366 = vsub.s32 %v3365, 2
        %vm3367 = vcmp.gt.s32.totalorder 0, %v3366
        %v3368 = vsel %vm3367, 0, %v3366
        %v3369 = vsub.s32 32, %v3368
        %v3370 = vshll.u32 %v3361, %v3368
        %v3371 = vshrl.u32 %v3353, %v3369
        %v3372 = vor.u32 %v3370, %v3371
        %v3373 = vsub.s32 4294967266, %v3368
        %v3374 = vadd.s32 %v3373, 127
        %v3375 = vshll.u32 %v3374, 23
        %v3376 = vor.u32 4788187, %v3375
        %v3377 = vand.u32 2147483647, %v3376
        %v3379 = vcvt.s32.f32 %v3372
        %v3380 = vmul.f32 %v3379, %v3377
        %v3381 = vxor.u32 %v3380, 2147483648
        %v3382 = vsel %vm3299, %v3381, %v3380
        %v3383 = vsub.s32 4, %v3359
        %v3384 = vsel %vm3299, %v3383, %v3359
        %v3385 = vsel %vm3298, %v2099, %v3382
        %v3386 = vsel %vm3298, 0, %v3384
        %v3387 = vcosq.f32.pop %v3385
        %v3388 = vsinq.f32.pop %v3385
        %vm3389 = vweird.f32 %v2099
        %v3390 = vadd.s32 %v3386, 3
        %v3391 = vand.u32 %v3390, 3
        %vm3392 = vcmp.lt.s32.totalorder %v3391, 2
        %vm3393 = vcmp.eq.s32.totalorder %v3391, 0
        %v3394 = vxor.u32 %v3388, 2147483648
        %v3395 = vsel %vm3393, %v3387, %v3394
        %vm3396 = vcmp.eq.s32.totalorder %v3391, 2
        %v3397 = vxor.u32 %v3387, 2147483648
        %v3398 = vsel %vm3396, %v3397, %v3388
        %v3399 = vsel %vm3392, %v3395, %v3398
        %v3400 = vsel %vm3389, nan, %v3399
        %v3401 = vand.u32 2147483647, %v2101
        %vm3402 = vcmp.le.f32.partialorder %v3401, 0.7853982
        %vm3403 = vcmp.lt.s32.totalorder %v2101, 0
        %v3404 = vand.u32 %v2101, 2139095040
        %v3405 = vshrl.u32 %v3404, 23
        %v3406 = vsub.s32 %v3405, 127
        %v3407 = vand.u32 2147483647, %v2101
        %v3408 = vand.u32 %v3407, 8388607
        %v3409 = vor.u32 %v3408, 8388608
        %v3410 = vsub.s32 0, %v3409
        %v3411 = vadd.s32 %v3406, 1
        %vm3412 = vcmp.gt.s32.totalorder %v3411, 0
        %v3413 = vsel %vm3412, %v3411, 0
        %v3414 = vshrl.u32 %v3413, 5
        %v3415 = vand.u32 %v3413, 31
        %v3416 = vsub.s32 32, %v3415
        %v3417 = vshrl.u32 683565275, %v3416
        %v3418 = vshll.u32 683565275, %v3415
        %v3419 = vshrl.u32 2475754826, %v3416
        %v3420 = vor.u32 %v3418, %v3419
        %v3421 = vshll.u32 2475754826, %v3415
        %v3422 = vshrl.u32 2131351028, %v3416
        %v3423 = vor.u32 %v3421, %v3422
        %v3424 = vshll.u32 2131351028, %v3415
        %v3425 = vshrl.u32 2102212464, %v3416
        %v3426 = vor.u32 %v3424, %v3425
        %v3427 = vshll.u32 2102212464, %v3415
        %v3428 = vshrl.u32 920167782, %v3416
        %v3429 = vor.u32 %v3427, %v3428
        %v3430 = vshll.u32 920167782, %v3415
        %v3431 = vshrl.u32 1326507024, %v3416
        %v3432 = vor.u32 %v3430, %v3431
        %vm3433 = vcmp.lt.s32.totalorder %v3414, 1
        %vm3434 = vcmp.lt.s32.totalorder %v3414, 2
        %vm3435 = vcmp.lt.s32.totalorder %v3414, 3
        %vm3436 = vcmp.lt.s32.totalorder %v3414, 4
        %v3437 = vsel %vm3433, %v3417, %v3420
        %v3438 = vsel %vm3436, %v3426, 2102212464
        %v3439 = vsel %vm3435, %v3423, %v3438
        %v3440 = vsel %vm3434, %v3437, %v3439
        %v3441 = vsel %vm3433, %v3420, %v3423
        %v3442 = vsel %vm3436, %v3429, 920167782
        %v3443 = vsel %vm3435, %v3426, %v3442
        %v3444 = vsel %vm3434, %v3441, %v3443
        %v3445 = vsel %vm3433, %v3423, %v3426
        %v3446 = vsel %vm3436, %v3432, 1326507024
        %v3447 = vsel %vm3435, %v3429, %v3446
        %v3448 = vsel %vm3434, %v3445, %v3447
        %v3449 = vshll.u32 %v3409, 8
        %v3450 = vmul.u32.u64.compose %v3449, %v3448
        %v3451 = vextract.low.u32 %v3450
        %v3452 = vextract.high.u32 %v3450
        %v3453 = vmul.u32.u64.compose %v3449, %v3444
        %v3454 = vextract.low.u32 %v3453
        %v3455 = vextract.high.u32 %v3453
        %v3456 = vmul.u32 %v3449, %v3440
        %v3457 = vadd.s32 %v3452, %v3454
        %vm3458 = vc.u32 %v3452, %v3454
        %v3459 = vadd.s32 %v3455, 1
        %v3460 = vsel %vm3458, %v3459, %v3455
        %v3461 = vadd.s32 %v3456, %v3460
        %v3462 = vadd.s32 %v3461, 536870912
        %v3463 = vshrl.u32 %v3462, 30
        %v3464 = vshll.u32 %v3463, 30
        %v3465 = vsub.s32 %v3461, %v3464
        %vm3466 = vcmp.lt.s32.totalorder %v3465, 0
        %v3467 = vsub.s32 0, %v3465
        %v3468 = vsel %vm3466, %v3467, %v3465
        %v3469 = vclz %v3468
        %v3470 = vsub.s32 %v3469, 2
        %vm3471 = vcmp.gt.s32.totalorder 0, %v3470
        %v3472 = vsel %vm3471, 0, %v3470
        %v3473 = vsub.s32 32, %v3472
        %v3474 = vshll.u32 %v3465, %v3472
        %v3475 = vshrl.u32 %v3457, %v3473
        %v3476 = vor.u32 %v3474, %v3475
        %v3477 = vsub.s32 4294967266, %v3472
        %v3478 = vadd.s32 %v3477, 127
        %v3479 = vshll.u32 %v3478, 23
        %v3480 = vor.u32 4788187, %v3479
        %v3481 = vand.u32 2147483647, %v3480
        %v3483 = vcvt.s32.f32 %v3476
        %v3484 = vmul.f32 %v3483, %v3481
        %v3485 = vxor.u32 %v3484, 2147483648
        %v3486 = vsel %vm3403, %v3485, %v3484
        %v3487 = vsub.s32 4, %v3463
        %v3488 = vsel %vm3403, %v3487, %v3463
        %v3489 = vsel %vm3402, %v2101, %v3486
        %v3490 = vsel %vm3402, 0, %v3488
        %v3491 = vcosq.f32.pop %v3489
        %v3492 = vsinq.f32.pop %v3489
        %vm3493 = vweird.f32 %v2101
        %v3494 = vadd.s32 %v3490, 3
        %v3495 = vand.u32 %v3494, 3
        %vm3496 = vcmp.lt.s32.totalorder %v3495, 2
        %vm3497 = vcmp.eq.s32.totalorder %v3495, 0
        %v3498 = vxor.u32 %v3492, 2147483648
        %v3499 = vsel %vm3497, %v3491, %v3498
        %vm3500 = vcmp.eq.s32.totalorder %v3495, 2
        %v3501 = vxor.u32 %v3491, 2147483648
        %v3502 = vsel %vm3500, %v3501, %v3492
        %v3503 = vsel %vm3496, %v3499, %v3502
        %v3504 = vsel %vm3493, nan, %v3503
        %v3505 = vand.u32 2147483647, %v2176
        %vm3506 = vcmp.le.f32.partialorder %v3505, 0.7853982
        %vm3507 = vcmp.lt.s32.totalorder %v2176, 0
        %v3508 = vand.u32 %v2176, 2139095040
        %v3509 = vshrl.u32 %v3508, 23
        %v3510 = vsub.s32 %v3509, 127
        %v3511 = vand.u32 2147483647, %v2176
        %v3512 = vand.u32 %v3511, 8388607
        %v3513 = vor.u32 %v3512, 8388608
        %v3514 = vsub.s32 0, %v3513
        %v3515 = vadd.s32 %v3510, 1
        %vm3516 = vcmp.gt.s32.totalorder %v3515, 0
        %v3517 = vsel %vm3516, %v3515, 0
        %v3518 = vshrl.u32 %v3517, 5
        %v3519 = vand.u32 %v3517, 31
        %v3520 = vsub.s32 32, %v3519
        %v3521 = vshrl.u32 683565275, %v3520
        %v3522 = vshll.u32 683565275, %v3519
        %v3523 = vshrl.u32 2475754826, %v3520
        %v3524 = vor.u32 %v3522, %v3523
        %v3525 = vshll.u32 2475754826, %v3519
        %v3526 = vshrl.u32 2131351028, %v3520
        %v3527 = vor.u32 %v3525, %v3526
        %v3528 = vshll.u32 2131351028, %v3519
        %v3529 = vshrl.u32 2102212464, %v3520
        %v3530 = vor.u32 %v3528, %v3529
        %v3531 = vshll.u32 2102212464, %v3519
        %v3532 = vshrl.u32 920167782, %v3520
        %v3533 = vor.u32 %v3531, %v3532
        %v3534 = vshll.u32 920167782, %v3519
        %v3535 = vshrl.u32 1326507024, %v3520
        %v3536 = vor.u32 %v3534, %v3535
        %vm3537 = vcmp.lt.s32.totalorder %v3518, 1
        %vm3538 = vcmp.lt.s32.totalorder %v3518, 2
        %vm3539 = vcmp.lt.s32.totalorder %v3518, 3
        %vm3540 = vcmp.lt.s32.totalorder %v3518, 4
        %v3541 = vsel %vm3537, %v3521, %v3524
        %v3542 = vsel %vm3540, %v3530, 2102212464
        %v3543 = vsel %vm3539, %v3527, %v3542
        %v3544 = vsel %vm3538, %v3541, %v3543
        %v3545 = vsel %vm3537, %v3524, %v3527
        %v3546 = vsel %vm3540, %v3533, 920167782
        %v3547 = vsel %vm3539, %v3530, %v3546
        %v3548 = vsel %vm3538, %v3545, %v3547
        %v3549 = vsel %vm3537, %v3527, %v3530
        %v3550 = vsel %vm3540, %v3536, 1326507024
        %v3551 = vsel %vm3539, %v3533, %v3550
        %v3552 = vsel %vm3538, %v3549, %v3551
        %v3553 = vshll.u32 %v3513, 8
        %v3554 = vmul.u32.u64.compose %v3553, %v3552
        %v3555 = vextract.low.u32 %v3554
        %v3556 = vextract.high.u32 %v3554
        %v3557 = vmul.u32.u64.compose %v3553, %v3548
        %v3558 = vextract.low.u32 %v3557
        %v3559 = vextract.high.u32 %v3557
        %v3560 = vmul.u32 %v3553, %v3544
        %v3561 = vadd.s32 %v3556, %v3558
        %vm3562 = vc.u32 %v3556, %v3558
        %v3563 = vadd.s32 %v3559, 1
        %v3564 = vsel %vm3562, %v3563, %v3559
        %v3565 = vadd.s32 %v3560, %v3564
        %v3566 = vadd.s32 %v3565, 536870912
        %v3567 = vshrl.u32 %v3566, 30
        %v3568 = vshll.u32 %v3567, 30
        %v3569 = vsub.s32 %v3565, %v3568
        %vm3570 = vcmp.lt.s32.totalorder %v3569, 0
        %v3571 = vsub.s32 0, %v3569
        %v3572 = vsel %vm3570, %v3571, %v3569
        %v3573 = vclz %v3572
        %v3574 = vsub.s32 %v3573, 2
        %vm3575 = vcmp.gt.s32.totalorder 0, %v3574
        %v3576 = vsel %vm3575, 0, %v3574
        %v3577 = vsub.s32 32, %v3576
        %v3578 = vshll.u32 %v3569, %v3576
        %v3579 = vshrl.u32 %v3561, %v3577
        %v3580 = vor.u32 %v3578, %v3579
        %v3581 = vsub.s32 4294967266, %v3576
        %v3582 = vadd.s32 %v3581, 127
        %v3583 = vshll.u32 %v3582, 23
        %v3584 = vor.u32 4788187, %v3583
        %v3585 = vand.u32 2147483647, %v3584
        %v3587 = vcvt.s32.f32 %v3580
        %v3588 = vmul.f32 %v3587, %v3585
        %v3589 = vxor.u32 %v3588, 2147483648
        %v3590 = vsel %vm3507, %v3589, %v3588
        %v3591 = vsub.s32 4, %v3567
        %v3592 = vsel %vm3507, %v3591, %v3567
        %v3593 = vsel %vm3506, %v2176, %v3590
        %v3594 = vsel %vm3506, 0, %v3592
        %v3595 = vcosq.f32.pop %v3593
        %v3596 = vsinq.f32.pop %v3593
        %vm3597 = vweird.f32 %v2176
        %v3598 = vadd.s32 %v3594, 3
        %v3599 = vand.u32 %v3598, 3
        %vm3600 = vcmp.lt.s32.totalorder %v3599, 2
        %vm3601 = vcmp.eq.s32.totalorder %v3599, 0
        %v3602 = vxor.u32 %v3596, 2147483648
        %v3603 = vsel %vm3601, %v3595, %v3602
        %vm3604 = vcmp.eq.s32.totalorder %v3599, 2
        %v3605 = vxor.u32 %v3595, 2147483648
        %v3606 = vsel %vm3604, %v3605, %v3596
        %v3607 = vsel %vm3600, %v3603, %v3606
        %v3608 = vsel %vm3597, nan, %v3607
        %v3609 = vand.u32 2147483647, %v2178
        %vm3610 = vcmp.le.f32.partialorder %v3609, 0.7853982
        %vm3611 = vcmp.lt.s32.totalorder %v2178, 0
        %v3612 = vand.u32 %v2178, 2139095040
        %v3613 = vshrl.u32 %v3612, 23
        %v3614 = vsub.s32 %v3613, 127
        %v3615 = vand.u32 2147483647, %v2178
        %v3616 = vand.u32 %v3615, 8388607
        %v3617 = vor.u32 %v3616, 8388608
        %v3618 = vsub.s32 0, %v3617
        %v3619 = vadd.s32 %v3614, 1
        %vm3620 = vcmp.gt.s32.totalorder %v3619, 0
        %v3621 = vsel %vm3620, %v3619, 0
        %v3622 = vshrl.u32 %v3621, 5
        %v3623 = vand.u32 %v3621, 31
        %v3624 = vsub.s32 32, %v3623
        %v3625 = vshrl.u32 683565275, %v3624
        %v3626 = vshll.u32 683565275, %v3623
        %v3627 = vshrl.u32 2475754826, %v3624
        %v3628 = vor.u32 %v3626, %v3627
        %v3629 = vshll.u32 2475754826, %v3623
        %v3630 = vshrl.u32 2131351028, %v3624
        %v3631 = vor.u32 %v3629, %v3630
        %v3632 = vshll.u32 2131351028, %v3623
        %v3633 = vshrl.u32 2102212464, %v3624
        %v3634 = vor.u32 %v3632, %v3633
        %v3635 = vshll.u32 2102212464, %v3623
        %v3636 = vshrl.u32 920167782, %v3624
        %v3637 = vor.u32 %v3635, %v3636
        %v3638 = vshll.u32 920167782, %v3623
        %v3639 = vshrl.u32 1326507024, %v3624
        %v3640 = vor.u32 %v3638, %v3639
        %vm3641 = vcmp.lt.s32.totalorder %v3622, 1
        %vm3642 = vcmp.lt.s32.totalorder %v3622, 2
        %vm3643 = vcmp.lt.s32.totalorder %v3622, 3
        %vm3644 = vcmp.lt.s32.totalorder %v3622, 4
        %v3645 = vsel %vm3641, %v3625, %v3628
        %v3646 = vsel %vm3644, %v3634, 2102212464
        %v3647 = vsel %vm3643, %v3631, %v3646
        %v3648 = vsel %vm3642, %v3645, %v3647
        %v3649 = vsel %vm3641, %v3628, %v3631
        %v3650 = vsel %vm3644, %v3637, 920167782
        %v3651 = vsel %vm3643, %v3634, %v3650
        %v3652 = vsel %vm3642, %v3649, %v3651
        %v3653 = vsel %vm3641, %v3631, %v3634
        %v3654 = vsel %vm3644, %v3640, 1326507024
        %v3655 = vsel %vm3643, %v3637, %v3654
        %v3656 = vsel %vm3642, %v3653, %v3655
        %v3657 = vshll.u32 %v3617, 8
        %v3658 = vmul.u32.u64.compose %v3657, %v3656
        %v3659 = vextract.low.u32 %v3658
        %v3660 = vextract.high.u32 %v3658
        %v3661 = vmul.u32.u64.compose %v3657, %v3652
        %v3662 = vextract.low.u32 %v3661
        %v3663 = vextract.high.u32 %v3661
        %v3664 = vmul.u32 %v3657, %v3648
        %v3665 = vadd.s32 %v3660, %v3662
        %vm3666 = vc.u32 %v3660, %v3662
        %v3667 = vadd.s32 %v3663, 1
        %v3668 = vsel %vm3666, %v3667, %v3663
        %v3669 = vadd.s32 %v3664, %v3668
        %v3670 = vadd.s32 %v3669, 536870912
        %v3671 = vshrl.u32 %v3670, 30
        %v3672 = vshll.u32 %v3671, 30
        %v3673 = vsub.s32 %v3669, %v3672
        %vm3674 = vcmp.lt.s32.totalorder %v3673, 0
        %v3675 = vsub.s32 0, %v3673
        %v3676 = vsel %vm3674, %v3675, %v3673
        %v3677 = vclz %v3676
        %v3678 = vsub.s32 %v3677, 2
        %vm3679 = vcmp.gt.s32.totalorder 0, %v3678
        %v3680 = vsel %vm3679, 0, %v3678
        %v3681 = vsub.s32 32, %v3680
        %v3682 = vshll.u32 %v3673, %v3680
        %v3683 = vshrl.u32 %v3665, %v3681
        %v3684 = vor.u32 %v3682, %v3683
        %v3685 = vsub.s32 4294967266, %v3680
        %v3686 = vadd.s32 %v3685, 127
        %v3687 = vshll.u32 %v3686, 23
        %v3688 = vor.u32 4788187, %v3687
        %v3689 = vand.u32 2147483647, %v3688
        %v3691 = vcvt.s32.f32 %v3684
        %v3692 = vmul.f32 %v3691, %v3689
        %v3693 = vxor.u32 %v3692, 2147483648
        %v3694 = vsel %vm3611, %v3693, %v3692
        %v3695 = vsub.s32 4, %v3671
        %v3696 = vsel %vm3611, %v3695, %v3671
        %v3697 = vsel %vm3610, %v2178, %v3694
        %v3698 = vsel %vm3610, 0, %v3696
        %v3699 = vcosq.f32.pop %v3697
        %v3700 = vsinq.f32.pop %v3697
        %vm3701 = vweird.f32 %v2178
        %v3702 = vadd.s32 %v3698, 3
        %v3703 = vand.u32 %v3702, 3
        %vm3704 = vcmp.lt.s32.totalorder %v3703, 2
        %vm3705 = vcmp.eq.s32.totalorder %v3703, 0
        %v3706 = vxor.u32 %v3700, 2147483648
        %v3707 = vsel %vm3705, %v3699, %v3706
        %vm3708 = vcmp.eq.s32.totalorder %v3703, 2
        %v3709 = vxor.u32 %v3699, 2147483648
        %v3710 = vsel %vm3708, %v3709, %v3700
        %v3711 = vsel %vm3704, %v3707, %v3710
        %v3712 = vsel %vm3701, nan, %v3711
        %v3713 = vand.u32 2147483647, %v2253
        %vm3714 = vcmp.le.f32.partialorder %v3713, 0.7853982
        %vm3715 = vcmp.lt.s32.totalorder %v2253, 0
        %v3716 = vand.u32 %v2253, 2139095040
        %v3717 = vshrl.u32 %v3716, 23
        %v3718 = vsub.s32 %v3717, 127
        %v3719 = vand.u32 2147483647, %v2253
        %v3720 = vand.u32 %v3719, 8388607
        %v3721 = vor.u32 %v3720, 8388608
        %v3722 = vsub.s32 0, %v3721
        %v3723 = vadd.s32 %v3718, 1
        %vm3724 = vcmp.gt.s32.totalorder %v3723, 0
        %v3725 = vsel %vm3724, %v3723, 0
        %v3726 = vshrl.u32 %v3725, 5
        %v3727 = vand.u32 %v3725, 31
        %v3728 = vsub.s32 32, %v3727
        %v3729 = vshrl.u32 683565275, %v3728
        %v3730 = vshll.u32 683565275, %v3727
        %v3731 = vshrl.u32 2475754826, %v3728
        %v3732 = vor.u32 %v3730, %v3731
        %v3733 = vshll.u32 2475754826, %v3727
        %v3734 = vshrl.u32 2131351028, %v3728
        %v3735 = vor.u32 %v3733, %v3734
        %v3736 = vshll.u32 2131351028, %v3727
        %v3737 = vshrl.u32 2102212464, %v3728
        %v3738 = vor.u32 %v3736, %v3737
        %v3739 = vshll.u32 2102212464, %v3727
        %v3740 = vshrl.u32 920167782, %v3728
        %v3741 = vor.u32 %v3739, %v3740
        %v3742 = vshll.u32 920167782, %v3727
        %v3743 = vshrl.u32 1326507024, %v3728
        %v3744 = vor.u32 %v3742, %v3743
        %vm3745 = vcmp.lt.s32.totalorder %v3726, 1
        %vm3746 = vcmp.lt.s32.totalorder %v3726, 2
        %vm3747 = vcmp.lt.s32.totalorder %v3726, 3
        %vm3748 = vcmp.lt.s32.totalorder %v3726, 4
        %v3749 = vsel %vm3745, %v3729, %v3732
        %v3750 = vsel %vm3748, %v3738, 2102212464
        %v3751 = vsel %vm3747, %v3735, %v3750
        %v3752 = vsel %vm3746, %v3749, %v3751
        %v3753 = vsel %vm3745, %v3732, %v3735
        %v3754 = vsel %vm3748, %v3741, 920167782
        %v3755 = vsel %vm3747, %v3738, %v3754
        %v3756 = vsel %vm3746, %v3753, %v3755
        %v3757 = vsel %vm3745, %v3735, %v3738
        %v3758 = vsel %vm3748, %v3744, 1326507024
        %v3759 = vsel %vm3747, %v3741, %v3758
        %v3760 = vsel %vm3746, %v3757, %v3759
        %v3761 = vshll.u32 %v3721, 8
        %v3762 = vmul.u32.u64.compose %v3761, %v3760
        %v3763 = vextract.low.u32 %v3762
        %v3764 = vextract.high.u32 %v3762
        %v3765 = vmul.u32.u64.compose %v3761, %v3756
        %v3766 = vextract.low.u32 %v3765
        %v3767 = vextract.high.u32 %v3765
        %v3768 = vmul.u32 %v3761, %v3752
        %v3769 = vadd.s32 %v3764, %v3766
        %vm3770 = vc.u32 %v3764, %v3766
        %v3771 = vadd.s32 %v3767, 1
        %v3772 = vsel %vm3770, %v3771, %v3767
        %v3773 = vadd.s32 %v3768, %v3772
        %v3774 = vadd.s32 %v3773, 536870912
        %v3775 = vshrl.u32 %v3774, 30
        %v3776 = vshll.u32 %v3775, 30
        %v3777 = vsub.s32 %v3773, %v3776
        %vm3778 = vcmp.lt.s32.totalorder %v3777, 0
        %v3779 = vsub.s32 0, %v3777
        %v3780 = vsel %vm3778, %v3779, %v3777
        %v3781 = vclz %v3780
        %v3782 = vsub.s32 %v3781, 2
        %vm3783 = vcmp.gt.s32.totalorder 0, %v3782
        %v3784 = vsel %vm3783, 0, %v3782
        %v3785 = vsub.s32 32, %v3784
        %v3786 = vshll.u32 %v3777, %v3784
        %v3787 = vshrl.u32 %v3769, %v3785
        %v3788 = vor.u32 %v3786, %v3787
        %v3789 = vsub.s32 4294967266, %v3784
        %v3790 = vadd.s32 %v3789, 127
        %v3791 = vshll.u32 %v3790, 23
        %v3792 = vor.u32 4788187, %v3791
        %v3793 = vand.u32 2147483647, %v3792
        %v3795 = vcvt.s32.f32 %v3788
        %v3796 = vmul.f32 %v3795, %v3793
        %v3797 = vxor.u32 %v3796, 2147483648
        %v3798 = vsel %vm3715, %v3797, %v3796
        %v3799 = vsub.s32 4, %v3775
        %v3800 = vsel %vm3715, %v3799, %v3775
        %v3801 = vsel %vm3714, %v2253, %v3798
        %v3802 = vsel %vm3714, 0, %v3800
        %v3803 = vcosq.f32.pop %v3801
        %v3804 = vsinq.f32.pop %v3801
        %vm3805 = vweird.f32 %v2253
        %v3806 = vadd.s32 %v3802, 3
        %v3807 = vand.u32 %v3806, 3
        %vm3808 = vcmp.lt.s32.totalorder %v3807, 2
        %vm3809 = vcmp.eq.s32.totalorder %v3807, 0
        %v3810 = vxor.u32 %v3804, 2147483648
        %v3811 = vsel %vm3809, %v3803, %v3810
        %vm3812 = vcmp.eq.s32.totalorder %v3807, 2
        %v3813 = vxor.u32 %v3803, 2147483648
        %v3814 = vsel %vm3812, %v3813, %v3804
        %v3815 = vsel %vm3808, %v3811, %v3814
        %v3816 = vsel %vm3805, nan, %v3815
        %v3817 = vand.u32 2147483647, %v2255
        %vm3818 = vcmp.le.f32.partialorder %v3817, 0.7853982
        %vm3819 = vcmp.lt.s32.totalorder %v2255, 0
        %v3820 = vand.u32 %v2255, 2139095040
        %v3821 = vshrl.u32 %v3820, 23
        %v3822 = vsub.s32 %v3821, 127
        %v3823 = vand.u32 2147483647, %v2255
        %v3824 = vand.u32 %v3823, 8388607
        %v3825 = vor.u32 %v3824, 8388608
        %v3826 = vsub.s32 0, %v3825
        %v3827 = vadd.s32 %v3822, 1
        %vm3828 = vcmp.gt.s32.totalorder %v3827, 0
        %v3829 = vsel %vm3828, %v3827, 0
        %v3830 = vshrl.u32 %v3829, 5
        %v3831 = vand.u32 %v3829, 31
        %v3832 = vsub.s32 32, %v3831
        %v3833 = vshrl.u32 683565275, %v3832
        %v3834 = vshll.u32 683565275, %v3831
        %v3835 = vshrl.u32 2475754826, %v3832
        %v3836 = vor.u32 %v3834, %v3835
        %v3837 = vshll.u32 2475754826, %v3831
        %v3838 = vshrl.u32 2131351028, %v3832
        %v3839 = vor.u32 %v3837, %v3838
        %v3840 = vshll.u32 2131351028, %v3831
        %v3841 = vshrl.u32 2102212464, %v3832
        %v3842 = vor.u32 %v3840, %v3841
        %v3843 = vshll.u32 2102212464, %v3831
        %v3844 = vshrl.u32 920167782, %v3832
        %v3845 = vor.u32 %v3843, %v3844
        %v3846 = vshll.u32 920167782, %v3831
        %v3847 = vshrl.u32 1326507024, %v3832
        %v3848 = vor.u32 %v3846, %v3847
        %vm3849 = vcmp.lt.s32.totalorder %v3830, 1
        %vm3850 = vcmp.lt.s32.totalorder %v3830, 2
        %vm3851 = vcmp.lt.s32.totalorder %v3830, 3
        %vm3852 = vcmp.lt.s32.totalorder %v3830, 4
        %v3853 = vsel %vm3849, %v3833, %v3836
        %v3854 = vsel %vm3852, %v3842, 2102212464
        %v3855 = vsel %vm3851, %v3839, %v3854
        %v3856 = vsel %vm3850, %v3853, %v3855
        %v3857 = vsel %vm3849, %v3836, %v3839
        %v3858 = vsel %vm3852, %v3845, 920167782
        %v3859 = vsel %vm3851, %v3842, %v3858
        %v3860 = vsel %vm3850, %v3857, %v3859
        %v3861 = vsel %vm3849, %v3839, %v3842
        %v3862 = vsel %vm3852, %v3848, 1326507024
        %v3863 = vsel %vm3851, %v3845, %v3862
        %v3864 = vsel %vm3850, %v3861, %v3863
        %v3865 = vshll.u32 %v3825, 8
        %v3866 = vmul.u32.u64.compose %v3865, %v3864
        %v3867 = vextract.low.u32 %v3866
        %v3868 = vextract.high.u32 %v3866
        %v3869 = vmul.u32.u64.compose %v3865, %v3860
        %v3870 = vextract.low.u32 %v3869
        %v3871 = vextract.high.u32 %v3869
        %v3872 = vmul.u32 %v3865, %v3856
        %v3873 = vadd.s32 %v3868, %v3870
        %vm3874 = vc.u32 %v3868, %v3870
        %v3875 = vadd.s32 %v3871, 1
        %v3876 = vsel %vm3874, %v3875, %v3871
        %v3877 = vadd.s32 %v3872, %v3876
        %v3878 = vadd.s32 %v3877, 536870912
        %v3879 = vshrl.u32 %v3878, 30
        %v3880 = vshll.u32 %v3879, 30
        %v3881 = vsub.s32 %v3877, %v3880
        %vm3882 = vcmp.lt.s32.totalorder %v3881, 0
        %v3883 = vsub.s32 0, %v3881
        %v3884 = vsel %vm3882, %v3883, %v3881
        %v3885 = vclz %v3884
        %v3886 = vsub.s32 %v3885, 2
        %vm3887 = vcmp.gt.s32.totalorder 0, %v3886
        %v3888 = vsel %vm3887, 0, %v3886
        %v3889 = vsub.s32 32, %v3888
        %v3890 = vshll.u32 %v3881, %v3888
        %v3891 = vshrl.u32 %v3873, %v3889
        %v3892 = vor.u32 %v3890, %v3891
        %v3893 = vsub.s32 4294967266, %v3888
        %v3894 = vadd.s32 %v3893, 127
        %v3895 = vshll.u32 %v3894, 23
        %v3896 = vor.u32 4788187, %v3895
        %v3897 = vand.u32 2147483647, %v3896
        %v3899 = vcvt.s32.f32 %v3892
        %v3900 = vmul.f32 %v3899, %v3897
        %v3901 = vxor.u32 %v3900, 2147483648
        %v3902 = vsel %vm3819, %v3901, %v3900
        %v3903 = vsub.s32 4, %v3879
        %v3904 = vsel %vm3819, %v3903, %v3879
        %v3905 = vsel %vm3818, %v2255, %v3902
        %v3906 = vsel %vm3818, 0, %v3904
        %v3907 = vcosq.f32.pop %v3905
        %v3908 = vsinq.f32.pop %v3905
        %vm3909 = vweird.f32 %v2255
        %v3910 = vadd.s32 %v3906, 3
        %v3911 = vand.u32 %v3910, 3
        %vm3912 = vcmp.lt.s32.totalorder %v3911, 2
        %vm3913 = vcmp.eq.s32.totalorder %v3911, 0
        %v3914 = vxor.u32 %v3908, 2147483648
        %v3915 = vsel %vm3913, %v3907, %v3914
        %vm3916 = vcmp.eq.s32.totalorder %v3911, 2
        %v3917 = vxor.u32 %v3907, 2147483648
        %v3918 = vsel %vm3916, %v3917, %v3908
        %v3919 = vsel %vm3912, %v3915, %v3918
        %v3920 = vsel %vm3909, nan, %v3919
        %3922 = vset.pattern.permute.xlu0 16
        %3923 = vperm.xlu0 %3922, %v180
        %v3924 = vpop.permute.xlu0 %3923
        %v3926 = vsel %vm1944, %v180, 0
        %3928 = vmatprep.subr.mxu0 0.0
        %3929 = vmatpush1.msra.mxu0 0.0
        %3930 = vmatprep.subr.mxu0 0.0
        %3931 = vmatpush1.msra.mxu0 0.0
        %3932 = vmatprep.subr.mxu0 0.0
        %3933 = vmatpush1.msra.mxu0 0.0
        %3934 = vmatprep.subr.mxu0 0.0
        %3935 = vmatpush1.msra.mxu0 0.0
        %3936 = vmatprep.subr.mxu0 0.0
        %3937 = vmatpush1.msra.mxu0 0.0
        %3938 = vmatprep.subr.mxu0 0.0
        %3939 = vmatpush1.msra.mxu0 0.0
        %3940 = vmatprep.subr.mxu0 0.0
        %3941 = vmatpush1.msra.mxu0 0.0
        %3942 = vmatprep.subr.mxu0 0.0
        %3943 = vmatpush1.msra.mxu0 0.0
        %3944 = vmatprep.subr.mxu0 0.0
        %3945 = vmatpush1.msra.mxu0 0.0
        %3946 = vmatprep.subr.mxu0 0.0
        %3947 = vmatpush1.msra.mxu0 0.0
        %3948 = vmatprep.subr.mxu0 0.0
        %3949 = vmatpush1.msra.mxu0 0.0
        %3950 = vmatprep.subr.mxu0 0.0
        %3951 = vmatpush1.msra.mxu0 0.0
        %3952 = vmatprep.subr.mxu0 0.0
        %3953 = vmatpush1.msra.mxu0 0.0
        %3954 = vmatprep.subr.mxu0 0.0
        %3955 = vmatpush1.msra.mxu0 0.0
        %3956 = vmatprep.subr.mxu0 %v3296
        %3957 = vmatpush1.msra.mxu0 %v3192
        %3958 = vmatprep.subr.mxu0 %v2464
        %3959 = vmatpush1.msra.mxu0 %v2360
        %3960 = vmatprep.subr.mxu0 0.0
        %3961 = vmatpush2.msra.mxu0 0.0
        %3962 = vmatprep.subr.mxu0 0.0
        %3963 = vmatpush2.msra.mxu0 0.0
        %3964 = vmatprep.subr.mxu0 0.0
        %3965 = vmatpush2.msra.mxu0 0.0
        %3966 = vmatprep.subr.mxu0 0.0
        %3967 = vmatpush2.msra.mxu0 0.0
        %3968 = vmatprep.subr.mxu0 0.0
        %3969 = vmatpush2.msra.mxu0 0.0
        %3970 = vmatprep.subr.mxu0 0.0
        %3971 = vmatpush2.msra.mxu0 0.0
        %3972 = vmatprep.subr.mxu0 0.0
        %3973 = vmatpush2.msra.mxu0 0.0
        %3974 = vmatprep.subr.mxu0 0.0
        %3975 = vmatpush2.msra.mxu0 0.0
        %3976 = vmatprep.subr.mxu0 0.0
        %3977 = vmatpush2.msra.mxu0 0.0
        %3978 = vmatprep.subr.mxu0 0.0
        %3979 = vmatpush2.msra.mxu0 0.0
        %3980 = vmatprep.subr.mxu0 0.0
        %3981 = vmatpush2.msra.mxu0 0.0
        %3982 = vmatprep.subr.mxu0 0.0
        %3983 = vmatpush2.msra.mxu0 0.0
        %3984 = vmatprep.subr.mxu0 0.0
        %3985 = vmatpush2.msra.mxu0 0.0
        %3986 = vmatprep.subr.mxu0 0.0
        %3987 = vmatpush2.msra.mxu0 0.0
        %3988 = vmatprep.subr.mxu0 0.0
        %3989 = vmatpush2.msra.mxu0 0.0
        %3990 = vmatprep.subr.mxu0 0.0
        %3991 = vmatpush2.msra.mxu0 0.0
        %3992 = vmatprep.mubr.f32.mxu0 0.0
        %3993 = vmatmul.mubr.f32.gmra.mxu0 %v3926
        %v3994 = vpop.f32.mrf.mxu0
        %v3995 = vadd.f32 %v3924, %v3994
        %v3996 = vpop.f32.mrf.mxu0
        %v3997 = vadd.f32 %v3924, %v3996
        %3998 = vdwg.mxu0
        %3999 = vmatprep.subr.mxu0 0.0
        %4000 = vmatpush1.msra.mxu0 0.0
        %4001 = vmatprep.subr.mxu0 0.0
        %4002 = vmatpush1.msra.mxu0 0.0
        %4003 = vmatprep.subr.mxu0 0.0
        %4004 = vmatpush1.msra.mxu0 0.0
        %4005 = vmatprep.subr.mxu0 0.0
        %4006 = vmatpush1.msra.mxu0 0.0
        %4007 = vmatprep.subr.mxu0 0.0
        %4008 = vmatpush1.msra.mxu0 0.0
        %4009 = vmatprep.subr.mxu0 0.0
        %4010 = vmatpush1.msra.mxu0 0.0
        %4011 = vmatprep.subr.mxu0 0.0
        %4012 = vmatpush1.msra.mxu0 0.0
        %4013 = vmatprep.subr.mxu0 0.0
        %4014 = vmatpush1.msra.mxu0 0.0
        %4015 = vmatprep.subr.mxu0 0.0
        %4016 = vmatpush1.msra.mxu0 0.0
        %4017 = vmatprep.subr.mxu0 0.0
        %4018 = vmatpush1.msra.mxu0 0.0
        %4019 = vmatprep.subr.mxu0 0.0
        %4020 = vmatpush1.msra.mxu0 0.0
        %4021 = vmatprep.subr.mxu0 0.0
        %4022 = vmatpush1.msra.mxu0 0.0
        %4023 = vmatprep.subr.mxu0 0.0
        %4024 = vmatpush1.msra.mxu0 0.0
        %4025 = vmatprep.subr.mxu0 0.0
        %4026 = vmatpush1.msra.mxu0 0.0
        %4027 = vmatprep.subr.mxu0 %v3504
        %4028 = vmatpush1.msra.mxu0 %v3400
        %4029 = vmatprep.subr.mxu0 %v2672
        %4030 = vmatpush1.msra.mxu0 %v2568
        %4031 = vmatprep.subr.mxu0 0.0
        %4032 = vmatpush2.msra.mxu0 0.0
        %4033 = vmatprep.subr.mxu0 0.0
        %4034 = vmatpush2.msra.mxu0 0.0
        %4035 = vmatprep.subr.mxu0 0.0
        %4036 = vmatpush2.msra.mxu0 0.0
        %4037 = vmatprep.subr.mxu0 0.0
        %4038 = vmatpush2.msra.mxu0 0.0
        %4039 = vmatprep.subr.mxu0 0.0
        %4040 = vmatpush2.msra.mxu0 0.0
        %4041 = vmatprep.subr.mxu0 0.0
        %4042 = vmatpush2.msra.mxu0 0.0
        %4043 = vmatprep.subr.mxu0 0.0
        %4044 = vmatpush2.msra.mxu0 0.0
        %4045 = vmatprep.subr.mxu0 0.0
        %4046 = vmatpush2.msra.mxu0 0.0
        %4047 = vmatprep.subr.mxu0 0.0
        %4048 = vmatpush2.msra.mxu0 0.0
        %4049 = vmatprep.subr.mxu0 0.0
        %4050 = vmatpush2.msra.mxu0 0.0
        %4051 = vmatprep.subr.mxu0 0.0
        %4052 = vmatpush2.msra.mxu0 0.0
        %4053 = vmatprep.subr.mxu0 0.0
        %4054 = vmatpush2.msra.mxu0 0.0
        %4055 = vmatprep.subr.mxu0 0.0
        %4056 = vmatpush2.msra.mxu0 0.0
        %4057 = vmatprep.subr.mxu0 0.0
        %4058 = vmatpush2.msra.mxu0 0.0
        %4059 = vmatprep.subr.mxu0 0.0
        %4060 = vmatpush2.msra.mxu0 0.0
        %4061 = vmatprep.subr.mxu0 0.0
        %4062 = vmatpush2.msra.mxu0 0.0
        %4063 = vmatprep.mubr.f32.mxu0 0.0
        %4064 = vmatmul.mubr.f32.gmra.mxu0 %v3926
        %v4065 = vpop.f32.mrf.mxu0
        %v4066 = vadd.f32 %v3924, %v4065
        %v4067 = vpop.f32.mrf.mxu0
        %v4068 = vadd.f32 %v3924, %v4067
        %4069 = vdwg.mxu0
        %4070 = vmatprep.subr.mxu0 0.0
        %4071 = vmatpush1.msra.mxu0 0.0
        %4072 = vmatprep.subr.mxu0 0.0
        %4073 = vmatpush1.msra.mxu0 0.0
        %4074 = vmatprep.subr.mxu0 0.0
        %4075 = vmatpush1.msra.mxu0 0.0
        %4076 = vmatprep.subr.mxu0 0.0
        %4077 = vmatpush1.msra.mxu0 0.0
        %4078 = vmatprep.subr.mxu0 0.0
        %4079 = vmatpush1.msra.mxu0 0.0
        %4080 = vmatprep.subr.mxu0 0.0
        %4081 = vmatpush1.msra.mxu0 0.0
        %4082 = vmatprep.subr.mxu0 0.0
        %4083 = vmatpush1.msra.mxu0 0.0
        %4084 = vmatprep.subr.mxu0 0.0
        %4085 = vmatpush1.msra.mxu0 0.0
        %4086 = vmatprep.subr.mxu0 0.0
        %4087 = vmatpush1.msra.mxu0 0.0
        %4088 = vmatprep.subr.mxu0 0.0
        %4089 = vmatpush1.msra.mxu0 0.0
        %4090 = vmatprep.subr.mxu0 0.0
        %4091 = vmatpush1.msra.mxu0 0.0
        %4092 = vmatprep.subr.mxu0 0.0
        %4093 = vmatpush1.msra.mxu0 0.0
        %4094 = vmatprep.subr.mxu0 0.0
        %4095 = vmatpush1.msra.mxu0 0.0
        %4096 = vmatprep.subr.mxu0 0.0
        %4097 = vmatpush1.msra.mxu0 0.0
        %4098 = vmatprep.subr.mxu0 %v3712
        %4099 = vmatpush1.msra.mxu0 %v3608
        %4100 = vmatprep.subr.mxu0 %v2880
        %4101 = vmatpush1.msra.mxu0 %v2776
        %4102 = vmatprep.subr.mxu0 0.0
        %4103 = vmatpush2.msra.mxu0 0.0
        %4104 = vmatprep.subr.mxu0 0.0
        %4105 = vmatpush2.msra.mxu0 0.0
        %4106 = vmatprep.subr.mxu0 0.0
        %4107 = vmatpush2.msra.mxu0 0.0
        %4108 = vmatprep.subr.mxu0 0.0
        %4109 = vmatpush2.msra.mxu0 0.0
        %4110 = vmatprep.subr.mxu0 0.0
        %4111 = vmatpush2.msra.mxu0 0.0
        %4112 = vmatprep.subr.mxu0 0.0
        %4113 = vmatpush2.msra.mxu0 0.0
        %4114 = vmatprep.subr.mxu0 0.0
        %4115 = vmatpush2.msra.mxu0 0.0
        %4116 = vmatprep.subr.mxu0 0.0
        %4117 = vmatpush2.msra.mxu0 0.0
        %4118 = vmatprep.subr.mxu0 0.0
        %4119 = vmatpush2.msra.mxu0 0.0
        %4120 = vmatprep.subr.mxu0 0.0
        %4121 = vmatpush2.msra.mxu0 0.0
        %4122 = vmatprep.subr.mxu0 0.0
        %4123 = vmatpush2.msra.mxu0 0.0
        %4124 = vmatprep.subr.mxu0 0.0
        %4125 = vmatpush2.msra.mxu0 0.0
        %4126 = vmatprep.subr.mxu0 0.0
        %4127 = vmatpush2.msra.mxu0 0.0
        %4128 = vmatprep.subr.mxu0 0.0
        %4129 = vmatpush2.msra.mxu0 0.0
        %4130 = vmatprep.subr.mxu0 0.0
        %4131 = vmatpush2.msra.mxu0 0.0
        %4132 = vmatprep.subr.mxu0 0.0
        %4133 = vmatpush2.msra.mxu0 0.0
        %4134 = vmatprep.mubr.f32.mxu0 0.0
        %4135 = vmatmul.mubr.f32.gmra.mxu0 %v3926
        %v4136 = vpop.f32.mrf.mxu0
        %v4137 = vadd.f32 %v3924, %v4136
        %v4138 = vpop.f32.mrf.mxu0
        %v4139 = vadd.f32 %v3924, %v4138
        %4140 = vdwg.mxu0
        %4141 = vmatprep.subr.mxu0 0.0
        %4142 = vmatpush1.msra.mxu0 0.0
        %4143 = vmatprep.subr.mxu0 0.0
        %4144 = vmatpush1.msra.mxu0 0.0
        %4145 = vmatprep.subr.mxu0 0.0
        %4146 = vmatpush1.msra.mxu0 0.0
        %4147 = vmatprep.subr.mxu0 0.0
        %4148 = vmatpush1.msra.mxu0 0.0
        %4149 = vmatprep.subr.mxu0 0.0
        %4150 = vmatpush1.msra.mxu0 0.0
        %4151 = vmatprep.subr.mxu0 0.0
        %4152 = vmatpush1.msra.mxu0 0.0
        %4153 = vmatprep.subr.mxu0 0.0
        %4154 = vmatpush1.msra.mxu0 0.0
        %4155 = vmatprep.subr.mxu0 0.0
        %4156 = vmatpush1.msra.mxu0 0.0
        %4157 = vmatprep.subr.mxu0 0.0
        %4158 = vmatpush1.msra.mxu0 0.0
        %4159 = vmatprep.subr.mxu0 0.0
        %4160 = vmatpush1.msra.mxu0 0.0
        %4161 = vmatprep.subr.mxu0 0.0
        %4162 = vmatpush1.msra.mxu0 0.0
        %4163 = vmatprep.subr.mxu0 0.0
        %4164 = vmatpush1.msra.mxu0 0.0
        %4165 = vmatprep.subr.mxu0 0.0
        %4166 = vmatpush1.msra.mxu0 0.0
        %4167 = vmatprep.subr.mxu0 0.0
        %4168 = vmatpush1.msra.mxu0 0.0
        %4169 = vmatprep.subr.mxu0 %v3920
        %4170 = vmatpush1.msra.mxu0 %v3816
        %4171 = vmatprep.subr.mxu0 %v3088
        %4172 = vmatpush1.msra.mxu0 %v2984
        %4173 = vmatprep.subr.mxu0 0.0
        %4174 = vmatpush2.msra.mxu0 0.0
        %4175 = vmatprep.subr.mxu0 0.0
        %4176 = vmatpush2.msra.mxu0 0.0
        %4177 = vmatprep.subr.mxu0 0.0
        %4178 = vmatpush2.msra.mxu0 0.0
        %4179 = vmatprep.subr.mxu0 0.0
        %4180 = vmatpush2.msra.mxu0 0.0
        %4181 = vmatprep.subr.mxu0 0.0
        %4182 = vmatpush2.msra.mxu0 0.0
        %4183 = vmatprep.subr.mxu0 0.0
        %4184 = vmatpush2.msra.mxu0 0.0
        %4185 = vmatprep.subr.mxu0 0.0
        %4186 = vmatpush2.msra.mxu0 0.0
        %4187 = vmatprep.subr.mxu0 0.0
        %4188 = vmatpush2.msra.mxu0 0.0
        %4189 = vmatprep.subr.mxu0 0.0
        %4190 = vmatpush2.msra.mxu0 0.0
        %4191 = vmatprep.subr.mxu0 0.0
        %4192 = vmatpush2.msra.mxu0 0.0
        %4193 = vmatprep.subr.mxu0 0.0
        %4194 = vmatpush2.msra.mxu0 0.0
        %4195 = vmatprep.subr.mxu0 0.0
        %4196 = vmatpush2.msra.mxu0 0.0
        %4197 = vmatprep.subr.mxu0 0.0
        %4198 = vmatpush2.msra.mxu0 0.0
        %4199 = vmatprep.subr.mxu0 0.0
        %4200 = vmatpush2.msra.mxu0 0.0
        %4201 = vmatprep.subr.mxu0 0.0
        %4202 = vmatpush2.msra.mxu0 0.0
        %4203 = vmatprep.subr.mxu0 0.0
        %4204 = vmatpush2.msra.mxu0 0.0
        %4205 = vmatprep.mubr.f32.mxu0 0.0
        %4206 = vmatmul.mubr.f32.gmra.mxu0 %v3926
        %v4207 = vpop.f32.mrf.mxu0
        %v4208 = vadd.f32 %v3924, %v4207
        %v4209 = vpop.f32.mrf.mxu0
        %v4210 = vadd.f32 %v3924, %v4209
        %4211 = vdwg.mxu0
        %v4220 = vcombine.low %v3995, %v3997
        %v4221 = vcombine.low %v4066, %v4068
        %v4222 = vcombine.low %v4137, %v4139
        %v4223 = vcombine.low %v4208, %v4210
        %4228 = vst [vmem:[%s174] sm:$0xff] %v4220
        %4229 = vst [vmem:[%s174 + $0x8] sm:$0xff] %v4221
        %4230 = vst [vmem:[%s174 + $0x10] sm:$0xff] %v4222
        %4231 = vst [vmem:[%s174 + $0x18] sm:$0xff] %v4223
        %s4232 = sand.u32 %s75, 1
        %s4233 = scalar_lea.sflag [#allocation4], %s4232
        %s4234 = sand.u32 %s75, 1
        %s4235 = smul.addr %s4234, 32
        %s4236 = scalar_lea.vmem [#allocation7], %s4235
        // Predicated region
        $region37: #{tpu_custom_call.1} parent=27 // pred_check
          %p4237 = pneg %p85
        $region38: #{tpu_custom_call.1} parent=27 // pred_check_branch
          %4239 = sbr.rel (%p4237) target = $region40
        $region39: #{tpu_custom_call.1} parent=27 // pred_region
          %s4240 = smul.u32 8, %s20
          %s4242 = ssub.s32 512, 512
          %4243 = vsyncadd %s4233, %s4242
          %s4244 = smul.addr %s4240, 64
          %s4245 = scalar_lea.hbm %s2, %s4244
          %s4247 = sshll.u32 %s4236, 4
          %s4248 = int_to_ptr.vmem [resolvable:$true] %s4247
          %4250 = dma.vmem_to_hbm [thread:$0]  %s4248, 512, %s4245, %s4233
        $region40: #{tpu_custom_call.1} parent=27 // pred_fallthru
          _
      $region28: #{tpu_custom_call.1} parent=5 // pred_fallthru
        _
      %p4251 = scmp.le.s32.totalorder 2, %s15
      // Predicated region
      $region41: #{tpu_custom_call.1} parent=5 // pred_check
        %p4252 = pneg %p4251
      $region42: #{tpu_custom_call.1} parent=5 // pred_check_branch
        %4254 = sbr.rel (%p4252) target = $region44
      $region43: #{tpu_custom_call.1} parent=5 // pred_region
        %s4255 = ssub.s32 %s15, 2
        // Predicated region
        $region45: #{tpu_custom_call.1} parent=43 // pred_check
          %p4256 = pneg %p91
        $region46: #{tpu_custom_call.1} parent=43 // pred_check_branch
          %4258 = sbr.rel (%p4256) target = $region48
        $region47: #{tpu_custom_call.1} parent=43 // pred_region
          %s4259 = sand.u32 %s76, 1
          %s4260 = scalar_lea.sflag [#allocation4], %s4259
          %s4261 = sand.u32 %s76, 1
          %s4262 = smul.addr %s4261, 32
          %s4263 = scalar_lea.vmem [#allocation7], %s4262
          %4264 = dma.done %s4260, 512
        $region48: #{tpu_custom_call.1} parent=43 // pred_fallthru
          _
      $region44: #{tpu_custom_call.1} parent=5 // pred_fallthru
        _
    $region6: #{tpu_custom_call.1} parent=1 // loop_footer
      %s19 = sadd.s32 1, %s15
    $region7: #{tpu_custom_call.1} parent=1 // loop_footer_branch
      %14 = sbr.rel target = $region3
    $region8: #{tpu_custom_call.1} parent=1 // loop_exit
      _
    %4265 = vsyncpa [#allocation3], 1
    %s4266 = scalar_lea.sflag [#allocation3], 1
    %4267 = vsyncpa %s4266, 1
    %4268 = vsyncpa [#allocation6], 1
    %4269 = vsyncpa [#allocation4], 1
    %s4270 = scalar_lea.sflag [#allocation4], 1
    %4271 = vsyncpa %s4270, 1

</llo_original>
